<compile_context>
chip_gen: v5e
topology: v5e:2x2
jax: 0.10.0
libtpu: 0.0.40
codegen_flags: <defaults>
</compile_context>

<pallas_src>
import functools
import math

import jax
import jax.numpy as jnp
from jax import lax
from jax.experimental import pallas as pl
from jax.experimental.pallas import tpu as pltpu

_INV_SQRT2 = 1.0 / math.sqrt(2.0)
_LANE = 128


def _round_up(x: int, m: int) -> int:
    return (x + m - 1) // m * m


def _gelu_exact(x):
    # PyTorch nn.GELU() default = exact (erf-based) GELU, computed in f32.
    return 0.5 * x * (1.0 + lax.erf(x * _INV_SQRT2))


# --------------------------------------------------------------------------------------
# Kernel: one batch tile through the whole 4-layer MLP. Weights/biases are resident.
# --------------------------------------------------------------------------------------
def _mlp_kernel(x_ref, w_ref, b_ref, o_ref, *, out_p: int):
    # x_ref: (block_b, D)  bf16   (padded concat of [states, actions])
    # w_ref: (4, D, D)     bf16   (resident: constant index_map)
    # b_ref: (8, D)        f32    (rows 0..3 = layer biases, rows 4..7 = zero padding)
    # o_ref: (block_b, out_p) f32
    h = x_ref[...]                                                   # bf16
    for layer in range(3):
        z = jnp.dot(h, w_ref[layer], preferred_element_type=jnp.float32)
        z = z + b_ref[layer:layer + 1, :]                            # f32 accumulate
        h = _gelu_exact(z).astype(jnp.bfloat16)                      # GELU in f32, cast for MXU
    z = jnp.dot(h, w_ref[3], preferred_element_type=jnp.float32)
    z = z + b_ref[3:4, :]
    o_ref[...] = z[:, :out_p].astype(o_ref.dtype)                    # lane-aligned slice


# --------------------------------------------------------------------------------------
# Wrapper
# --------------------------------------------------------------------------------------
@functools.partial(jax.jit, static_argnames=("action_dim", "block_b"))
def one_step_policy_forward(states, actions, w_packed, b_packed, *, action_dim, block_b=128):
    """Forward pass of OneStepPolicy via a single Pallas call.

    states:   (B, state_dim)  f32
    actions:  (B, action_dim) f32
    w_packed: (4, D, D)       bf16  (zero-padded, (in, out) layout so y = x @ W + b)
    b_packed: (8, D)          f32   (rows 0..3 are biases)
    """
    B, S = states.shape
    A = actions.shape[1]
    n_layers, D, _ = w_packed.shape
    out_p = _round_up(action_dim, _LANE)

    # Concat + feature-pad to D + batch-pad to a multiple of block_b (all XLA-side).
    x = jnp.concatenate([states, actions], axis=-1)
    b_pad = _round_up(B, block_b)
    x = jnp.pad(x, ((0, b_pad - B), (0, D - (S + A)))).astype(jnp.bfloat16)

    grid = (pl.cdiv(b_pad, block_b),)
    out = pl.pallas_call(
        functools.partial(_mlp_kernel, out_p=out_p),
        out_shape=jax.ShapeDtypeStruct((b_pad, out_p), jnp.float32),
        grid_spec=pltpu.PrefetchScalarGridSpec(
            num_scalar_prefetch=0,
            grid=grid,
            in_specs=[
                pl.BlockSpec((block_b, D), lambda i: (i, 0)),           # batch tile of x
                pl.BlockSpec((n_layers, D, D), lambda i: (0, 0, 0)),    # weights resident
                pl.BlockSpec((8, D), lambda i: (0, 0)),                 # biases resident
            ],
            out_specs=pl.BlockSpec((block_b, out_p), lambda i: (i, 0)),
        ),
        compiler_params=pltpu.CompilerParams(
            dimension_semantics=("parallel",),   # shard batch tiles across TCs on v7x
        ),
    )(x, w_packed, b_packed)

    return out[:B, :action_dim]


# --------------------------------------------------------------------------------------
# Parameter helpers (PyTorch-style init, (in, out) weight layout so y = x @ W + b)
# --------------------------------------------------------------------------------------
def init_params(key, state_dim, action_dim, hidden_dim):
    ks = jax.random.split(key, 8)

    def linear(kw, kb, fan_in, fan_out):
        bound = 1.0 / math.sqrt(fan_in)
        w = jax.random.uniform(kw, (fan_in, fan_out), jnp.float32, -bound, bound)
        b = jax.random.uniform(kb, (fan_out,), jnp.float32, -bound, bound)
        return w, b

    w1, b1 = linear(ks[0], ks[1], state_dim + action_dim, hidden_dim)
    w2, b2 = linear(ks[2], ks[3], hidden_dim, hidden_dim)
    w3, b3 = linear(ks[4], ks[5], hidden_dim, hidden_dim)
    w4, b4 = linear(ks[6], ks[7], hidden_dim, action_dim)
    return dict(w1=w1, b1=b1, w2=w2, b2=b2, w3=w3, b3=b3, w4=w4, b4=b4)


def pack_params(params, state_dim, action_dim, hidden_dim):
    """Zero-pad every layer to a common (D, D) tile and stack -> 2 operands total."""
    in_dim = state_dim + action_dim
    D = max(_round_up(in_dim, _LANE),
            _round_up(hidden_dim, _LANE),
            _round_up(action_dim, _LANE))

    def pad_w(w):
        return jnp.pad(w, ((0, D - w.shape[0]), (0, D - w.shape[1])))

    def pad_b(b):
        return jnp.pad(b, (0, D - b.shape[0]))

    w_packed = jnp.stack([pad_w(params["w1"]), pad_w(params["w2"]),
                          pad_w(params["w3"]), pad_w(params["w4"])]).astype(jnp.bfloat16)
    b_rows = jnp.stack([pad_b(params["b1"]), pad_b(params["b2"]),
                        pad_b(params["b3"]), pad_b(params["b4"])]).astype(jnp.float32)
    b_packed = jnp.pad(b_rows, ((0, 8 - b_rows.shape[0]), (0, 0)))      # sublane-align to 8
    return w_packed, b_packed


def reference_forward(states, actions, params):
    x = jnp.concatenate([states, actions], axis=-1)
    h = _gelu_exact(x @ params["w1"] + params["b1"])
    h = _gelu_exact(h @ params["w2"] + params["b2"])
    h = _gelu_exact(h @ params["w3"] + params["b3"])
    return h @ params["w4"] + params["b4"]


# --------------------------------------------------------------------------------------
if __name__ == "__main__":
    B, STATE_DIM, ACTION_DIM, HIDDEN_DIM = 512, 17, 6, 256   # hidden_dim = module default

    key = jax.random.PRNGKey(0)
    k_s, k_a, k_p = jax.random.split(key, 3)

    states = jax.random.normal(k_s, (B, STATE_DIM), jnp.float32)
    actions = jax.random.normal(k_a, (B, ACTION_DIM), jnp.float32)
    params = init_params(k_p, STATE_DIM, ACTION_DIM, HIDDEN_DIM)
    w_packed, b_packed = pack_params(params, STATE_DIM, ACTION_DIM, HIDDEN_DIM)

    out = one_step_policy_forward(states, actions, w_packed, b_packed,
                                  action_dim=ACTION_DIM, block_b=128)
    out = jax.block_until_ready(out)

    ref = reference_forward(states, actions, params)
    assert out.shape == (B, ACTION_DIM)
    # bf16 MXU inputs -> relaxed tolerance vs the f32 reference (per review).
    max_err = float(jnp.max(jnp.abs(out - ref)))
    assert jnp.allclose(out, ref, atol=5e-2, rtol=5e-2), f"max abs err = {max_err}"

    print("KERNEL_OK")
</pallas_src>

<mosaic_0001>
module attributes {stable_mosaic.version = 11 : i64} {
  func.func @_mlp_kernel(%arg0: i32, %arg1: memref<128x256xbf16, #tpu.memory_space<vmem>>, %arg2: memref<4x256x256xbf16, #tpu.memory_space<vmem>>, %arg3: memref<8x256xf32, #tpu.memory_space<vmem>>, %arg4: memref<128x128xf32, #tpu.memory_space<vmem>>) attributes {dimension_semantics = [#tpu.dimension_semantics<parallel>], iteration_bounds = array<i64: 4>, scalar_prefetch = 0 : i64, scratch_operands = 0 : i64, tpu.core_type = #tpu.core_type<tc>, window_params = [{transform_indices = @transform_0, window_bounds = array<i64: 128, 256>}, {pipeline_mode = #tpu.pipeline_mode<synchronous>, transform_indices = @transform_1, window_bounds = array<i64: 4, 256, 256>}, {pipeline_mode = #tpu.pipeline_mode<synchronous>, transform_indices = @transform_2, window_bounds = array<i64: 8, 256>}, {transform_indices = @transform_3, window_bounds = array<i64: 128, 128>}]} {
    %c0 = arith.constant 0 : index
    %c0_0 = arith.constant 0 : index
    %0 = vector.load %arg1[%c0, %c0_0] : memref<128x256xbf16, #tpu.memory_space<vmem>>, vector<128x256xbf16>
    %c0_1 = arith.constant 0 : index
    %c0_2 = arith.constant 0 : index
    %c0_3 = arith.constant 0 : index
    %1 = vector.load %arg2[%c0_1, %c0_2, %c0_3] : memref<4x256x256xbf16, #tpu.memory_space<vmem>>, vector<1x256x256xbf16>
    %2 = vector.shape_cast %1 : vector<1x256x256xbf16> to vector<256x256xbf16>
    %cst = arith.constant dense<0.000000e+00> : vector<128x256xf32>
    %3 = tpu.matmul %0, %2, %cst {dimension_numbers = #tpu.dot_dimension_numbers<[1], [0], [0], [1], [0, 0, 1, 1], [], []>} : vector<128x256xbf16>, vector<256x256xbf16>, vector<128x256xf32> -> vector<128x256xf32>
    %c0_4 = arith.constant 0 : index
    %c0_5 = arith.constant 0 : index
    %4 = vector.load %arg3[%c0_4, %c0_5] : memref<8x256xf32, #tpu.memory_space<vmem>>, vector<1x256xf32>
    %5 = vector.broadcast %4 : vector<1x256xf32> to vector<128x256xf32>
    %6 = arith.addf %3, %5 : vector<128x256xf32>
    %cst_6 = arith.constant 5.000000e-01 : f32
    %7 = vector.broadcast %cst_6 : f32 to vector<128x256xf32>
    %8 = arith.mulf %7, %6 : vector<128x256xf32>
    %cst_7 = arith.constant 0.707106769 : f32
    %9 = vector.broadcast %cst_7 : f32 to vector<128x256xf32>
    %10 = arith.mulf %6, %9 : vector<128x256xf32>
    %11 = math.erf %10 : vector<128x256xf32>
    %cst_8 = arith.constant 1.000000e+00 : f32
    %12 = vector.broadcast %cst_8 : f32 to vector<128x256xf32>
    %13 = arith.addf %12, %11 : vector<128x256xf32>
    %14 = arith.mulf %8, %13 : vector<128x256xf32>
    %15 = arith.truncf %14 : vector<128x256xf32> to vector<128x256xbf16>
    %c1 = arith.constant 1 : index
    %c0_9 = arith.constant 0 : index
    %c0_10 = arith.constant 0 : index
    %16 = vector.load %arg2[%c1, %c0_9, %c0_10] : memref<4x256x256xbf16, #tpu.memory_space<vmem>>, vector<1x256x256xbf16>
    %17 = vector.shape_cast %16 : vector<1x256x256xbf16> to vector<256x256xbf16>
    %cst_11 = arith.constant dense<0.000000e+00> : vector<128x256xf32>
    %18 = tpu.matmul %15, %17, %cst_11 {dimension_numbers = #tpu.dot_dimension_numbers<[1], [0], [0], [1], [0, 0, 1, 1], [], []>} : vector<128x256xbf16>, vector<256x256xbf16>, vector<128x256xf32> -> vector<128x256xf32>
    %c1_12 = arith.constant 1 : index
    %c0_13 = arith.constant 0 : index
    %19 = vector.load %arg3[%c1_12, %c0_13] : memref<8x256xf32, #tpu.memory_space<vmem>>, vector<1x256xf32>
    %20 = vector.broadcast %19 : vector<1x256xf32> to vector<128x256xf32>
    %21 = arith.addf %18, %20 : vector<128x256xf32>
    %cst_14 = arith.constant 5.000000e-01 : f32
    %22 = vector.broadcast %cst_14 : f32 to vector<128x256xf32>
    %23 = arith.mulf %22, %21 : vector<128x256xf32>
    %cst_15 = arith.constant 0.707106769 : f32
    %24 = vector.broadcast %cst_15 : f32 to vector<128x256xf32>
    %25 = arith.mulf %21, %24 : vector<128x256xf32>
    %26 = math.erf %25 : vector<128x256xf32>
    %cst_16 = arith.constant 1.000000e+00 : f32
    %27 = vector.broadcast %cst_16 : f32 to vector<128x256xf32>
    %28 = arith.addf %27, %26 : vector<128x256xf32>
    %29 = arith.mulf %23, %28 : vector<128x256xf32>
    %30 = arith.truncf %29 : vector<128x256xf32> to vector<128x256xbf16>
    %c2 = arith.constant 2 : index
    %c0_17 = arith.constant 0 : index
    %c0_18 = arith.constant 0 : index
    %31 = vector.load %arg2[%c2, %c0_17, %c0_18] : memref<4x256x256xbf16, #tpu.memory_space<vmem>>, vector<1x256x256xbf16>
    %32 = vector.shape_cast %31 : vector<1x256x256xbf16> to vector<256x256xbf16>
    %cst_19 = arith.constant dense<0.000000e+00> : vector<128x256xf32>
    %33 = tpu.matmul %30, %32, %cst_19 {dimension_numbers = #tpu.dot_dimension_numbers<[1], [0], [0], [1], [0, 0, 1, 1], [], []>} : vector<128x256xbf16>, vector<256x256xbf16>, vector<128x256xf32> -> vector<128x256xf32>
    %c2_20 = arith.constant 2 : index
    %c0_21 = arith.constant 0 : index
    %34 = vector.load %arg3[%c2_20, %c0_21] : memref<8x256xf32, #tpu.memory_space<vmem>>, vector<1x256xf32>
    %35 = vector.broadcast %34 : vector<1x256xf32> to vector<128x256xf32>
    %36 = arith.addf %33, %35 : vector<128x256xf32>
    %cst_22 = arith.constant 5.000000e-01 : f32
    %37 = vector.broadcast %cst_22 : f32 to vector<128x256xf32>
    %38 = arith.mulf %37, %36 : vector<128x256xf32>
    %cst_23 = arith.constant 0.707106769 : f32
    %39 = vector.broadcast %cst_23 : f32 to vector<128x256xf32>
    %40 = arith.mulf %36, %39 : vector<128x256xf32>
    %41 = math.erf %40 : vector<128x256xf32>
    %cst_24 = arith.constant 1.000000e+00 : f32
    %42 = vector.broadcast %cst_24 : f32 to vector<128x256xf32>
    %43 = arith.addf %42, %41 : vector<128x256xf32>
    %44 = arith.mulf %38, %43 : vector<128x256xf32>
    %45 = arith.truncf %44 : vector<128x256xf32> to vector<128x256xbf16>
    %c3 = arith.constant 3 : index
    %c0_25 = arith.constant 0 : index
    %c0_26 = arith.constant 0 : index
    %46 = vector.load %arg2[%c3, %c0_25, %c0_26] : memref<4x256x256xbf16, #tpu.memory_space<vmem>>, vector<1x256x256xbf16>
    %47 = vector.shape_cast %46 : vector<1x256x256xbf16> to vector<256x256xbf16>
    %cst_27 = arith.constant dense<0.000000e+00> : vector<128x256xf32>
    %48 = tpu.matmul %45, %47, %cst_27 {dimension_numbers = #tpu.dot_dimension_numbers<[1], [0], [0], [1], [0, 0, 1, 1], [], []>} : vector<128x256xbf16>, vector<256x256xbf16>, vector<128x256xf32> -> vector<128x256xf32>
    %c3_28 = arith.constant 3 : index
    %c0_29 = arith.constant 0 : index
    %49 = vector.load %arg3[%c3_28, %c0_29] : memref<8x256xf32, #tpu.memory_space<vmem>>, vector<1x256xf32>
    %50 = vector.broadcast %49 : vector<1x256xf32> to vector<128x256xf32>
    %51 = arith.addf %48, %50 : vector<128x256xf32>
    %52 = vector.extract_strided_slice %51 {offsets = [0, 0], sizes = [128, 128], strides = [1, 1]} : vector<128x256xf32> to vector<128x128xf32>
    %c0_30 = arith.constant 0 : index
    %c0_31 = arith.constant 0 : index
    %53 = vector.load %arg4[%c0_30, %c0_31] : memref<128x128xf32, #tpu.memory_space<vmem>>, vector<128x128xf32>
    tpu.vector_store %arg4[%c0_30, %c0_31], %52 {strides = array<i32>} : memref<128x128xf32, #tpu.memory_space<vmem>>, vector<128x128xf32>,
    return
  }
  func.func @transform_0(%arg0: i32) -> (i32, i32) {
    %c0_i32 = arith.constant 0 : i32
    %c0_i32_0 = arith.constant 0 : i32
    return %arg0, %c0_i32 : i32, i32
  }
  func.func @transform_1(%arg0: i32) -> (i32, i32, i32) {
    %c0_i32 = arith.constant 0 : i32
    %c0_i32_0 = arith.constant 0 : i32
    %c0_i32_1 = arith.constant 0 : i32
    %c0_i32_2 = arith.constant 0 : i32
    return %c0_i32, %c0_i32_0, %c0_i32_1 : i32, i32, i32
  }
  func.func @transform_2(%arg0: i32) -> (i32, i32) {
    %c0_i32 = arith.constant 0 : i32
    %c0_i32_0 = arith.constant 0 : i32
    %c0_i32_1 = arith.constant 0 : i32
    return %c0_i32, %c0_i32_0 : i32, i32
  }
  func.func @transform_3(%arg0: i32) -> (i32, i32) {
    %c0_i32 = arith.constant 0 : i32
    %c0_i32_0 = arith.constant 0 : i32
    return %arg0, %c0_i32 : i32, i32
  }
}

</mosaic_0001>

<llo_original>
// kernel: one_step_policy_forward.1
$region0: #{one_step_policy_forward.1}
  #allocation0 [shape = 'u32[]', space=smem, size = 0x4, offset = 0x4, fixed_abs, tag = 'smem constant byte address 0x4 - core index']
  #allocation1 [shape = 'u32[72,128]{1,0:T(1,128)}', space=vmem, size = 0x9000, scoped, tag = 'internal scratch']
  %s0 = inlined_call_operand.vmem [shape: bf16[512,256], index: 0, kind: input, shape index: {}]
  %s1 = inlined_call_operand.vmem [shape: bf16[4,256,256], index: 1, kind: input, shape index: {}]
  %s2 = inlined_call_operand.vmem [shape: f32[8,256], index: 2, kind: input, shape index: {}]
  %s3 = inlined_call_operand.vmem [shape: f32[512,128], index: 3, kind: output, shape index: {}]
  %s4 = sld [smem:[#allocation0]]
  $region45: #{one_step_policy_forward.1} parent=0
    _
  %s6 = ssub.s32 1, %s4
  %s7 = scalar_select 0, %s6, %s4
  loop: start=0, step=1, limit=6
  $region2: #{one_step_policy_forward.1} parent=0 // loop_pre_header
    _
  $region3: #{one_step_policy_forward.1} parent=0 // loop_header
    %s9 = sphi 0, %s13
    %p10 = scmp.ge.s32.totalorder %s9, 6
    %s19 = sphi 0, %s21
    %s22 = sphi 0, %s19
    %s23 = sphi 0, %s22
    %s39 = sphi 0, %s23
    %s43 = sphi 0, %s43
    %s45 = sphi 0, %s43
    %s46 = sphi 0, %s45
    %s60 = sphi 0, %s46
    %s64 = sphi 0, %s64
    %s66 = sphi 0, %s64
    %s67 = sphi 0, %s66
    %s81 = sphi 0, %s67
    %s87 = sphi 0, %s89
    %s90 = sphi 0, %s87
    %s91 = sphi 0, %s90
    %s107 = sphi 0, %s91
  $region4: #{one_step_policy_forward.1} parent=0 // loop_header_branch
    %12 = sbr.rel (%p10) target = $region8
  $region5: #{one_step_policy_forward.1} parent=0 // loop_body
    %s14 = ssub.s32 %s9, 1
    %s15 = ssub.s32 %s9, 2
    %s16 = sadd.s32 %s9, 1
    %s17 = ssub.s32 %s9, %s16
    %p18 = scmp.eq.s32.totalorder %s17, 0
    %s20 = sadd.s32 %s19, 1
    %s21 = scalar_select %p18, %s19, %s20
    %p24 = pneg %p18
    %p25 = scmp.eq.s32.totalorder %s9, 3
    %p26 = por %p24, %p25
    %p27 = scmp.ne.s32.totalorder %s19, %s22
    %p28 = scmp.eq.s32.totalorder %s9, 0
    %p29 = por %p27, %p28
    %p30 = scmp.ne.s32.totalorder %s19, %s22
    %p31 = scmp.eq.s32.totalorder %s14, 3
    %p32 = por %p30, %p31
    %p33 = scmp.ne.s32.totalorder %s22, %s23
    %p34 = scmp.eq.s32.totalorder %s14, 0
    %p35 = por %p33, %p34
    %p36 = scmp.ne.s32.totalorder %s22, %s23
    %p37 = scmp.eq.s32.totalorder %s15, 3
    %p38 = por %p36, %p37
    %p40 = scmp.ne.s32.totalorder %s23, %s39
    %p41 = scmp.eq.s32.totalorder %s15, 0
    %p42 = por %p40, %p41
    %s44 = sadd.s32 %s43, 1
    %p47 = scmp.eq.s32.totalorder %s9, 3
    %p48 = scmp.ne.s32.totalorder %s43, %s45
    %p49 = scmp.eq.s32.totalorder %s9, 0
    %p50 = por %p48, %p49
    %p51 = scmp.ne.s32.totalorder %s43, %s45
    %p52 = scmp.eq.s32.totalorder %s14, 3
    %p53 = por %p51, %p52
    %p54 = scmp.ne.s32.totalorder %s45, %s46
    %p55 = scmp.eq.s32.totalorder %s14, 0
    %p56 = por %p54, %p55
    %p57 = scmp.ne.s32.totalorder %s45, %s46
    %p58 = scmp.eq.s32.totalorder %s15, 3
    %p59 = por %p57, %p58
    %p61 = scmp.ne.s32.totalorder %s46, %s60
    %p62 = scmp.eq.s32.totalorder %s15, 0
    %p63 = por %p61, %p62
    %s65 = sadd.s32 %s64, 1
    %p68 = scmp.eq.s32.totalorder %s9, 3
    %p69 = scmp.ne.s32.totalorder %s64, %s66
    %p70 = scmp.eq.s32.totalorder %s9, 0
    %p71 = por %p69, %p70
    %p72 = scmp.ne.s32.totalorder %s64, %s66
    %p73 = scmp.eq.s32.totalorder %s14, 3
    %p74 = por %p72, %p73
    %p75 = scmp.ne.s32.totalorder %s66, %s67
    %p76 = scmp.eq.s32.totalorder %s14, 0
    %p77 = por %p75, %p76
    %p78 = scmp.ne.s32.totalorder %s66, %s67
    %p79 = scmp.eq.s32.totalorder %s15, 3
    %p80 = por %p78, %p79
    %p82 = scmp.ne.s32.totalorder %s67, %s81
    %p83 = scmp.eq.s32.totalorder %s15, 0
    %p84 = por %p82, %p83
    %s85 = ssub.s32 %s9, %s16
    %p86 = scmp.eq.s32.totalorder %s85, 0
    %s88 = sadd.s32 %s87, 1
    %s89 = scalar_select %p86, %s87, %s88
    %p92 = pneg %p86
    %p93 = scmp.eq.s32.totalorder %s9, 3
    %p94 = por %p92, %p93
    %p95 = scmp.ne.s32.totalorder %s87, %s90
    %p96 = scmp.eq.s32.totalorder %s9, 0
    %p97 = por %p95, %p96
    %p98 = scmp.ne.s32.totalorder %s87, %s90
    %p99 = scmp.eq.s32.totalorder %s14, 3
    %p100 = por %p98, %p99
    %p101 = scmp.ne.s32.totalorder %s90, %s91
    %p102 = scmp.eq.s32.totalorder %s14, 0
    %p103 = por %p101, %p102
    %p104 = scmp.ne.s32.totalorder %s90, %s91
    %p105 = scmp.eq.s32.totalorder %s15, 3
    %p106 = por %p104, %p105
    %p108 = scmp.ne.s32.totalorder %s91, %s107
    %p109 = scmp.eq.s32.totalorder %s15, 0
    %p110 = por %p108, %p109
    %p111 = scmp.le.s32.totalorder 1, %s9
    %p112 = scmp.lt.s32.totalorder %s9, 5
    %p113 = pnand %p111, %p112
    %p114 = pneg %p113
    // Predicated region
    $region9: #{one_step_policy_forward.1} parent=5 // pred_check
      _
    $region10: #{one_step_policy_forward.1} parent=5 // pred_check_branch
      %116 = sbr.rel (%p113) target = $region12
    $region11: #{one_step_policy_forward.1} parent=5 // pred_region
      %s117 = ssub.s32 %s9, 1
      // Predicated region
      $region13: #{one_step_policy_forward.1} parent=11 // pred_check
        %p118 = pneg %p56
      $region14: #{one_step_policy_forward.1} parent=11 // pred_check_branch
        %120 = sbr.rel (%p118) target = $region16
      $region15: #{one_step_policy_forward.1} parent=11 // pred_region
        _
      $region16: #{one_step_policy_forward.1} parent=11 // pred_fallthru
        _
      // Predicated region
      $region17: #{one_step_policy_forward.1} parent=11 // pred_check
        %p121 = pneg %p77
      $region18: #{one_step_policy_forward.1} parent=11 // pred_check_branch
        %123 = sbr.rel (%p121) target = $region20
      $region19: #{one_step_policy_forward.1} parent=11 // pred_region
        _
      $region20: #{one_step_policy_forward.1} parent=11 // pred_fallthru
        _
    $region12: #{one_step_policy_forward.1} parent=5 // pred_fallthru
      _
    %p124 = scmp.lt.s32.totalorder %s9, 4
    // Predicated region
    $region21: #{one_step_policy_forward.1} parent=5 // pred_check
      %p125 = pneg %p124
    $region22: #{one_step_policy_forward.1} parent=5 // pred_check_branch
      %127 = sbr.rel (%p125) target = $region24
    $region23: #{one_step_policy_forward.1} parent=5 // pred_region
      // Predicated region
      $region25: #{one_step_policy_forward.1} parent=23 // pred_check
        %p128 = pneg %p29
      $region26: #{one_step_policy_forward.1} parent=23 // pred_check_branch
        %130 = sbr.rel (%p128) target = $region28
      $region27: #{one_step_policy_forward.1} parent=23 // pred_region
        %s131 = smul.u32 16, %s9
        %p132 = scmp.lt.s32.totalorder %s131, 63
        %s133 = scalar_select %p132, %s131, 63
        %s134 = smul.addr %s133, 2
        %s135 = smul.addr %s134, 4
        %s136 = scalar_lea.vmem %s0, %s135
        %s137 = smul.u32 16, %s9
      $region28: #{one_step_policy_forward.1} parent=23 // pred_fallthru
        _
    $region24: #{one_step_policy_forward.1} parent=5 // pred_fallthru
      _
    %p138 = scmp.le.s32.totalorder 1, %s9
    %p139 = scmp.lt.s32.totalorder %s9, 5
    %p140 = pnand %p138, %p139
    %p141 = pneg %p140
    // Predicated region
    $region29: #{one_step_policy_forward.1} parent=5 // pred_check
      _
    $region30: #{one_step_policy_forward.1} parent=5 // pred_check_branch
      %143 = sbr.rel (%p140) target = $region32
    $region31: #{one_step_policy_forward.1} parent=5 // pred_region
      %s144 = ssub.s32 %s9, 1
      %s145 = smul.u32 16, %s14
      %p146 = scmp.lt.s32.totalorder %s145, 63
      %s147 = scalar_select %p146, %s145, 63
      %s148 = smul.addr %s147, 2
      %s149 = smul.addr %s148, 4
      %s150 = scalar_lea.vmem %s0, %s149
      %p151 = pneg %p35
      %p152 = pneg %p32
      %p153 = pneg %p56
      %p154 = pneg %p53
      %p155 = pneg %p77
      %p156 = pneg %p74
      %p157 = pneg %p103
      %p158 = pneg %p100
      %s159 = smul.u32 16, %s14
      %p160 = scmp.lt.s32.totalorder %s159, 63
      %s161 = scalar_select %p160, %s159, 63
      %s162 = smul.addr %s161, 8
      %s163 = scalar_lea.vmem %s3, %s162
      %s164 = smul.u32 16, %s14
      %p165 = scmp.lt.s32.totalorder %s164, 63
      %s166 = scalar_select %p165, %s164, 63
      %s167 = smul.addr %s166, 2
      %s168 = smul.addr %s167, 4
      %s169 = scalar_lea.vmem %s0, %s168
      %s170 = smul.u32 16, %s14
      %s171 = smul.u32 16, %s14
      %p172 = scmp.lt.s32.totalorder %s171, 63
      %s173 = scalar_select %p172, %s171, 63
      %s174 = smul.addr %s173, 8
      %s175 = scalar_lea.vmem %s3, %s174
      %s176 = smul.u32 16, %s14
      %v177 = vld [vmem:[%s169] sm:$0xff]
      %v178 = vld [vmem:[%s169 + $0x8] sm:$0xff]
      %v179 = vld [vmem:[%s169 + $0x10] sm:$0xff]
      %v180 = vld [vmem:[%s169 + $0x18] sm:$0xff]
      %v181 = vld [vmem:[%s169 + $0x20] sm:$0xff]
      %v182 = vld [vmem:[%s169 + $0x28] sm:$0xff]
      %v183 = vld [vmem:[%s169 + $0x30] sm:$0xff]
      %v184 = vld [vmem:[%s169 + $0x38] sm:$0xff]
      %v185 = vld [vmem:[%s169 + $0x40] sm:$0xff]
      %v186 = vld [vmem:[%s169 + $0x48] sm:$0xff]
      %v187 = vld [vmem:[%s169 + $0x50] sm:$0xff]
      %v188 = vld [vmem:[%s169 + $0x58] sm:$0xff]
      %v189 = vld [vmem:[%s169 + $0x60] sm:$0xff]
      %v190 = vld [vmem:[%s169 + $0x68] sm:$0xff]
      %v191 = vld [vmem:[%s169 + $0x70] sm:$0xff]
      %v192 = vld [vmem:[%s169 + $0x78] sm:$0xff]
      %v193 = vld [vmem:[%s1] sm:$0xff]
      %v194 = vld [vmem:[%s1 + $0x8] sm:$0xff]
      %v195 = vld [vmem:[%s1 + $0x10] sm:$0xff]
      %v196 = vld [vmem:[%s1 + $0x18] sm:$0xff]
      %v197 = vld [vmem:[%s1 + $0x20] sm:$0xff]
      %v198 = vld [vmem:[%s1 + $0x28] sm:$0xff]
      %v199 = vld [vmem:[%s1 + $0x30] sm:$0xff]
      %v200 = vld [vmem:[%s1 + $0x38] sm:$0xff]
      %v201 = vld [vmem:[%s1 + $0x40] sm:$0xff]
      %v202 = vld [vmem:[%s1 + $0x48] sm:$0xff]
      %v203 = vld [vmem:[%s1 + $0x50] sm:$0xff]
      %v204 = vld [vmem:[%s1 + $0x58] sm:$0xff]
      %v205 = vld [vmem:[%s1 + $0x60] sm:$0xff]
      %v206 = vld [vmem:[%s1 + $0x68] sm:$0xff]
      %v207 = vld [vmem:[%s1 + $0x70] sm:$0xff]
      %v208 = vld [vmem:[%s1 + $0x78] sm:$0xff]
      %v209 = vld [vmem:[%s1 + $0x80] sm:$0xff]
      %v210 = vld [vmem:[%s1 + $0x88] sm:$0xff]
      %v211 = vld [vmem:[%s1 + $0x90] sm:$0xff]
      %v212 = vld [vmem:[%s1 + $0x98] sm:$0xff]
      %v213 = vld [vmem:[%s1 + $0xa0] sm:$0xff]
      %v214 = vld [vmem:[%s1 + $0xa8] sm:$0xff]
      %v215 = vld [vmem:[%s1 + $0xb0] sm:$0xff]
      %v216 = vld [vmem:[%s1 + $0xb8] sm:$0xff]
      %v217 = vld [vmem:[%s1 + $0xc0] sm:$0xff]
      %v218 = vld [vmem:[%s1 + $0xc8] sm:$0xff]
      %v219 = vld [vmem:[%s1 + $0xd0] sm:$0xff]
      %v220 = vld [vmem:[%s1 + $0xd8] sm:$0xff]
      %v221 = vld [vmem:[%s1 + $0xe0] sm:$0xff]
      %v222 = vld [vmem:[%s1 + $0xe8] sm:$0xff]
      %v223 = vld [vmem:[%s1 + $0xf0] sm:$0xff]
      %v224 = vld [vmem:[%s1 + $0xf8] sm:$0xff]
      %v225 = vld [vmem:[%s2] ss:$8 sm:$0x3]
      %v227 = vperm.slane %v225, 0
      %v228 = vperm.slane %v225, 1
      %v247 = vunpack.c.l.b16 %v177
      %v248 = vunpack.c.h.b16 %v177
      %v249 = vunpack.c.l.b16 %v178
      %v250 = vunpack.c.h.b16 %v178
      %v251 = vunpack.c.l.b16 %v179
      %v252 = vunpack.c.h.b16 %v179
      %v253 = vunpack.c.l.b16 %v180
      %v254 = vunpack.c.h.b16 %v180
      %v255 = vunpack.c.l.b16 %v181
      %v256 = vunpack.c.h.b16 %v181
      %v257 = vunpack.c.l.b16 %v182
      %v258 = vunpack.c.h.b16 %v182
      %v259 = vunpack.c.l.b16 %v183
      %v260 = vunpack.c.h.b16 %v183
      %v261 = vunpack.c.l.b16 %v184
      %v262 = vunpack.c.h.b16 %v184
      %v263 = vunpack.c.l.b16 %v185
      %v264 = vunpack.c.h.b16 %v185
      %v265 = vunpack.c.l.b16 %v186
      %v266 = vunpack.c.h.b16 %v186
      %v267 = vunpack.c.l.b16 %v187
      %v268 = vunpack.c.h.b16 %v187
      %v269 = vunpack.c.l.b16 %v188
      %v270 = vunpack.c.h.b16 %v188
      %v271 = vunpack.c.l.b16 %v189
      %v272 = vunpack.c.h.b16 %v189
      %v273 = vunpack.c.l.b16 %v190
      %v274 = vunpack.c.h.b16 %v190
      %v275 = vunpack.c.l.b16 %v191
      %v276 = vunpack.c.h.b16 %v191
      %v277 = vunpack.c.l.b16 %v192
      %v278 = vunpack.c.h.b16 %v192
      %v279 = vpack.c.b16 %v249, %v247
      %v280 = vpack.c.b16 %v250, %v248
      %v281 = vpack.c.b16 %v253, %v251
      %v282 = vpack.c.b16 %v254, %v252
      %v283 = vpack.c.b16 %v257, %v255
      %v284 = vpack.c.b16 %v258, %v256
      %v285 = vpack.c.b16 %v261, %v259
      %v286 = vpack.c.b16 %v262, %v260
      %v287 = vpack.c.b16 %v265, %v263
      %v288 = vpack.c.b16 %v266, %v264
      %v289 = vpack.c.b16 %v269, %v267
      %v290 = vpack.c.b16 %v270, %v268
      %v291 = vpack.c.b16 %v273, %v271
      %v292 = vpack.c.b16 %v274, %v272
      %v293 = vpack.c.b16 %v277, %v275
      %v294 = vpack.c.b16 %v278, %v276
      %v343 = vunpack.c.l.b16 %v193
      %v344 = vunpack.c.h.b16 %v193
      %v345 = vunpack.c.l.b16 %v194
      %v346 = vunpack.c.h.b16 %v194
      %v347 = vunpack.c.l.b16 %v195
      %v348 = vunpack.c.h.b16 %v195
      %v349 = vunpack.c.l.b16 %v196
      %v350 = vunpack.c.h.b16 %v196
      %v351 = vunpack.c.l.b16 %v197
      %v352 = vunpack.c.h.b16 %v197
      %v353 = vunpack.c.l.b16 %v198
      %v354 = vunpack.c.h.b16 %v198
      %v355 = vunpack.c.l.b16 %v199
      %v356 = vunpack.c.h.b16 %v199
      %v357 = vunpack.c.l.b16 %v200
      %v358 = vunpack.c.h.b16 %v200
      %v359 = vunpack.c.l.b16 %v201
      %v360 = vunpack.c.h.b16 %v201
      %v361 = vunpack.c.l.b16 %v202
      %v362 = vunpack.c.h.b16 %v202
      %v363 = vunpack.c.l.b16 %v203
      %v364 = vunpack.c.h.b16 %v203
      %v365 = vunpack.c.l.b16 %v204
      %v366 = vunpack.c.h.b16 %v204
      %v367 = vunpack.c.l.b16 %v205
      %v368 = vunpack.c.h.b16 %v205
      %v369 = vunpack.c.l.b16 %v206
      %v370 = vunpack.c.h.b16 %v206
      %v371 = vunpack.c.l.b16 %v207
      %v372 = vunpack.c.h.b16 %v207
      %v373 = vunpack.c.l.b16 %v208
      %v374 = vunpack.c.h.b16 %v208
      %v375 = vunpack.c.l.b16 %v209
      %v376 = vunpack.c.h.b16 %v209
      %v377 = vunpack.c.l.b16 %v210
      %v378 = vunpack.c.h.b16 %v210
      %v379 = vunpack.c.l.b16 %v211
      %v380 = vunpack.c.h.b16 %v211
      %v381 = vunpack.c.l.b16 %v212
      %v382 = vunpack.c.h.b16 %v212
      %v383 = vunpack.c.l.b16 %v213
      %v384 = vunpack.c.h.b16 %v213
      %v385 = vunpack.c.l.b16 %v214
      %v386 = vunpack.c.h.b16 %v214
      %v387 = vunpack.c.l.b16 %v215
      %v388 = vunpack.c.h.b16 %v215
      %v389 = vunpack.c.l.b16 %v216
      %v390 = vunpack.c.h.b16 %v216
      %v391 = vunpack.c.l.b16 %v217
      %v392 = vunpack.c.h.b16 %v217
      %v393 = vunpack.c.l.b16 %v218
      %v394 = vunpack.c.h.b16 %v218
      %v395 = vunpack.c.l.b16 %v219
      %v396 = vunpack.c.h.b16 %v219
      %v397 = vunpack.c.l.b16 %v220
      %v398 = vunpack.c.h.b16 %v220
      %v399 = vunpack.c.l.b16 %v221
      %v400 = vunpack.c.h.b16 %v221
      %v401 = vunpack.c.l.b16 %v222
      %v402 = vunpack.c.h.b16 %v222
      %v403 = vunpack.c.l.b16 %v223
      %v404 = vunpack.c.h.b16 %v223
      %v405 = vunpack.c.l.b16 %v224
      %v406 = vunpack.c.h.b16 %v224
      %v407 = vpack.c.b16 %v345, %v343
      %v408 = vpack.c.b16 %v346, %v344
      %v409 = vpack.c.b16 %v349, %v347
      %v410 = vpack.c.b16 %v350, %v348
      %v411 = vpack.c.b16 %v353, %v351
      %v412 = vpack.c.b16 %v354, %v352
      %v413 = vpack.c.b16 %v357, %v355
      %v414 = vpack.c.b16 %v358, %v356
      %v415 = vpack.c.b16 %v361, %v359
      %v416 = vpack.c.b16 %v362, %v360
      %v417 = vpack.c.b16 %v365, %v363
      %v418 = vpack.c.b16 %v366, %v364
      %v419 = vpack.c.b16 %v369, %v367
      %v420 = vpack.c.b16 %v370, %v368
      %v421 = vpack.c.b16 %v373, %v371
      %v422 = vpack.c.b16 %v374, %v372
      %v423 = vpack.c.b16 %v377, %v375
      %v424 = vpack.c.b16 %v378, %v376
      %v425 = vpack.c.b16 %v381, %v379
      %v426 = vpack.c.b16 %v382, %v380
      %v427 = vpack.c.b16 %v385, %v383
      %v428 = vpack.c.b16 %v386, %v384
      %v429 = vpack.c.b16 %v389, %v387
      %v430 = vpack.c.b16 %v390, %v388
      %v431 = vpack.c.b16 %v393, %v391
      %v432 = vpack.c.b16 %v394, %v392
      %v433 = vpack.c.b16 %v397, %v395
      %v434 = vpack.c.b16 %v398, %v396
      %v435 = vpack.c.b16 %v401, %v399
      %v436 = vpack.c.b16 %v402, %v400
      %v437 = vpack.c.b16 %v405, %v403
      %v438 = vpack.c.b16 %v406, %v404
      %471 = vmatpush.bf16.msra.mxu0 %v421
      %472 = vmatpush.bf16.msra.mxu0 %v419
      %473 = vmatpush.bf16.msra.mxu0 %v417
      %474 = vmatpush.bf16.msra.mxu0 %v415
      %475 = vmatpush.bf16.msra.mxu0 %v413
      %476 = vmatpush.bf16.msra.mxu0 %v411
      %477 = vmatpush.bf16.msra.mxu0 %v409
      %478 = vmatpush.bf16.msra.mxu0 %v407
      %479 = vmatmul.bf16.gmra.mxu0 %v279
      %v480 = vpop.f32.mrf.mxu0
      %v481 = vadd.f32 %v227, %v480
      %v482 = vpop.f32.mrf.mxu0
      %v483 = vadd.f32 %v227, %v482
      %484 = vmatmul.bf16.gmra.mxu0 %v281
      %v485 = vpop.f32.mrf.mxu0
      %v486 = vadd.f32 %v227, %v485
      %v487 = vpop.f32.mrf.mxu0
      %v488 = vadd.f32 %v227, %v487
      %489 = vmatmul.bf16.gmra.mxu0 %v283
      %v490 = vpop.f32.mrf.mxu0
      %v491 = vadd.f32 %v227, %v490
      %v492 = vpop.f32.mrf.mxu0
      %v493 = vadd.f32 %v227, %v492
      %494 = vmatmul.bf16.gmra.mxu0 %v285
      %v495 = vpop.f32.mrf.mxu0
      %v496 = vadd.f32 %v227, %v495
      %v497 = vpop.f32.mrf.mxu0
      %v498 = vadd.f32 %v227, %v497
      %499 = vmatmul.bf16.gmra.mxu0 %v287
      %v500 = vpop.f32.mrf.mxu0
      %v501 = vadd.f32 %v227, %v500
      %v502 = vpop.f32.mrf.mxu0
      %v503 = vadd.f32 %v227, %v502
      %504 = vmatmul.bf16.gmra.mxu0 %v289
      %v505 = vpop.f32.mrf.mxu0
      %v506 = vadd.f32 %v227, %v505
      %v507 = vpop.f32.mrf.mxu0
      %v508 = vadd.f32 %v227, %v507
      %509 = vmatmul.bf16.gmra.mxu0 %v291
      %v510 = vpop.f32.mrf.mxu0
      %v511 = vadd.f32 %v227, %v510
      %v512 = vpop.f32.mrf.mxu0
      %v513 = vadd.f32 %v227, %v512
      %514 = vmatmul.bf16.gmra.mxu0 %v293
      %v515 = vpop.f32.mrf.mxu0
      %v516 = vadd.f32 %v227, %v515
      %v517 = vpop.f32.mrf.mxu0
      %v518 = vadd.f32 %v227, %v517
      %519 = vdwg.mxu0
      %520 = vmatpush.bf16.msra.mxu0 %v437
      %521 = vmatpush.bf16.msra.mxu0 %v435
      %522 = vmatpush.bf16.msra.mxu0 %v433
      %523 = vmatpush.bf16.msra.mxu0 %v431
      %524 = vmatpush.bf16.msra.mxu0 %v429
      %525 = vmatpush.bf16.msra.mxu0 %v427
      %526 = vmatpush.bf16.msra.mxu0 %v425
      %527 = vmatpush.bf16.msra.mxu0 %v423
      %528 = vmatmul.bf16.gmra.mxu0 %v280
      %v529 = vpop.f32.mrf.mxu0
      %v530 = vadd.f32 %v481, %v529
      %v531 = vpop.f32.mrf.mxu0
      %v532 = vadd.f32 %v483, %v531
      %533 = vmatmul.bf16.gmra.mxu0 %v282
      %v534 = vpop.f32.mrf.mxu0
      %v535 = vadd.f32 %v486, %v534
      %v536 = vpop.f32.mrf.mxu0
      %v537 = vadd.f32 %v488, %v536
      %538 = vmatmul.bf16.gmra.mxu0 %v284
      %v539 = vpop.f32.mrf.mxu0
      %v540 = vadd.f32 %v491, %v539
      %v541 = vpop.f32.mrf.mxu0
      %v542 = vadd.f32 %v493, %v541
      %543 = vmatmul.bf16.gmra.mxu0 %v286
      %v544 = vpop.f32.mrf.mxu0
      %v545 = vadd.f32 %v496, %v544
      %v546 = vpop.f32.mrf.mxu0
      %v547 = vadd.f32 %v498, %v546
      %548 = vmatmul.bf16.gmra.mxu0 %v288
      %v549 = vpop.f32.mrf.mxu0
      %v550 = vadd.f32 %v501, %v549
      %v551 = vpop.f32.mrf.mxu0
      %v552 = vadd.f32 %v503, %v551
      %553 = vmatmul.bf16.gmra.mxu0 %v290
      %v554 = vpop.f32.mrf.mxu0
      %v555 = vadd.f32 %v506, %v554
      %v556 = vpop.f32.mrf.mxu0
      %v557 = vadd.f32 %v508, %v556
      %558 = vmatmul.bf16.gmra.mxu0 %v292
      %v559 = vpop.f32.mrf.mxu0
      %v560 = vadd.f32 %v511, %v559
      %v561 = vpop.f32.mrf.mxu0
      %v562 = vadd.f32 %v513, %v561
      %563 = vmatmul.bf16.gmra.mxu0 %v294
      %v564 = vpop.f32.mrf.mxu0
      %v565 = vadd.f32 %v516, %v564
      %v566 = vpop.f32.mrf.mxu0
      %v567 = vadd.f32 %v518, %v566
      %568 = vdwg.mxu0
      %569 = vmatpush.bf16.msra.mxu0 %v422
      %570 = vmatpush.bf16.msra.mxu0 %v420
      %571 = vmatpush.bf16.msra.mxu0 %v418
      %572 = vmatpush.bf16.msra.mxu0 %v416
      %573 = vmatpush.bf16.msra.mxu0 %v414
      %574 = vmatpush.bf16.msra.mxu0 %v412
      %575 = vmatpush.bf16.msra.mxu0 %v410
      %576 = vmatpush.bf16.msra.mxu0 %v408
      %577 = vmatmul.bf16.gmra.mxu0 %v279
      %v578 = vpop.f32.mrf.mxu0
      %v579 = vadd.f32 %v228, %v578
      %v580 = vpop.f32.mrf.mxu0
      %v581 = vadd.f32 %v228, %v580
      %582 = vmatmul.bf16.gmra.mxu0 %v281
      %v583 = vpop.f32.mrf.mxu0
      %v584 = vadd.f32 %v228, %v583
      %v585 = vpop.f32.mrf.mxu0
      %v586 = vadd.f32 %v228, %v585
      %587 = vmatmul.bf16.gmra.mxu0 %v283
      %v588 = vpop.f32.mrf.mxu0
      %v589 = vadd.f32 %v228, %v588
      %v590 = vpop.f32.mrf.mxu0
      %v591 = vadd.f32 %v228, %v590
      %592 = vmatmul.bf16.gmra.mxu0 %v285
      %v593 = vpop.f32.mrf.mxu0
      %v594 = vadd.f32 %v228, %v593
      %v595 = vpop.f32.mrf.mxu0
      %v596 = vadd.f32 %v228, %v595
      %597 = vmatmul.bf16.gmra.mxu0 %v287
      %v598 = vpop.f32.mrf.mxu0
      %v599 = vadd.f32 %v228, %v598
      %v600 = vpop.f32.mrf.mxu0
      %v601 = vadd.f32 %v228, %v600
      %602 = vmatmul.bf16.gmra.mxu0 %v289
      %v603 = vpop.f32.mrf.mxu0
      %v604 = vadd.f32 %v228, %v603
      %v605 = vpop.f32.mrf.mxu0
      %v606 = vadd.f32 %v228, %v605
      %607 = vmatmul.bf16.gmra.mxu0 %v291
      %v608 = vpop.f32.mrf.mxu0
      %v609 = vadd.f32 %v228, %v608
      %v610 = vpop.f32.mrf.mxu0
      %v611 = vadd.f32 %v228, %v610
      %612 = vmatmul.bf16.gmra.mxu0 %v293
      %v613 = vpop.f32.mrf.mxu0
      %v614 = vadd.f32 %v228, %v613
      %v615 = vpop.f32.mrf.mxu0
      %v616 = vadd.f32 %v228, %v615
      %617 = vdwg.mxu0
      %618 = vmatpush.bf16.msra.mxu0 %v438
      %619 = vmatpush.bf16.msra.mxu0 %v436
      %620 = vmatpush.bf16.msra.mxu0 %v434
      %621 = vmatpush.bf16.msra.mxu0 %v432
      %622 = vmatpush.bf16.msra.mxu0 %v430
      %623 = vmatpush.bf16.msra.mxu0 %v428
      %624 = vmatpush.bf16.msra.mxu0 %v426
      %625 = vmatpush.bf16.msra.mxu0 %v424
      %626 = vmatmul.bf16.gmra.mxu0 %v280
      %v627 = vpop.f32.mrf.mxu0
      %v628 = vadd.f32 %v579, %v627
      %v629 = vpop.f32.mrf.mxu0
      %v630 = vadd.f32 %v581, %v629
      %631 = vmatmul.bf16.gmra.mxu0 %v282
      %v632 = vpop.f32.mrf.mxu0
      %v633 = vadd.f32 %v584, %v632
      %v634 = vpop.f32.mrf.mxu0
      %v635 = vadd.f32 %v586, %v634
      %636 = vmatmul.bf16.gmra.mxu0 %v284
      %v637 = vpop.f32.mrf.mxu0
      %v638 = vadd.f32 %v589, %v637
      %v639 = vpop.f32.mrf.mxu0
      %v640 = vadd.f32 %v591, %v639
      %641 = vmatmul.bf16.gmra.mxu0 %v286
      %v642 = vpop.f32.mrf.mxu0
      %v643 = vadd.f32 %v594, %v642
      %v644 = vpop.f32.mrf.mxu0
      %v645 = vadd.f32 %v596, %v644
      %646 = vmatmul.bf16.gmra.mxu0 %v288
      %v647 = vpop.f32.mrf.mxu0
      %v648 = vadd.f32 %v599, %v647
      %v649 = vpop.f32.mrf.mxu0
      %v650 = vadd.f32 %v601, %v649
      %651 = vmatmul.bf16.gmra.mxu0 %v290
      %v652 = vpop.f32.mrf.mxu0
      %v653 = vadd.f32 %v604, %v652
      %v654 = vpop.f32.mrf.mxu0
      %v655 = vadd.f32 %v606, %v654
      %656 = vmatmul.bf16.gmra.mxu0 %v292
      %v657 = vpop.f32.mrf.mxu0
      %v658 = vadd.f32 %v609, %v657
      %v659 = vpop.f32.mrf.mxu0
      %v660 = vadd.f32 %v611, %v659
      %661 = vmatmul.bf16.gmra.mxu0 %v294
      %v662 = vpop.f32.mrf.mxu0
      %v663 = vadd.f32 %v614, %v662
      %v664 = vpop.f32.mrf.mxu0
      %v665 = vadd.f32 %v616, %v664
      %666 = vdwg.mxu0
      %v667 = vmul.f32 %v530, 0.5
      %v668 = vmul.f32 %v628, 0.5
      %v669 = vmul.f32 %v532, 0.5
      %v670 = vmul.f32 %v630, 0.5
      %v671 = vmul.f32 %v535, 0.5
      %v672 = vmul.f32 %v633, 0.5
      %v673 = vmul.f32 %v537, 0.5
      %v674 = vmul.f32 %v635, 0.5
      %v675 = vmul.f32 %v540, 0.5
      %v676 = vmul.f32 %v638, 0.5
      %v677 = vmul.f32 %v542, 0.5
      %v678 = vmul.f32 %v640, 0.5
      %v679 = vmul.f32 %v545, 0.5
      %v680 = vmul.f32 %v643, 0.5
      %v681 = vmul.f32 %v547, 0.5
      %v682 = vmul.f32 %v645, 0.5
      %v683 = vmul.f32 %v550, 0.5
      %v684 = vmul.f32 %v648, 0.5
      %v685 = vmul.f32 %v552, 0.5
      %v686 = vmul.f32 %v650, 0.5
      %v687 = vmul.f32 %v555, 0.5
      %v688 = vmul.f32 %v653, 0.5
      %v689 = vmul.f32 %v557, 0.5
      %v690 = vmul.f32 %v655, 0.5
      %v691 = vmul.f32 %v560, 0.5
      %v692 = vmul.f32 %v658, 0.5
      %v693 = vmul.f32 %v562, 0.5
      %v694 = vmul.f32 %v660, 0.5
      %v695 = vmul.f32 %v565, 0.5
      %v696 = vmul.f32 %v663, 0.5
      %v697 = vmul.f32 %v567, 0.5
      %v698 = vmul.f32 %v665, 0.5
      %v699 = vmul.f32 %v530, 0.70710677
      %v700 = vmul.f32 %v628, 0.70710677
      %v701 = vmul.f32 %v532, 0.70710677
      %v702 = vmul.f32 %v630, 0.70710677
      %v703 = vmul.f32 %v535, 0.70710677
      %v704 = vmul.f32 %v633, 0.70710677
      %v705 = vmul.f32 %v537, 0.70710677
      %v706 = vmul.f32 %v635, 0.70710677
      %v707 = vmul.f32 %v540, 0.70710677
      %v708 = vmul.f32 %v638, 0.70710677
      %v709 = vmul.f32 %v542, 0.70710677
      %v710 = vmul.f32 %v640, 0.70710677
      %v711 = vmul.f32 %v545, 0.70710677
      %v712 = vmul.f32 %v643, 0.70710677
      %v713 = vmul.f32 %v547, 0.70710677
      %v714 = vmul.f32 %v645, 0.70710677
      %v715 = vmul.f32 %v550, 0.70710677
      %v716 = vmul.f32 %v648, 0.70710677
      %v717 = vmul.f32 %v552, 0.70710677
      %v718 = vmul.f32 %v650, 0.70710677
      %v719 = vmul.f32 %v555, 0.70710677
      %v720 = vmul.f32 %v653, 0.70710677
      %v721 = vmul.f32 %v557, 0.70710677
      %v722 = vmul.f32 %v655, 0.70710677
      %v723 = vmul.f32 %v560, 0.70710677
      %v724 = vmul.f32 %v658, 0.70710677
      %v725 = vmul.f32 %v562, 0.70710677
      %v726 = vmul.f32 %v660, 0.70710677
      %v727 = vmul.f32 %v565, 0.70710677
      %v728 = vmul.f32 %v663, 0.70710677
      %v729 = vmul.f32 %v567, 0.70710677
      %v730 = vmul.f32 %v665, 0.70710677
      %v731 = vmul.f32 %v699, %v699
      %v732 = vmin.f32 16.0, %v731
      %v733 = vmul.f32 %v732, 2.1237322e-06
      %v734 = vadd.f32 %v733, 0.00028619796
      %v735 = vmul.f32 %v732, %v734
      %v736 = vadd.f32 %v735, 0.0036580483
      %v737 = vmul.f32 %v732, %v736
      %v738 = vadd.f32 %v737, 0.05243302
      %v739 = vmul.f32 %v732, %v738
      %v740 = vadd.f32 %v739, 0.18741608
      %v741 = vmul.f32 %v732, %v740
      %v742 = vadd.f32 %v741, 1.1283791
      %v743 = vmul.f32 %v699, %v742
      %v744 = vmul.f32 %v732, 3.8918573e-05
      %v745 = vadd.f32 %v744, 0.001143296
      %v746 = vmul.f32 %v732, %v745
      %v747 = vadd.f32 %v746, 0.014752088
      %v748 = vmul.f32 %v732, %v747
      %v749 = vadd.f32 %v748, 0.112945676
      %v750 = vmul.f32 %v732, %v749
      %v751 = vadd.f32 %v750, 0.4994258
      %v752 = vmul.f32 %v732, %v751
      %v753 = vadd.f32 %v752, 1.0
      %v754 = vrcp.pop %v753
      %v755 = vmul.f32 %v753, %v754
      %v756 = vsub.f32 1.0, %v755
      %v757 = vmul.f32 %v754, %v756
      %v758 = vadd.f32 %v754, %v757
      %vm759 = vweird.f32 %v753
      %vm760 = vweird.f32 %v754
      %vm761 = vmor %vm759, %vm760
      %v762 = vsel %vm761, %v754, %v758
      %v763 = vand.u32 2147483647, %v753
      %vm764 = vcmp.eq.f32.partialorder %v763, 8.507059e+37
      %v765 = vand.u32 %v753, 2147483648
      %v766 = vor.u32 1.1754944e-38, %v765
      %v767 = vsel %vm764, %v766, %v762
      %v768 = vmul.f32 %v743, %v767
      %v769 = vmin.f32 %v768, 1.0
      %v770 = vmax.f32 %v769, -1.0
      %v771 = vmul.f32 %v700, %v700
      %v772 = vmin.f32 16.0, %v771
      %v773 = vmul.f32 %v772, 2.1237322e-06
      %v774 = vadd.f32 %v773, 0.00028619796
      %v775 = vmul.f32 %v772, %v774
      %v776 = vadd.f32 %v775, 0.0036580483
      %v777 = vmul.f32 %v772, %v776
      %v778 = vadd.f32 %v777, 0.05243302
      %v779 = vmul.f32 %v772, %v778
      %v780 = vadd.f32 %v779, 0.18741608
      %v781 = vmul.f32 %v772, %v780
      %v782 = vadd.f32 %v781, 1.1283791
      %v783 = vmul.f32 %v700, %v782
      %v784 = vmul.f32 %v772, 3.8918573e-05
      %v785 = vadd.f32 %v784, 0.001143296
      %v786 = vmul.f32 %v772, %v785
      %v787 = vadd.f32 %v786, 0.014752088
      %v788 = vmul.f32 %v772, %v787
      %v789 = vadd.f32 %v788, 0.112945676
      %v790 = vmul.f32 %v772, %v789
      %v791 = vadd.f32 %v790, 0.4994258
      %v792 = vmul.f32 %v772, %v791
      %v793 = vadd.f32 %v792, 1.0
      %v794 = vrcp.pop %v793
      %v795 = vmul.f32 %v793, %v794
      %v796 = vsub.f32 1.0, %v795
      %v797 = vmul.f32 %v794, %v796
      %v798 = vadd.f32 %v794, %v797
      %vm799 = vweird.f32 %v793
      %vm800 = vweird.f32 %v794
      %vm801 = vmor %vm799, %vm800
      %v802 = vsel %vm801, %v794, %v798
      %v803 = vand.u32 2147483647, %v793
      %vm804 = vcmp.eq.f32.partialorder %v803, 8.507059e+37
      %v805 = vand.u32 %v793, 2147483648
      %v806 = vor.u32 1.1754944e-38, %v805
      %v807 = vsel %vm804, %v806, %v802
      %v808 = vmul.f32 %v783, %v807
      %v809 = vmin.f32 %v808, 1.0
      %v810 = vmax.f32 %v809, -1.0
      %v811 = vmul.f32 %v701, %v701
      %v812 = vmin.f32 16.0, %v811
      %v813 = vmul.f32 %v812, 2.1237322e-06
      %v814 = vadd.f32 %v813, 0.00028619796
      %v815 = vmul.f32 %v812, %v814
      %v816 = vadd.f32 %v815, 0.0036580483
      %v817 = vmul.f32 %v812, %v816
      %v818 = vadd.f32 %v817, 0.05243302
      %v819 = vmul.f32 %v812, %v818
      %v820 = vadd.f32 %v819, 0.18741608
      %v821 = vmul.f32 %v812, %v820
      %v822 = vadd.f32 %v821, 1.1283791
      %v823 = vmul.f32 %v701, %v822
      %v824 = vmul.f32 %v812, 3.8918573e-05
      %v825 = vadd.f32 %v824, 0.001143296
      %v826 = vmul.f32 %v812, %v825
      %v827 = vadd.f32 %v826, 0.014752088
      %v828 = vmul.f32 %v812, %v827
      %v829 = vadd.f32 %v828, 0.112945676
      %v830 = vmul.f32 %v812, %v829
      %v831 = vadd.f32 %v830, 0.4994258
      %v832 = vmul.f32 %v812, %v831
      %v833 = vadd.f32 %v832, 1.0
      %v834 = vrcp.pop %v833
      %v835 = vmul.f32 %v833, %v834
      %v836 = vsub.f32 1.0, %v835
      %v837 = vmul.f32 %v834, %v836
      %v838 = vadd.f32 %v834, %v837
      %vm839 = vweird.f32 %v833
      %vm840 = vweird.f32 %v834
      %vm841 = vmor %vm839, %vm840
      %v842 = vsel %vm841, %v834, %v838
      %v843 = vand.u32 2147483647, %v833
      %vm844 = vcmp.eq.f32.partialorder %v843, 8.507059e+37
      %v845 = vand.u32 %v833, 2147483648
      %v846 = vor.u32 1.1754944e-38, %v845
      %v847 = vsel %vm844, %v846, %v842
      %v848 = vmul.f32 %v823, %v847
      %v849 = vmin.f32 %v848, 1.0
      %v850 = vmax.f32 %v849, -1.0
      %v851 = vmul.f32 %v702, %v702
      %v852 = vmin.f32 16.0, %v851
      %v853 = vmul.f32 %v852, 2.1237322e-06
      %v854 = vadd.f32 %v853, 0.00028619796
      %v855 = vmul.f32 %v852, %v854
      %v856 = vadd.f32 %v855, 0.0036580483
      %v857 = vmul.f32 %v852, %v856
      %v858 = vadd.f32 %v857, 0.05243302
      %v859 = vmul.f32 %v852, %v858
      %v860 = vadd.f32 %v859, 0.18741608
      %v861 = vmul.f32 %v852, %v860
      %v862 = vadd.f32 %v861, 1.1283791
      %v863 = vmul.f32 %v702, %v862
      %v864 = vmul.f32 %v852, 3.8918573e-05
      %v865 = vadd.f32 %v864, 0.001143296
      %v866 = vmul.f32 %v852, %v865
      %v867 = vadd.f32 %v866, 0.014752088
      %v868 = vmul.f32 %v852, %v867
      %v869 = vadd.f32 %v868, 0.112945676
      %v870 = vmul.f32 %v852, %v869
      %v871 = vadd.f32 %v870, 0.4994258
      %v872 = vmul.f32 %v852, %v871
      %v873 = vadd.f32 %v872, 1.0
      %v874 = vrcp.pop %v873
      %v875 = vmul.f32 %v873, %v874
      %v876 = vsub.f32 1.0, %v875
      %v877 = vmul.f32 %v874, %v876
      %v878 = vadd.f32 %v874, %v877
      %vm879 = vweird.f32 %v873
      %vm880 = vweird.f32 %v874
      %vm881 = vmor %vm879, %vm880
      %v882 = vsel %vm881, %v874, %v878
      %v883 = vand.u32 2147483647, %v873
      %vm884 = vcmp.eq.f32.partialorder %v883, 8.507059e+37
      %v885 = vand.u32 %v873, 2147483648
      %v886 = vor.u32 1.1754944e-38, %v885
      %v887 = vsel %vm884, %v886, %v882
      %v888 = vmul.f32 %v863, %v887
      %v889 = vmin.f32 %v888, 1.0
      %v890 = vmax.f32 %v889, -1.0
      %v891 = vmul.f32 %v703, %v703
      %v892 = vmin.f32 16.0, %v891
      %v893 = vmul.f32 %v892, 2.1237322e-06
      %v894 = vadd.f32 %v893, 0.00028619796
      %v895 = vmul.f32 %v892, %v894
      %v896 = vadd.f32 %v895, 0.0036580483
      %v897 = vmul.f32 %v892, %v896
      %v898 = vadd.f32 %v897, 0.05243302
      %v899 = vmul.f32 %v892, %v898
      %v900 = vadd.f32 %v899, 0.18741608
      %v901 = vmul.f32 %v892, %v900
      %v902 = vadd.f32 %v901, 1.1283791
      %v903 = vmul.f32 %v703, %v902
      %v904 = vmul.f32 %v892, 3.8918573e-05
      %v905 = vadd.f32 %v904, 0.001143296
      %v906 = vmul.f32 %v892, %v905
      %v907 = vadd.f32 %v906, 0.014752088
      %v908 = vmul.f32 %v892, %v907
      %v909 = vadd.f32 %v908, 0.112945676
      %v910 = vmul.f32 %v892, %v909
      %v911 = vadd.f32 %v910, 0.4994258
      %v912 = vmul.f32 %v892, %v911
      %v913 = vadd.f32 %v912, 1.0
      %v914 = vrcp.pop %v913
      %v915 = vmul.f32 %v913, %v914
      %v916 = vsub.f32 1.0, %v915
      %v917 = vmul.f32 %v914, %v916
      %v918 = vadd.f32 %v914, %v917
      %vm919 = vweird.f32 %v913
      %vm920 = vweird.f32 %v914
      %vm921 = vmor %vm919, %vm920
      %v922 = vsel %vm921, %v914, %v918
      %v923 = vand.u32 2147483647, %v913
      %vm924 = vcmp.eq.f32.partialorder %v923, 8.507059e+37
      %v925 = vand.u32 %v913, 2147483648
      %v926 = vor.u32 1.1754944e-38, %v925
      %v927 = vsel %vm924, %v926, %v922
      %v928 = vmul.f32 %v903, %v927
      %v929 = vmin.f32 %v928, 1.0
      %v930 = vmax.f32 %v929, -1.0
      %v931 = vmul.f32 %v704, %v704
      %v932 = vmin.f32 16.0, %v931
      %v933 = vmul.f32 %v932, 2.1237322e-06
      %v934 = vadd.f32 %v933, 0.00028619796
      %v935 = vmul.f32 %v932, %v934
      %v936 = vadd.f32 %v935, 0.0036580483
      %v937 = vmul.f32 %v932, %v936
      %v938 = vadd.f32 %v937, 0.05243302
      %v939 = vmul.f32 %v932, %v938
      %v940 = vadd.f32 %v939, 0.18741608
      %v941 = vmul.f32 %v932, %v940
      %v942 = vadd.f32 %v941, 1.1283791
      %v943 = vmul.f32 %v704, %v942
      %v944 = vmul.f32 %v932, 3.8918573e-05
      %v945 = vadd.f32 %v944, 0.001143296
      %v946 = vmul.f32 %v932, %v945
      %v947 = vadd.f32 %v946, 0.014752088
      %v948 = vmul.f32 %v932, %v947
      %v949 = vadd.f32 %v948, 0.112945676
      %v950 = vmul.f32 %v932, %v949
      %v951 = vadd.f32 %v950, 0.4994258
      %v952 = vmul.f32 %v932, %v951
      %v953 = vadd.f32 %v952, 1.0
      %v954 = vrcp.pop %v953
      %v955 = vmul.f32 %v953, %v954
      %v956 = vsub.f32 1.0, %v955
      %v957 = vmul.f32 %v954, %v956
      %v958 = vadd.f32 %v954, %v957
      %vm959 = vweird.f32 %v953
      %vm960 = vweird.f32 %v954
      %vm961 = vmor %vm959, %vm960
      %v962 = vsel %vm961, %v954, %v958
      %v963 = vand.u32 2147483647, %v953
      %vm964 = vcmp.eq.f32.partialorder %v963, 8.507059e+37
      %v965 = vand.u32 %v953, 2147483648
      %v966 = vor.u32 1.1754944e-38, %v965
      %v967 = vsel %vm964, %v966, %v962
      %v968 = vmul.f32 %v943, %v967
      %v969 = vmin.f32 %v968, 1.0
      %v970 = vmax.f32 %v969, -1.0
      %v971 = vmul.f32 %v705, %v705
      %v972 = vmin.f32 16.0, %v971
      %v973 = vmul.f32 %v972, 2.1237322e-06
      %v974 = vadd.f32 %v973, 0.00028619796
      %v975 = vmul.f32 %v972, %v974
      %v976 = vadd.f32 %v975, 0.0036580483
      %v977 = vmul.f32 %v972, %v976
      %v978 = vadd.f32 %v977, 0.05243302
      %v979 = vmul.f32 %v972, %v978
      %v980 = vadd.f32 %v979, 0.18741608
      %v981 = vmul.f32 %v972, %v980
      %v982 = vadd.f32 %v981, 1.1283791
      %v983 = vmul.f32 %v705, %v982
      %v984 = vmul.f32 %v972, 3.8918573e-05
      %v985 = vadd.f32 %v984, 0.001143296
      %v986 = vmul.f32 %v972, %v985
      %v987 = vadd.f32 %v986, 0.014752088
      %v988 = vmul.f32 %v972, %v987
      %v989 = vadd.f32 %v988, 0.112945676
      %v990 = vmul.f32 %v972, %v989
      %v991 = vadd.f32 %v990, 0.4994258
      %v992 = vmul.f32 %v972, %v991
      %v993 = vadd.f32 %v992, 1.0
      %v994 = vrcp.pop %v993
      %v995 = vmul.f32 %v993, %v994
      %v996 = vsub.f32 1.0, %v995
      %v997 = vmul.f32 %v994, %v996
      %v998 = vadd.f32 %v994, %v997
      %vm999 = vweird.f32 %v993
      %vm1000 = vweird.f32 %v994
      %vm1001 = vmor %vm999, %vm1000
      %v1002 = vsel %vm1001, %v994, %v998
      %v1003 = vand.u32 2147483647, %v993
      %vm1004 = vcmp.eq.f32.partialorder %v1003, 8.507059e+37
      %v1005 = vand.u32 %v993, 2147483648
      %v1006 = vor.u32 1.1754944e-38, %v1005
      %v1007 = vsel %vm1004, %v1006, %v1002
      %v1008 = vmul.f32 %v983, %v1007
      %v1009 = vmin.f32 %v1008, 1.0
      %v1010 = vmax.f32 %v1009, -1.0
      %v1011 = vmul.f32 %v706, %v706
      %v1012 = vmin.f32 16.0, %v1011
      %v1013 = vmul.f32 %v1012, 2.1237322e-06
      %v1014 = vadd.f32 %v1013, 0.00028619796
      %v1015 = vmul.f32 %v1012, %v1014
      %v1016 = vadd.f32 %v1015, 0.0036580483
      %v1017 = vmul.f32 %v1012, %v1016
      %v1018 = vadd.f32 %v1017, 0.05243302
      %v1019 = vmul.f32 %v1012, %v1018
      %v1020 = vadd.f32 %v1019, 0.18741608
      %v1021 = vmul.f32 %v1012, %v1020
      %v1022 = vadd.f32 %v1021, 1.1283791
      %v1023 = vmul.f32 %v706, %v1022
      %v1024 = vmul.f32 %v1012, 3.8918573e-05
      %v1025 = vadd.f32 %v1024, 0.001143296
      %v1026 = vmul.f32 %v1012, %v1025
      %v1027 = vadd.f32 %v1026, 0.014752088
      %v1028 = vmul.f32 %v1012, %v1027
      %v1029 = vadd.f32 %v1028, 0.112945676
      %v1030 = vmul.f32 %v1012, %v1029
      %v1031 = vadd.f32 %v1030, 0.4994258
      %v1032 = vmul.f32 %v1012, %v1031
      %v1033 = vadd.f32 %v1032, 1.0
      %v1034 = vrcp.pop %v1033
      %v1035 = vmul.f32 %v1033, %v1034
      %v1036 = vsub.f32 1.0, %v1035
      %v1037 = vmul.f32 %v1034, %v1036
      %v1038 = vadd.f32 %v1034, %v1037
      %vm1039 = vweird.f32 %v1033
      %vm1040 = vweird.f32 %v1034
      %vm1041 = vmor %vm1039, %vm1040
      %v1042 = vsel %vm1041, %v1034, %v1038
      %v1043 = vand.u32 2147483647, %v1033
      %vm1044 = vcmp.eq.f32.partialorder %v1043, 8.507059e+37
      %v1045 = vand.u32 %v1033, 2147483648
      %v1046 = vor.u32 1.1754944e-38, %v1045
      %v1047 = vsel %vm1044, %v1046, %v1042
      %v1048 = vmul.f32 %v1023, %v1047
      %v1049 = vmin.f32 %v1048, 1.0
      %v1050 = vmax.f32 %v1049, -1.0
      %v1051 = vmul.f32 %v707, %v707
      %v1052 = vmin.f32 16.0, %v1051
      %v1053 = vmul.f32 %v1052, 2.1237322e-06
      %v1054 = vadd.f32 %v1053, 0.00028619796
      %v1055 = vmul.f32 %v1052, %v1054
      %v1056 = vadd.f32 %v1055, 0.0036580483
      %v1057 = vmul.f32 %v1052, %v1056
      %v1058 = vadd.f32 %v1057, 0.05243302
      %v1059 = vmul.f32 %v1052, %v1058
      %v1060 = vadd.f32 %v1059, 0.18741608
      %v1061 = vmul.f32 %v1052, %v1060
      %v1062 = vadd.f32 %v1061, 1.1283791
      %v1063 = vmul.f32 %v707, %v1062
      %v1064 = vmul.f32 %v1052, 3.8918573e-05
      %v1065 = vadd.f32 %v1064, 0.001143296
      %v1066 = vmul.f32 %v1052, %v1065
      %v1067 = vadd.f32 %v1066, 0.014752088
      %v1068 = vmul.f32 %v1052, %v1067
      %v1069 = vadd.f32 %v1068, 0.112945676
      %v1070 = vmul.f32 %v1052, %v1069
      %v1071 = vadd.f32 %v1070, 0.4994258
      %v1072 = vmul.f32 %v1052, %v1071
      %v1073 = vadd.f32 %v1072, 1.0
      %v1074 = vrcp.pop %v1073
      %v1075 = vmul.f32 %v1073, %v1074
      %v1076 = vsub.f32 1.0, %v1075
      %v1077 = vmul.f32 %v1074, %v1076
      %v1078 = vadd.f32 %v1074, %v1077
      %vm1079 = vweird.f32 %v1073
      %vm1080 = vweird.f32 %v1074
      %vm1081 = vmor %vm1079, %vm1080
      %v1082 = vsel %vm1081, %v1074, %v1078
      %v1083 = vand.u32 2147483647, %v1073
      %vm1084 = vcmp.eq.f32.partialorder %v1083, 8.507059e+37
      %v1085 = vand.u32 %v1073, 2147483648
      %v1086 = vor.u32 1.1754944e-38, %v1085
      %v1087 = vsel %vm1084, %v1086, %v1082
      %v1088 = vmul.f32 %v1063, %v1087
      %v1089 = vmin.f32 %v1088, 1.0
      %v1090 = vmax.f32 %v1089, -1.0
      %v1091 = vmul.f32 %v708, %v708
      %v1092 = vmin.f32 16.0, %v1091
      %v1093 = vmul.f32 %v1092, 2.1237322e-06
      %v1094 = vadd.f32 %v1093, 0.00028619796
      %v1095 = vmul.f32 %v1092, %v1094
      %v1096 = vadd.f32 %v1095, 0.0036580483
      %v1097 = vmul.f32 %v1092, %v1096
      %v1098 = vadd.f32 %v1097, 0.05243302
      %v1099 = vmul.f32 %v1092, %v1098
      %v1100 = vadd.f32 %v1099, 0.18741608
      %v1101 = vmul.f32 %v1092, %v1100
      %v1102 = vadd.f32 %v1101, 1.1283791
      %v1103 = vmul.f32 %v708, %v1102
      %v1104 = vmul.f32 %v1092, 3.8918573e-05
      %v1105 = vadd.f32 %v1104, 0.001143296
      %v1106 = vmul.f32 %v1092, %v1105
      %v1107 = vadd.f32 %v1106, 0.014752088
      %v1108 = vmul.f32 %v1092, %v1107
      %v1109 = vadd.f32 %v1108, 0.112945676
      %v1110 = vmul.f32 %v1092, %v1109
      %v1111 = vadd.f32 %v1110, 0.4994258
      %v1112 = vmul.f32 %v1092, %v1111
      %v1113 = vadd.f32 %v1112, 1.0
      %v1114 = vrcp.pop %v1113
      %v1115 = vmul.f32 %v1113, %v1114
      %v1116 = vsub.f32 1.0, %v1115
      %v1117 = vmul.f32 %v1114, %v1116
      %v1118 = vadd.f32 %v1114, %v1117
      %vm1119 = vweird.f32 %v1113
      %vm1120 = vweird.f32 %v1114
      %vm1121 = vmor %vm1119, %vm1120
      %v1122 = vsel %vm1121, %v1114, %v1118
      %v1123 = vand.u32 2147483647, %v1113
      %vm1124 = vcmp.eq.f32.partialorder %v1123, 8.507059e+37
      %v1125 = vand.u32 %v1113, 2147483648
      %v1126 = vor.u32 1.1754944e-38, %v1125
      %v1127 = vsel %vm1124, %v1126, %v1122
      %v1128 = vmul.f32 %v1103, %v1127
      %v1129 = vmin.f32 %v1128, 1.0
      %v1130 = vmax.f32 %v1129, -1.0
      %v1131 = vmul.f32 %v709, %v709
      %v1132 = vmin.f32 16.0, %v1131
      %v1133 = vmul.f32 %v1132, 2.1237322e-06
      %v1134 = vadd.f32 %v1133, 0.00028619796
      %v1135 = vmul.f32 %v1132, %v1134
      %v1136 = vadd.f32 %v1135, 0.0036580483
      %v1137 = vmul.f32 %v1132, %v1136
      %v1138 = vadd.f32 %v1137, 0.05243302
      %v1139 = vmul.f32 %v1132, %v1138
      %v1140 = vadd.f32 %v1139, 0.18741608
      %v1141 = vmul.f32 %v1132, %v1140
      %v1142 = vadd.f32 %v1141, 1.1283791
      %v1143 = vmul.f32 %v709, %v1142
      %v1144 = vmul.f32 %v1132, 3.8918573e-05
      %v1145 = vadd.f32 %v1144, 0.001143296
      %v1146 = vmul.f32 %v1132, %v1145
      %v1147 = vadd.f32 %v1146, 0.014752088
      %v1148 = vmul.f32 %v1132, %v1147
      %v1149 = vadd.f32 %v1148, 0.112945676
      %v1150 = vmul.f32 %v1132, %v1149
      %v1151 = vadd.f32 %v1150, 0.4994258
      %v1152 = vmul.f32 %v1132, %v1151
      %v1153 = vadd.f32 %v1152, 1.0
      %v1154 = vrcp.pop %v1153
      %v1155 = vmul.f32 %v1153, %v1154
      %v1156 = vsub.f32 1.0, %v1155
      %v1157 = vmul.f32 %v1154, %v1156
      %v1158 = vadd.f32 %v1154, %v1157
      %vm1159 = vweird.f32 %v1153
      %vm1160 = vweird.f32 %v1154
      %vm1161 = vmor %vm1159, %vm1160
      %v1162 = vsel %vm1161, %v1154, %v1158
      %v1163 = vand.u32 2147483647, %v1153
      %vm1164 = vcmp.eq.f32.partialorder %v1163, 8.507059e+37
      %v1165 = vand.u32 %v1153, 2147483648
      %v1166 = vor.u32 1.1754944e-38, %v1165
      %v1167 = vsel %vm1164, %v1166, %v1162
      %v1168 = vmul.f32 %v1143, %v1167
      %v1169 = vmin.f32 %v1168, 1.0
      %v1170 = vmax.f32 %v1169, -1.0
      %v1171 = vmul.f32 %v710, %v710
      %v1172 = vmin.f32 16.0, %v1171
      %v1173 = vmul.f32 %v1172, 2.1237322e-06
      %v1174 = vadd.f32 %v1173, 0.00028619796
      %v1175 = vmul.f32 %v1172, %v1174
      %v1176 = vadd.f32 %v1175, 0.0036580483
      %v1177 = vmul.f32 %v1172, %v1176
      %v1178 = vadd.f32 %v1177, 0.05243302
      %v1179 = vmul.f32 %v1172, %v1178
      %v1180 = vadd.f32 %v1179, 0.18741608
      %v1181 = vmul.f32 %v1172, %v1180
      %v1182 = vadd.f32 %v1181, 1.1283791
      %v1183 = vmul.f32 %v710, %v1182
      %v1184 = vmul.f32 %v1172, 3.8918573e-05
      %v1185 = vadd.f32 %v1184, 0.001143296
      %v1186 = vmul.f32 %v1172, %v1185
      %v1187 = vadd.f32 %v1186, 0.014752088
      %v1188 = vmul.f32 %v1172, %v1187
      %v1189 = vadd.f32 %v1188, 0.112945676
      %v1190 = vmul.f32 %v1172, %v1189
      %v1191 = vadd.f32 %v1190, 0.4994258
      %v1192 = vmul.f32 %v1172, %v1191
      %v1193 = vadd.f32 %v1192, 1.0
      %v1194 = vrcp.pop %v1193
      %v1195 = vmul.f32 %v1193, %v1194
      %v1196 = vsub.f32 1.0, %v1195
      %v1197 = vmul.f32 %v1194, %v1196
      %v1198 = vadd.f32 %v1194, %v1197
      %vm1199 = vweird.f32 %v1193
      %vm1200 = vweird.f32 %v1194
      %vm1201 = vmor %vm1199, %vm1200
      %v1202 = vsel %vm1201, %v1194, %v1198
      %v1203 = vand.u32 2147483647, %v1193
      %vm1204 = vcmp.eq.f32.partialorder %v1203, 8.507059e+37
      %v1205 = vand.u32 %v1193, 2147483648
      %v1206 = vor.u32 1.1754944e-38, %v1205
      %v1207 = vsel %vm1204, %v1206, %v1202
      %v1208 = vmul.f32 %v1183, %v1207
      %v1209 = vmin.f32 %v1208, 1.0
      %v1210 = vmax.f32 %v1209, -1.0
      %v1211 = vmul.f32 %v711, %v711
      %v1212 = vmin.f32 16.0, %v1211
      %v1213 = vmul.f32 %v1212, 2.1237322e-06
      %v1214 = vadd.f32 %v1213, 0.00028619796
      %v1215 = vmul.f32 %v1212, %v1214
      %v1216 = vadd.f32 %v1215, 0.0036580483
      %v1217 = vmul.f32 %v1212, %v1216
      %v1218 = vadd.f32 %v1217, 0.05243302
      %v1219 = vmul.f32 %v1212, %v1218
      %v1220 = vadd.f32 %v1219, 0.18741608
      %v1221 = vmul.f32 %v1212, %v1220
      %v1222 = vadd.f32 %v1221, 1.1283791
      %v1223 = vmul.f32 %v711, %v1222
      %v1224 = vmul.f32 %v1212, 3.8918573e-05
      %v1225 = vadd.f32 %v1224, 0.001143296
      %v1226 = vmul.f32 %v1212, %v1225
      %v1227 = vadd.f32 %v1226, 0.014752088
      %v1228 = vmul.f32 %v1212, %v1227
      %v1229 = vadd.f32 %v1228, 0.112945676
      %v1230 = vmul.f32 %v1212, %v1229
      %v1231 = vadd.f32 %v1230, 0.4994258
      %v1232 = vmul.f32 %v1212, %v1231
      %v1233 = vadd.f32 %v1232, 1.0
      %v1234 = vrcp.pop %v1233
      %v1235 = vmul.f32 %v1233, %v1234
      %v1236 = vsub.f32 1.0, %v1235
      %v1237 = vmul.f32 %v1234, %v1236
      %v1238 = vadd.f32 %v1234, %v1237
      %vm1239 = vweird.f32 %v1233
      %vm1240 = vweird.f32 %v1234
      %vm1241 = vmor %vm1239, %vm1240
      %v1242 = vsel %vm1241, %v1234, %v1238
      %v1243 = vand.u32 2147483647, %v1233
      %vm1244 = vcmp.eq.f32.partialorder %v1243, 8.507059e+37
      %v1245 = vand.u32 %v1233, 2147483648
      %v1246 = vor.u32 1.1754944e-38, %v1245
      %v1247 = vsel %vm1244, %v1246, %v1242
      %v1248 = vmul.f32 %v1223, %v1247
      %v1249 = vmin.f32 %v1248, 1.0
      %v1250 = vmax.f32 %v1249, -1.0
      %v1251 = vmul.f32 %v712, %v712
      %v1252 = vmin.f32 16.0, %v1251
      %v1253 = vmul.f32 %v1252, 2.1237322e-06
      %v1254 = vadd.f32 %v1253, 0.00028619796
      %v1255 = vmul.f32 %v1252, %v1254
      %v1256 = vadd.f32 %v1255, 0.0036580483
      %v1257 = vmul.f32 %v1252, %v1256
      %v1258 = vadd.f32 %v1257, 0.05243302
      %v1259 = vmul.f32 %v1252, %v1258
      %v1260 = vadd.f32 %v1259, 0.18741608
      %v1261 = vmul.f32 %v1252, %v1260
      %v1262 = vadd.f32 %v1261, 1.1283791
      %v1263 = vmul.f32 %v712, %v1262
      %v1264 = vmul.f32 %v1252, 3.8918573e-05
      %v1265 = vadd.f32 %v1264, 0.001143296
      %v1266 = vmul.f32 %v1252, %v1265
      %v1267 = vadd.f32 %v1266, 0.014752088
      %v1268 = vmul.f32 %v1252, %v1267
      %v1269 = vadd.f32 %v1268, 0.112945676
      %v1270 = vmul.f32 %v1252, %v1269
      %v1271 = vadd.f32 %v1270, 0.4994258
      %v1272 = vmul.f32 %v1252, %v1271
      %v1273 = vadd.f32 %v1272, 1.0
      %v1274 = vrcp.pop %v1273
      %v1275 = vmul.f32 %v1273, %v1274
      %v1276 = vsub.f32 1.0, %v1275
      %v1277 = vmul.f32 %v1274, %v1276
      %v1278 = vadd.f32 %v1274, %v1277
      %vm1279 = vweird.f32 %v1273
      %vm1280 = vweird.f32 %v1274
      %vm1281 = vmor %vm1279, %vm1280
      %v1282 = vsel %vm1281, %v1274, %v1278
      %v1283 = vand.u32 2147483647, %v1273
      %vm1284 = vcmp.eq.f32.partialorder %v1283, 8.507059e+37
      %v1285 = vand.u32 %v1273, 2147483648
      %v1286 = vor.u32 1.1754944e-38, %v1285
      %v1287 = vsel %vm1284, %v1286, %v1282
      %v1288 = vmul.f32 %v1263, %v1287
      %v1289 = vmin.f32 %v1288, 1.0
      %v1290 = vmax.f32 %v1289, -1.0
      %v1291 = vmul.f32 %v713, %v713
      %v1292 = vmin.f32 16.0, %v1291
      %v1293 = vmul.f32 %v1292, 2.1237322e-06
      %v1294 = vadd.f32 %v1293, 0.00028619796
      %v1295 = vmul.f32 %v1292, %v1294
      %v1296 = vadd.f32 %v1295, 0.0036580483
      %v1297 = vmul.f32 %v1292, %v1296
      %v1298 = vadd.f32 %v1297, 0.05243302
      %v1299 = vmul.f32 %v1292, %v1298
      %v1300 = vadd.f32 %v1299, 0.18741608
      %v1301 = vmul.f32 %v1292, %v1300
      %v1302 = vadd.f32 %v1301, 1.1283791
      %v1303 = vmul.f32 %v713, %v1302
      %v1304 = vmul.f32 %v1292, 3.8918573e-05
      %v1305 = vadd.f32 %v1304, 0.001143296
      %v1306 = vmul.f32 %v1292, %v1305
      %v1307 = vadd.f32 %v1306, 0.014752088
      %v1308 = vmul.f32 %v1292, %v1307
      %v1309 = vadd.f32 %v1308, 0.112945676
      %v1310 = vmul.f32 %v1292, %v1309
      %v1311 = vadd.f32 %v1310, 0.4994258
      %v1312 = vmul.f32 %v1292, %v1311
      %v1313 = vadd.f32 %v1312, 1.0
      %v1314 = vrcp.pop %v1313
      %v1315 = vmul.f32 %v1313, %v1314
      %v1316 = vsub.f32 1.0, %v1315
      %v1317 = vmul.f32 %v1314, %v1316
      %v1318 = vadd.f32 %v1314, %v1317
      %vm1319 = vweird.f32 %v1313
      %vm1320 = vweird.f32 %v1314
      %vm1321 = vmor %vm1319, %vm1320
      %v1322 = vsel %vm1321, %v1314, %v1318
      %v1323 = vand.u32 2147483647, %v1313
      %vm1324 = vcmp.eq.f32.partialorder %v1323, 8.507059e+37
      %v1325 = vand.u32 %v1313, 2147483648
      %v1326 = vor.u32 1.1754944e-38, %v1325
      %v1327 = vsel %vm1324, %v1326, %v1322
      %v1328 = vmul.f32 %v1303, %v1327
      %v1329 = vmin.f32 %v1328, 1.0
      %v1330 = vmax.f32 %v1329, -1.0
      %v1331 = vmul.f32 %v714, %v714
      %v1332 = vmin.f32 16.0, %v1331
      %v1333 = vmul.f32 %v1332, 2.1237322e-06
      %v1334 = vadd.f32 %v1333, 0.00028619796
      %v1335 = vmul.f32 %v1332, %v1334
      %v1336 = vadd.f32 %v1335, 0.0036580483
      %v1337 = vmul.f32 %v1332, %v1336
      %v1338 = vadd.f32 %v1337, 0.05243302
      %v1339 = vmul.f32 %v1332, %v1338
      %v1340 = vadd.f32 %v1339, 0.18741608
      %v1341 = vmul.f32 %v1332, %v1340
      %v1342 = vadd.f32 %v1341, 1.1283791
      %v1343 = vmul.f32 %v714, %v1342
      %v1344 = vmul.f32 %v1332, 3.8918573e-05
      %v1345 = vadd.f32 %v1344, 0.001143296
      %v1346 = vmul.f32 %v1332, %v1345
      %v1347 = vadd.f32 %v1346, 0.014752088
      %v1348 = vmul.f32 %v1332, %v1347
      %v1349 = vadd.f32 %v1348, 0.112945676
      %v1350 = vmul.f32 %v1332, %v1349
      %v1351 = vadd.f32 %v1350, 0.4994258
      %v1352 = vmul.f32 %v1332, %v1351
      %v1353 = vadd.f32 %v1352, 1.0
      %v1354 = vrcp.pop %v1353
      %v1355 = vmul.f32 %v1353, %v1354
      %v1356 = vsub.f32 1.0, %v1355
      %v1357 = vmul.f32 %v1354, %v1356
      %v1358 = vadd.f32 %v1354, %v1357
      %vm1359 = vweird.f32 %v1353
      %vm1360 = vweird.f32 %v1354
      %vm1361 = vmor %vm1359, %vm1360
      %v1362 = vsel %vm1361, %v1354, %v1358
      %v1363 = vand.u32 2147483647, %v1353
      %vm1364 = vcmp.eq.f32.partialorder %v1363, 8.507059e+37
      %v1365 = vand.u32 %v1353, 2147483648
      %v1366 = vor.u32 1.1754944e-38, %v1365
      %v1367 = vsel %vm1364, %v1366, %v1362
      %v1368 = vmul.f32 %v1343, %v1367
      %v1369 = vmin.f32 %v1368, 1.0
      %v1370 = vmax.f32 %v1369, -1.0
      %v1371 = vmul.f32 %v715, %v715
      %v1372 = vmin.f32 16.0, %v1371
      %v1373 = vmul.f32 %v1372, 2.1237322e-06
      %v1374 = vadd.f32 %v1373, 0.00028619796
      %v1375 = vmul.f32 %v1372, %v1374
      %v1376 = vadd.f32 %v1375, 0.0036580483
      %v1377 = vmul.f32 %v1372, %v1376
      %v1378 = vadd.f32 %v1377, 0.05243302
      %v1379 = vmul.f32 %v1372, %v1378
      %v1380 = vadd.f32 %v1379, 0.18741608
      %v1381 = vmul.f32 %v1372, %v1380
      %v1382 = vadd.f32 %v1381, 1.1283791
      %v1383 = vmul.f32 %v715, %v1382
      %v1384 = vmul.f32 %v1372, 3.8918573e-05
      %v1385 = vadd.f32 %v1384, 0.001143296
      %v1386 = vmul.f32 %v1372, %v1385
      %v1387 = vadd.f32 %v1386, 0.014752088
      %v1388 = vmul.f32 %v1372, %v1387
      %v1389 = vadd.f32 %v1388, 0.112945676
      %v1390 = vmul.f32 %v1372, %v1389
      %v1391 = vadd.f32 %v1390, 0.4994258
      %v1392 = vmul.f32 %v1372, %v1391
      %v1393 = vadd.f32 %v1392, 1.0
      %v1394 = vrcp.pop %v1393
      %v1395 = vmul.f32 %v1393, %v1394
      %v1396 = vsub.f32 1.0, %v1395
      %v1397 = vmul.f32 %v1394, %v1396
      %v1398 = vadd.f32 %v1394, %v1397
      %vm1399 = vweird.f32 %v1393
      %vm1400 = vweird.f32 %v1394
      %vm1401 = vmor %vm1399, %vm1400
      %v1402 = vsel %vm1401, %v1394, %v1398
      %v1403 = vand.u32 2147483647, %v1393
      %vm1404 = vcmp.eq.f32.partialorder %v1403, 8.507059e+37
      %v1405 = vand.u32 %v1393, 2147483648
      %v1406 = vor.u32 1.1754944e-38, %v1405
      %v1407 = vsel %vm1404, %v1406, %v1402
      %v1408 = vmul.f32 %v1383, %v1407
      %v1409 = vmin.f32 %v1408, 1.0
      %v1410 = vmax.f32 %v1409, -1.0
      %v1411 = vmul.f32 %v716, %v716
      %v1412 = vmin.f32 16.0, %v1411
      %v1413 = vmul.f32 %v1412, 2.1237322e-06
      %v1414 = vadd.f32 %v1413, 0.00028619796
      %v1415 = vmul.f32 %v1412, %v1414
      %v1416 = vadd.f32 %v1415, 0.0036580483
      %v1417 = vmul.f32 %v1412, %v1416
      %v1418 = vadd.f32 %v1417, 0.05243302
      %v1419 = vmul.f32 %v1412, %v1418
      %v1420 = vadd.f32 %v1419, 0.18741608
      %v1421 = vmul.f32 %v1412, %v1420
      %v1422 = vadd.f32 %v1421, 1.1283791
      %v1423 = vmul.f32 %v716, %v1422
      %v1424 = vmul.f32 %v1412, 3.8918573e-05
      %v1425 = vadd.f32 %v1424, 0.001143296
      %v1426 = vmul.f32 %v1412, %v1425
      %v1427 = vadd.f32 %v1426, 0.014752088
      %v1428 = vmul.f32 %v1412, %v1427
      %v1429 = vadd.f32 %v1428, 0.112945676
      %v1430 = vmul.f32 %v1412, %v1429
      %v1431 = vadd.f32 %v1430, 0.4994258
      %v1432 = vmul.f32 %v1412, %v1431
      %v1433 = vadd.f32 %v1432, 1.0
      %v1434 = vrcp.pop %v1433
      %v1435 = vmul.f32 %v1433, %v1434
      %v1436 = vsub.f32 1.0, %v1435
      %v1437 = vmul.f32 %v1434, %v1436
      %v1438 = vadd.f32 %v1434, %v1437
      %vm1439 = vweird.f32 %v1433
      %vm1440 = vweird.f32 %v1434
      %vm1441 = vmor %vm1439, %vm1440
      %v1442 = vsel %vm1441, %v1434, %v1438
      %v1443 = vand.u32 2147483647, %v1433
      %vm1444 = vcmp.eq.f32.partialorder %v1443, 8.507059e+37
      %v1445 = vand.u32 %v1433, 2147483648
      %v1446 = vor.u32 1.1754944e-38, %v1445
      %v1447 = vsel %vm1444, %v1446, %v1442
      %v1448 = vmul.f32 %v1423, %v1447
      %v1449 = vmin.f32 %v1448, 1.0
      %v1450 = vmax.f32 %v1449, -1.0
      %v1451 = vmul.f32 %v717, %v717
      %v1452 = vmin.f32 16.0, %v1451
      %v1453 = vmul.f32 %v1452, 2.1237322e-06
      %v1454 = vadd.f32 %v1453, 0.00028619796
      %v1455 = vmul.f32 %v1452, %v1454
      %v1456 = vadd.f32 %v1455, 0.0036580483
      %v1457 = vmul.f32 %v1452, %v1456
      %v1458 = vadd.f32 %v1457, 0.05243302
      %v1459 = vmul.f32 %v1452, %v1458
      %v1460 = vadd.f32 %v1459, 0.18741608
      %v1461 = vmul.f32 %v1452, %v1460
      %v1462 = vadd.f32 %v1461, 1.1283791
      %v1463 = vmul.f32 %v717, %v1462
      %v1464 = vmul.f32 %v1452, 3.8918573e-05
      %v1465 = vadd.f32 %v1464, 0.001143296
      %v1466 = vmul.f32 %v1452, %v1465
      %v1467 = vadd.f32 %v1466, 0.014752088
      %v1468 = vmul.f32 %v1452, %v1467
      %v1469 = vadd.f32 %v1468, 0.112945676
      %v1470 = vmul.f32 %v1452, %v1469
      %v1471 = vadd.f32 %v1470, 0.4994258
      %v1472 = vmul.f32 %v1452, %v1471
      %v1473 = vadd.f32 %v1472, 1.0
      %v1474 = vrcp.pop %v1473
      %v1475 = vmul.f32 %v1473, %v1474
      %v1476 = vsub.f32 1.0, %v1475
      %v1477 = vmul.f32 %v1474, %v1476
      %v1478 = vadd.f32 %v1474, %v1477
      %vm1479 = vweird.f32 %v1473
      %vm1480 = vweird.f32 %v1474
      %vm1481 = vmor %vm1479, %vm1480
      %v1482 = vsel %vm1481, %v1474, %v1478
      %v1483 = vand.u32 2147483647, %v1473
      %vm1484 = vcmp.eq.f32.partialorder %v1483, 8.507059e+37
      %v1485 = vand.u32 %v1473, 2147483648
      %v1486 = vor.u32 1.1754944e-38, %v1485
      %v1487 = vsel %vm1484, %v1486, %v1482
      %v1488 = vmul.f32 %v1463, %v1487
      %v1489 = vmin.f32 %v1488, 1.0
      %v1490 = vmax.f32 %v1489, -1.0
      %v1491 = vmul.f32 %v718, %v718
      %v1492 = vmin.f32 16.0, %v1491
      %v1493 = vmul.f32 %v1492, 2.1237322e-06
      %v1494 = vadd.f32 %v1493, 0.00028619796
      %v1495 = vmul.f32 %v1492, %v1494
      %v1496 = vadd.f32 %v1495, 0.0036580483
      %v1497 = vmul.f32 %v1492, %v1496
      %v1498 = vadd.f32 %v1497, 0.05243302
      %v1499 = vmul.f32 %v1492, %v1498
      %v1500 = vadd.f32 %v1499, 0.18741608
      %v1501 = vmul.f32 %v1492, %v1500
      %v1502 = vadd.f32 %v1501, 1.1283791
      %v1503 = vmul.f32 %v718, %v1502
      %v1504 = vmul.f32 %v1492, 3.8918573e-05
      %v1505 = vadd.f32 %v1504, 0.001143296
      %v1506 = vmul.f32 %v1492, %v1505
      %v1507 = vadd.f32 %v1506, 0.014752088
      %v1508 = vmul.f32 %v1492, %v1507
      %v1509 = vadd.f32 %v1508, 0.112945676
      %v1510 = vmul.f32 %v1492, %v1509
      %v1511 = vadd.f32 %v1510, 0.4994258
      %v1512 = vmul.f32 %v1492, %v1511
      %v1513 = vadd.f32 %v1512, 1.0
      %v1514 = vrcp.pop %v1513
      %v1515 = vmul.f32 %v1513, %v1514
      %v1516 = vsub.f32 1.0, %v1515
      %v1517 = vmul.f32 %v1514, %v1516
      %v1518 = vadd.f32 %v1514, %v1517
      %vm1519 = vweird.f32 %v1513
      %vm1520 = vweird.f32 %v1514
      %vm1521 = vmor %vm1519, %vm1520
      %v1522 = vsel %vm1521, %v1514, %v1518
      %v1523 = vand.u32 2147483647, %v1513
      %vm1524 = vcmp.eq.f32.partialorder %v1523, 8.507059e+37
      %v1525 = vand.u32 %v1513, 2147483648
      %v1526 = vor.u32 1.1754944e-38, %v1525
      %v1527 = vsel %vm1524, %v1526, %v1522
      %v1528 = vmul.f32 %v1503, %v1527
      %v1529 = vmin.f32 %v1528, 1.0
      %v1530 = vmax.f32 %v1529, -1.0
      %v1531 = vmul.f32 %v719, %v719
      %v1532 = vmin.f32 16.0, %v1531
      %v1533 = vmul.f32 %v1532, 2.1237322e-06
      %v1534 = vadd.f32 %v1533, 0.00028619796
      %v1535 = vmul.f32 %v1532, %v1534
      %v1536 = vadd.f32 %v1535, 0.0036580483
      %v1537 = vmul.f32 %v1532, %v1536
      %v1538 = vadd.f32 %v1537, 0.05243302
      %v1539 = vmul.f32 %v1532, %v1538
      %v1540 = vadd.f32 %v1539, 0.18741608
      %v1541 = vmul.f32 %v1532, %v1540
      %v1542 = vadd.f32 %v1541, 1.1283791
      %v1543 = vmul.f32 %v719, %v1542
      %v1544 = vmul.f32 %v1532, 3.8918573e-05
      %v1545 = vadd.f32 %v1544, 0.001143296
      %v1546 = vmul.f32 %v1532, %v1545
      %v1547 = vadd.f32 %v1546, 0.014752088
      %v1548 = vmul.f32 %v1532, %v1547
      %v1549 = vadd.f32 %v1548, 0.112945676
      %v1550 = vmul.f32 %v1532, %v1549
      %v1551 = vadd.f32 %v1550, 0.4994258
      %v1552 = vmul.f32 %v1532, %v1551
      %v1553 = vadd.f32 %v1552, 1.0
      %v1554 = vrcp.pop %v1553
      %v1555 = vmul.f32 %v1553, %v1554
      %v1556 = vsub.f32 1.0, %v1555
      %v1557 = vmul.f32 %v1554, %v1556
      %v1558 = vadd.f32 %v1554, %v1557
      %vm1559 = vweird.f32 %v1553
      %vm1560 = vweird.f32 %v1554
      %vm1561 = vmor %vm1559, %vm1560
      %v1562 = vsel %vm1561, %v1554, %v1558
      %v1563 = vand.u32 2147483647, %v1553
      %vm1564 = vcmp.eq.f32.partialorder %v1563, 8.507059e+37
      %v1565 = vand.u32 %v1553, 2147483648
      %v1566 = vor.u32 1.1754944e-38, %v1565
      %v1567 = vsel %vm1564, %v1566, %v1562
      %v1568 = vmul.f32 %v1543, %v1567
      %v1569 = vmin.f32 %v1568, 1.0
      %v1570 = vmax.f32 %v1569, -1.0
      %v1571 = vmul.f32 %v720, %v720
      %v1572 = vmin.f32 16.0, %v1571
      %v1573 = vmul.f32 %v1572, 2.1237322e-06
      %v1574 = vadd.f32 %v1573, 0.00028619796
      %v1575 = vmul.f32 %v1572, %v1574
      %v1576 = vadd.f32 %v1575, 0.0036580483
      %v1577 = vmul.f32 %v1572, %v1576
      %v1578 = vadd.f32 %v1577, 0.05243302
      %v1579 = vmul.f32 %v1572, %v1578
      %v1580 = vadd.f32 %v1579, 0.18741608
      %v1581 = vmul.f32 %v1572, %v1580
      %v1582 = vadd.f32 %v1581, 1.1283791
      %v1583 = vmul.f32 %v720, %v1582
      %v1584 = vmul.f32 %v1572, 3.8918573e-05
      %v1585 = vadd.f32 %v1584, 0.001143296
      %v1586 = vmul.f32 %v1572, %v1585
      %v1587 = vadd.f32 %v1586, 0.014752088
      %v1588 = vmul.f32 %v1572, %v1587
      %v1589 = vadd.f32 %v1588, 0.112945676
      %v1590 = vmul.f32 %v1572, %v1589
      %v1591 = vadd.f32 %v1590, 0.4994258
      %v1592 = vmul.f32 %v1572, %v1591
      %v1593 = vadd.f32 %v1592, 1.0
      %v1594 = vrcp.pop %v1593
      %v1595 = vmul.f32 %v1593, %v1594
      %v1596 = vsub.f32 1.0, %v1595
      %v1597 = vmul.f32 %v1594, %v1596
      %v1598 = vadd.f32 %v1594, %v1597
      %vm1599 = vweird.f32 %v1593
      %vm1600 = vweird.f32 %v1594
      %vm1601 = vmor %vm1599, %vm1600
      %v1602 = vsel %vm1601, %v1594, %v1598
      %v1603 = vand.u32 2147483647, %v1593
      %vm1604 = vcmp.eq.f32.partialorder %v1603, 8.507059e+37
      %v1605 = vand.u32 %v1593, 2147483648
      %v1606 = vor.u32 1.1754944e-38, %v1605
      %v1607 = vsel %vm1604, %v1606, %v1602
      %v1608 = vmul.f32 %v1583, %v1607
      %v1609 = vmin.f32 %v1608, 1.0
      %v1610 = vmax.f32 %v1609, -1.0
      %v1611 = vmul.f32 %v721, %v721
      %v1612 = vmin.f32 16.0, %v1611
      %v1613 = vmul.f32 %v1612, 2.1237322e-06
      %v1614 = vadd.f32 %v1613, 0.00028619796
      %v1615 = vmul.f32 %v1612, %v1614
      %v1616 = vadd.f32 %v1615, 0.0036580483
      %v1617 = vmul.f32 %v1612, %v1616
      %v1618 = vadd.f32 %v1617, 0.05243302
      %v1619 = vmul.f32 %v1612, %v1618
      %v1620 = vadd.f32 %v1619, 0.18741608
      %v1621 = vmul.f32 %v1612, %v1620
      %v1622 = vadd.f32 %v1621, 1.1283791
      %v1623 = vmul.f32 %v721, %v1622
      %v1624 = vmul.f32 %v1612, 3.8918573e-05
      %v1625 = vadd.f32 %v1624, 0.001143296
      %v1626 = vmul.f32 %v1612, %v1625
      %v1627 = vadd.f32 %v1626, 0.014752088
      %v1628 = vmul.f32 %v1612, %v1627
      %v1629 = vadd.f32 %v1628, 0.112945676
      %v1630 = vmul.f32 %v1612, %v1629
      %v1631 = vadd.f32 %v1630, 0.4994258
      %v1632 = vmul.f32 %v1612, %v1631
      %v1633 = vadd.f32 %v1632, 1.0
      %v1634 = vrcp.pop %v1633
      %v1635 = vmul.f32 %v1633, %v1634
      %v1636 = vsub.f32 1.0, %v1635
      %v1637 = vmul.f32 %v1634, %v1636
      %v1638 = vadd.f32 %v1634, %v1637
      %vm1639 = vweird.f32 %v1633
      %vm1640 = vweird.f32 %v1634
      %vm1641 = vmor %vm1639, %vm1640
      %v1642 = vsel %vm1641, %v1634, %v1638
      %v1643 = vand.u32 2147483647, %v1633
      %vm1644 = vcmp.eq.f32.partialorder %v1643, 8.507059e+37
      %v1645 = vand.u32 %v1633, 2147483648
      %v1646 = vor.u32 1.1754944e-38, %v1645
      %v1647 = vsel %vm1644, %v1646, %v1642
      %v1648 = vmul.f32 %v1623, %v1647
      %v1649 = vmin.f32 %v1648, 1.0
      %v1650 = vmax.f32 %v1649, -1.0
      %v1651 = vmul.f32 %v722, %v722
      %v1652 = vmin.f32 16.0, %v1651
      %v1653 = vmul.f32 %v1652, 2.1237322e-06
      %v1654 = vadd.f32 %v1653, 0.00028619796
      %v1655 = vmul.f32 %v1652, %v1654
      %v1656 = vadd.f32 %v1655, 0.0036580483
      %v1657 = vmul.f32 %v1652, %v1656
      %v1658 = vadd.f32 %v1657, 0.05243302
      %v1659 = vmul.f32 %v1652, %v1658
      %v1660 = vadd.f32 %v1659, 0.18741608
      %v1661 = vmul.f32 %v1652, %v1660
      %v1662 = vadd.f32 %v1661, 1.1283791
      %v1663 = vmul.f32 %v722, %v1662
      %v1664 = vmul.f32 %v1652, 3.8918573e-05
      %v1665 = vadd.f32 %v1664, 0.001143296
      %v1666 = vmul.f32 %v1652, %v1665
      %v1667 = vadd.f32 %v1666, 0.014752088
      %v1668 = vmul.f32 %v1652, %v1667
      %v1669 = vadd.f32 %v1668, 0.112945676
      %v1670 = vmul.f32 %v1652, %v1669
      %v1671 = vadd.f32 %v1670, 0.4994258
      %v1672 = vmul.f32 %v1652, %v1671
      %v1673 = vadd.f32 %v1672, 1.0
      %v1674 = vrcp.pop %v1673
      %v1675 = vmul.f32 %v1673, %v1674
      %v1676 = vsub.f32 1.0, %v1675
      %v1677 = vmul.f32 %v1674, %v1676
      %v1678 = vadd.f32 %v1674, %v1677
      %vm1679 = vweird.f32 %v1673
      %vm1680 = vweird.f32 %v1674
      %vm1681 = vmor %vm1679, %vm1680
      %v1682 = vsel %vm1681, %v1674, %v1678
      %v1683 = vand.u32 2147483647, %v1673
      %vm1684 = vcmp.eq.f32.partialorder %v1683, 8.507059e+37
      %v1685 = vand.u32 %v1673, 2147483648
      %v1686 = vor.u32 1.1754944e-38, %v1685
      %v1687 = vsel %vm1684, %v1686, %v1682
      %v1688 = vmul.f32 %v1663, %v1687
      %v1689 = vmin.f32 %v1688, 1.0
      %v1690 = vmax.f32 %v1689, -1.0
      %v1691 = vmul.f32 %v723, %v723
      %v1692 = vmin.f32 16.0, %v1691
      %v1693 = vmul.f32 %v1692, 2.1237322e-06
      %v1694 = vadd.f32 %v1693, 0.00028619796
      %v1695 = vmul.f32 %v1692, %v1694
      %v1696 = vadd.f32 %v1695, 0.0036580483
      %v1697 = vmul.f32 %v1692, %v1696
      %v1698 = vadd.f32 %v1697, 0.05243302
      %v1699 = vmul.f32 %v1692, %v1698
      %v1700 = vadd.f32 %v1699, 0.18741608
      %v1701 = vmul.f32 %v1692, %v1700
      %v1702 = vadd.f32 %v1701, 1.1283791
      %v1703 = vmul.f32 %v723, %v1702
      %v1704 = vmul.f32 %v1692, 3.8918573e-05
      %v1705 = vadd.f32 %v1704, 0.001143296
      %v1706 = vmul.f32 %v1692, %v1705
      %v1707 = vadd.f32 %v1706, 0.014752088
      %v1708 = vmul.f32 %v1692, %v1707
      %v1709 = vadd.f32 %v1708, 0.112945676
      %v1710 = vmul.f32 %v1692, %v1709
      %v1711 = vadd.f32 %v1710, 0.4994258
      %v1712 = vmul.f32 %v1692, %v1711
      %v1713 = vadd.f32 %v1712, 1.0
      %v1714 = vrcp.pop %v1713
      %v1715 = vmul.f32 %v1713, %v1714
      %v1716 = vsub.f32 1.0, %v1715
      %v1717 = vmul.f32 %v1714, %v1716
      %v1718 = vadd.f32 %v1714, %v1717
      %vm1719 = vweird.f32 %v1713
      %vm1720 = vweird.f32 %v1714
      %vm1721 = vmor %vm1719, %vm1720
      %v1722 = vsel %vm1721, %v1714, %v1718
      %v1723 = vand.u32 2147483647, %v1713
      %vm1724 = vcmp.eq.f32.partialorder %v1723, 8.507059e+37
      %v1725 = vand.u32 %v1713, 2147483648
      %v1726 = vor.u32 1.1754944e-38, %v1725
      %v1727 = vsel %vm1724, %v1726, %v1722
      %v1728 = vmul.f32 %v1703, %v1727
      %v1729 = vmin.f32 %v1728, 1.0
      %v1730 = vmax.f32 %v1729, -1.0
      %v1731 = vmul.f32 %v724, %v724
      %v1732 = vmin.f32 16.0, %v1731
      %v1733 = vmul.f32 %v1732, 2.1237322e-06
      %v1734 = vadd.f32 %v1733, 0.00028619796
      %v1735 = vmul.f32 %v1732, %v1734
      %v1736 = vadd.f32 %v1735, 0.0036580483
      %v1737 = vmul.f32 %v1732, %v1736
      %v1738 = vadd.f32 %v1737, 0.05243302
      %v1739 = vmul.f32 %v1732, %v1738
      %v1740 = vadd.f32 %v1739, 0.18741608
      %v1741 = vmul.f32 %v1732, %v1740
      %v1742 = vadd.f32 %v1741, 1.1283791
      %v1743 = vmul.f32 %v724, %v1742
      %v1744 = vmul.f32 %v1732, 3.8918573e-05
      %v1745 = vadd.f32 %v1744, 0.001143296
      %v1746 = vmul.f32 %v1732, %v1745
      %v1747 = vadd.f32 %v1746, 0.014752088
      %v1748 = vmul.f32 %v1732, %v1747
      %v1749 = vadd.f32 %v1748, 0.112945676
      %v1750 = vmul.f32 %v1732, %v1749
      %v1751 = vadd.f32 %v1750, 0.4994258
      %v1752 = vmul.f32 %v1732, %v1751
      %v1753 = vadd.f32 %v1752, 1.0
      %v1754 = vrcp.pop %v1753
      %v1755 = vmul.f32 %v1753, %v1754
      %v1756 = vsub.f32 1.0, %v1755
      %v1757 = vmul.f32 %v1754, %v1756
      %v1758 = vadd.f32 %v1754, %v1757
      %vm1759 = vweird.f32 %v1753
      %vm1760 = vweird.f32 %v1754
      %vm1761 = vmor %vm1759, %vm1760
      %v1762 = vsel %vm1761, %v1754, %v1758
      %v1763 = vand.u32 2147483647, %v1753
      %vm1764 = vcmp.eq.f32.partialorder %v1763, 8.507059e+37
      %v1765 = vand.u32 %v1753, 2147483648
      %v1766 = vor.u32 1.1754944e-38, %v1765
      %v1767 = vsel %vm1764, %v1766, %v1762
      %v1768 = vmul.f32 %v1743, %v1767
      %v1769 = vmin.f32 %v1768, 1.0
      %v1770 = vmax.f32 %v1769, -1.0
      %v1771 = vmul.f32 %v725, %v725
      %v1772 = vmin.f32 16.0, %v1771
      %v1773 = vmul.f32 %v1772, 2.1237322e-06
      %v1774 = vadd.f32 %v1773, 0.00028619796
      %v1775 = vmul.f32 %v1772, %v1774
      %v1776 = vadd.f32 %v1775, 0.0036580483
      %v1777 = vmul.f32 %v1772, %v1776
      %v1778 = vadd.f32 %v1777, 0.05243302
      %v1779 = vmul.f32 %v1772, %v1778
      %v1780 = vadd.f32 %v1779, 0.18741608
      %v1781 = vmul.f32 %v1772, %v1780
      %v1782 = vadd.f32 %v1781, 1.1283791
      %v1783 = vmul.f32 %v725, %v1782
      %v1784 = vmul.f32 %v1772, 3.8918573e-05
      %v1785 = vadd.f32 %v1784, 0.001143296
      %v1786 = vmul.f32 %v1772, %v1785
      %v1787 = vadd.f32 %v1786, 0.014752088
      %v1788 = vmul.f32 %v1772, %v1787
      %v1789 = vadd.f32 %v1788, 0.112945676
      %v1790 = vmul.f32 %v1772, %v1789
      %v1791 = vadd.f32 %v1790, 0.4994258
      %v1792 = vmul.f32 %v1772, %v1791
      %v1793 = vadd.f32 %v1792, 1.0
      %v1794 = vrcp.pop %v1793
      %v1795 = vmul.f32 %v1793, %v1794
      %v1796 = vsub.f32 1.0, %v1795
      %v1797 = vmul.f32 %v1794, %v1796
      %v1798 = vadd.f32 %v1794, %v1797
      %vm1799 = vweird.f32 %v1793
      %vm1800 = vweird.f32 %v1794
      %vm1801 = vmor %vm1799, %vm1800
      %v1802 = vsel %vm1801, %v1794, %v1798
      %v1803 = vand.u32 2147483647, %v1793
      %vm1804 = vcmp.eq.f32.partialorder %v1803, 8.507059e+37
      %v1805 = vand.u32 %v1793, 2147483648
      %v1806 = vor.u32 1.1754944e-38, %v1805
      %v1807 = vsel %vm1804, %v1806, %v1802
      %v1808 = vmul.f32 %v1783, %v1807
      %v1809 = vmin.f32 %v1808, 1.0
      %v1810 = vmax.f32 %v1809, -1.0
      %v1811 = vmul.f32 %v726, %v726
      %v1812 = vmin.f32 16.0, %v1811
      %v1813 = vmul.f32 %v1812, 2.1237322e-06
      %v1814 = vadd.f32 %v1813, 0.00028619796
      %v1815 = vmul.f32 %v1812, %v1814
      %v1816 = vadd.f32 %v1815, 0.0036580483
      %v1817 = vmul.f32 %v1812, %v1816
      %v1818 = vadd.f32 %v1817, 0.05243302
      %v1819 = vmul.f32 %v1812, %v1818
      %v1820 = vadd.f32 %v1819, 0.18741608
      %v1821 = vmul.f32 %v1812, %v1820
      %v1822 = vadd.f32 %v1821, 1.1283791
      %v1823 = vmul.f32 %v726, %v1822
      %v1824 = vmul.f32 %v1812, 3.8918573e-05
      %v1825 = vadd.f32 %v1824, 0.001143296
      %v1826 = vmul.f32 %v1812, %v1825
      %v1827 = vadd.f32 %v1826, 0.014752088
      %v1828 = vmul.f32 %v1812, %v1827
      %v1829 = vadd.f32 %v1828, 0.112945676
      %v1830 = vmul.f32 %v1812, %v1829
      %v1831 = vadd.f32 %v1830, 0.4994258
      %v1832 = vmul.f32 %v1812, %v1831
      %v1833 = vadd.f32 %v1832, 1.0
      %v1834 = vrcp.pop %v1833
      %v1835 = vmul.f32 %v1833, %v1834
      %v1836 = vsub.f32 1.0, %v1835
      %v1837 = vmul.f32 %v1834, %v1836
      %v1838 = vadd.f32 %v1834, %v1837
      %vm1839 = vweird.f32 %v1833
      %vm1840 = vweird.f32 %v1834
      %vm1841 = vmor %vm1839, %vm1840
      %v1842 = vsel %vm1841, %v1834, %v1838
      %v1843 = vand.u32 2147483647, %v1833
      %vm1844 = vcmp.eq.f32.partialorder %v1843, 8.507059e+37
      %v1845 = vand.u32 %v1833, 2147483648
      %v1846 = vor.u32 1.1754944e-38, %v1845
      %v1847 = vsel %vm1844, %v1846, %v1842
      %v1848 = vmul.f32 %v1823, %v1847
      %v1849 = vmin.f32 %v1848, 1.0
      %v1850 = vmax.f32 %v1849, -1.0
      %v1851 = vmul.f32 %v727, %v727
      %v1852 = vmin.f32 16.0, %v1851
      %v1853 = vmul.f32 %v1852, 2.1237322e-06
      %v1854 = vadd.f32 %v1853, 0.00028619796
      %v1855 = vmul.f32 %v1852, %v1854
      %v1856 = vadd.f32 %v1855, 0.0036580483
      %v1857 = vmul.f32 %v1852, %v1856
      %v1858 = vadd.f32 %v1857, 0.05243302
      %v1859 = vmul.f32 %v1852, %v1858
      %v1860 = vadd.f32 %v1859, 0.18741608
      %v1861 = vmul.f32 %v1852, %v1860
      %v1862 = vadd.f32 %v1861, 1.1283791
      %v1863 = vmul.f32 %v727, %v1862
      %v1864 = vmul.f32 %v1852, 3.8918573e-05
      %v1865 = vadd.f32 %v1864, 0.001143296
      %v1866 = vmul.f32 %v1852, %v1865
      %v1867 = vadd.f32 %v1866, 0.014752088
      %v1868 = vmul.f32 %v1852, %v1867
      %v1869 = vadd.f32 %v1868, 0.112945676
      %v1870 = vmul.f32 %v1852, %v1869
      %v1871 = vadd.f32 %v1870, 0.4994258
      %v1872 = vmul.f32 %v1852, %v1871
      %v1873 = vadd.f32 %v1872, 1.0
      %v1874 = vrcp.pop %v1873
      %v1875 = vmul.f32 %v1873, %v1874
      %v1876 = vsub.f32 1.0, %v1875
      %v1877 = vmul.f32 %v1874, %v1876
      %v1878 = vadd.f32 %v1874, %v1877
      %vm1879 = vweird.f32 %v1873
      %vm1880 = vweird.f32 %v1874
      %vm1881 = vmor %vm1879, %vm1880
      %v1882 = vsel %vm1881, %v1874, %v1878
      %v1883 = vand.u32 2147483647, %v1873
      %vm1884 = vcmp.eq.f32.partialorder %v1883, 8.507059e+37
      %v1885 = vand.u32 %v1873, 2147483648
      %v1886 = vor.u32 1.1754944e-38, %v1885
      %v1887 = vsel %vm1884, %v1886, %v1882
      %v1888 = vmul.f32 %v1863, %v1887
      %v1889 = vmin.f32 %v1888, 1.0
      %v1890 = vmax.f32 %v1889, -1.0
      %v1891 = vmul.f32 %v728, %v728
      %v1892 = vmin.f32 16.0, %v1891
      %v1893 = vmul.f32 %v1892, 2.1237322e-06
      %v1894 = vadd.f32 %v1893, 0.00028619796
      %v1895 = vmul.f32 %v1892, %v1894
      %v1896 = vadd.f32 %v1895, 0.0036580483
      %v1897 = vmul.f32 %v1892, %v1896
      %v1898 = vadd.f32 %v1897, 0.05243302
      %v1899 = vmul.f32 %v1892, %v1898
      %v1900 = vadd.f32 %v1899, 0.18741608
      %v1901 = vmul.f32 %v1892, %v1900
      %v1902 = vadd.f32 %v1901, 1.1283791
      %v1903 = vmul.f32 %v728, %v1902
      %v1904 = vmul.f32 %v1892, 3.8918573e-05
      %v1905 = vadd.f32 %v1904, 0.001143296
      %v1906 = vmul.f32 %v1892, %v1905
      %v1907 = vadd.f32 %v1906, 0.014752088
      %v1908 = vmul.f32 %v1892, %v1907
      %v1909 = vadd.f32 %v1908, 0.112945676
      %v1910 = vmul.f32 %v1892, %v1909
      %v1911 = vadd.f32 %v1910, 0.4994258
      %v1912 = vmul.f32 %v1892, %v1911
      %v1913 = vadd.f32 %v1912, 1.0
      %v1914 = vrcp.pop %v1913
      %v1915 = vmul.f32 %v1913, %v1914
      %v1916 = vsub.f32 1.0, %v1915
      %v1917 = vmul.f32 %v1914, %v1916
      %v1918 = vadd.f32 %v1914, %v1917
      %vm1919 = vweird.f32 %v1913
      %vm1920 = vweird.f32 %v1914
      %vm1921 = vmor %vm1919, %vm1920
      %v1922 = vsel %vm1921, %v1914, %v1918
      %v1923 = vand.u32 2147483647, %v1913
      %vm1924 = vcmp.eq.f32.partialorder %v1923, 8.507059e+37
      %v1925 = vand.u32 %v1913, 2147483648
      %v1926 = vor.u32 1.1754944e-38, %v1925
      %v1927 = vsel %vm1924, %v1926, %v1922
      %v1928 = vmul.f32 %v1903, %v1927
      %v1929 = vmin.f32 %v1928, 1.0
      %v1930 = vmax.f32 %v1929, -1.0
      %v1931 = vmul.f32 %v729, %v729
      %v1932 = vmin.f32 16.0, %v1931
      %v1933 = vmul.f32 %v1932, 2.1237322e-06
      %v1934 = vadd.f32 %v1933, 0.00028619796
      %v1935 = vmul.f32 %v1932, %v1934
      %v1936 = vadd.f32 %v1935, 0.0036580483
      %v1937 = vmul.f32 %v1932, %v1936
      %v1938 = vadd.f32 %v1937, 0.05243302
      %v1939 = vmul.f32 %v1932, %v1938
      %v1940 = vadd.f32 %v1939, 0.18741608
      %v1941 = vmul.f32 %v1932, %v1940
      %v1942 = vadd.f32 %v1941, 1.1283791
      %v1943 = vmul.f32 %v729, %v1942
      %v1944 = vmul.f32 %v1932, 3.8918573e-05
      %v1945 = vadd.f32 %v1944, 0.001143296
      %v1946 = vmul.f32 %v1932, %v1945
      %v1947 = vadd.f32 %v1946, 0.014752088
      %v1948 = vmul.f32 %v1932, %v1947
      %v1949 = vadd.f32 %v1948, 0.112945676
      %v1950 = vmul.f32 %v1932, %v1949
      %v1951 = vadd.f32 %v1950, 0.4994258
      %v1952 = vmul.f32 %v1932, %v1951
      %v1953 = vadd.f32 %v1952, 1.0
      %v1954 = vrcp.pop %v1953
      %v1955 = vmul.f32 %v1953, %v1954
      %v1956 = vsub.f32 1.0, %v1955
      %v1957 = vmul.f32 %v1954, %v1956
      %v1958 = vadd.f32 %v1954, %v1957
      %vm1959 = vweird.f32 %v1953
      %vm1960 = vweird.f32 %v1954
      %vm1961 = vmor %vm1959, %vm1960
      %v1962 = vsel %vm1961, %v1954, %v1958
      %v1963 = vand.u32 2147483647, %v1953
      %vm1964 = vcmp.eq.f32.partialorder %v1963, 8.507059e+37
      %v1965 = vand.u32 %v1953, 2147483648
      %v1966 = vor.u32 1.1754944e-38, %v1965
      %v1967 = vsel %vm1964, %v1966, %v1962
      %v1968 = vmul.f32 %v1943, %v1967
      %v1969 = vmin.f32 %v1968, 1.0
      %v1970 = vmax.f32 %v1969, -1.0
      %v1971 = vmul.f32 %v730, %v730
      %v1972 = vmin.f32 16.0, %v1971
      %v1973 = vmul.f32 %v1972, 2.1237322e-06
      %v1974 = vadd.f32 %v1973, 0.00028619796
      %v1975 = vmul.f32 %v1972, %v1974
      %v1976 = vadd.f32 %v1975, 0.0036580483
      %v1977 = vmul.f32 %v1972, %v1976
      %v1978 = vadd.f32 %v1977, 0.05243302
      %v1979 = vmul.f32 %v1972, %v1978
      %v1980 = vadd.f32 %v1979, 0.18741608
      %v1981 = vmul.f32 %v1972, %v1980
      %v1982 = vadd.f32 %v1981, 1.1283791
      %v1983 = vmul.f32 %v730, %v1982
      %v1984 = vmul.f32 %v1972, 3.8918573e-05
      %v1985 = vadd.f32 %v1984, 0.001143296
      %v1986 = vmul.f32 %v1972, %v1985
      %v1987 = vadd.f32 %v1986, 0.014752088
      %v1988 = vmul.f32 %v1972, %v1987
      %v1989 = vadd.f32 %v1988, 0.112945676
      %v1990 = vmul.f32 %v1972, %v1989
      %v1991 = vadd.f32 %v1990, 0.4994258
      %v1992 = vmul.f32 %v1972, %v1991
      %v1993 = vadd.f32 %v1992, 1.0
      %v1994 = vrcp.pop %v1993
      %v1995 = vmul.f32 %v1993, %v1994
      %v1996 = vsub.f32 1.0, %v1995
      %v1997 = vmul.f32 %v1994, %v1996
      %v1998 = vadd.f32 %v1994, %v1997
      %vm1999 = vweird.f32 %v1993
      %vm2000 = vweird.f32 %v1994
      %vm2001 = vmor %vm1999, %vm2000
      %v2002 = vsel %vm2001, %v1994, %v1998
      %v2003 = vand.u32 2147483647, %v1993
      %vm2004 = vcmp.eq.f32.partialorder %v2003, 8.507059e+37
      %v2005 = vand.u32 %v1993, 2147483648
      %v2006 = vor.u32 1.1754944e-38, %v2005
      %v2007 = vsel %vm2004, %v2006, %v2002
      %v2008 = vmul.f32 %v1983, %v2007
      %v2009 = vmin.f32 %v2008, 1.0
      %v2010 = vmax.f32 %v2009, -1.0
      %v2011 = vadd.f32 %v770, 1.0
      %v2012 = vadd.f32 %v810, 1.0
      %v2013 = vadd.f32 %v850, 1.0
      %v2014 = vadd.f32 %v890, 1.0
      %v2015 = vadd.f32 %v930, 1.0
      %v2016 = vadd.f32 %v970, 1.0
      %v2017 = vadd.f32 %v1010, 1.0
      %v2018 = vadd.f32 %v1050, 1.0
      %v2019 = vadd.f32 %v1090, 1.0
      %v2020 = vadd.f32 %v1130, 1.0
      %v2021 = vadd.f32 %v1170, 1.0
      %v2022 = vadd.f32 %v1210, 1.0
      %v2023 = vadd.f32 %v1250, 1.0
      %v2024 = vadd.f32 %v1290, 1.0
      %v2025 = vadd.f32 %v1330, 1.0
      %v2026 = vadd.f32 %v1370, 1.0
      %v2027 = vadd.f32 %v1410, 1.0
      %v2028 = vadd.f32 %v1450, 1.0
      %v2029 = vadd.f32 %v1490, 1.0
      %v2030 = vadd.f32 %v1530, 1.0
      %v2031 = vadd.f32 %v1570, 1.0
      %v2032 = vadd.f32 %v1610, 1.0
      %v2033 = vadd.f32 %v1650, 1.0
      %v2034 = vadd.f32 %v1690, 1.0
      %v2035 = vadd.f32 %v1730, 1.0
      %v2036 = vadd.f32 %v1770, 1.0
      %v2037 = vadd.f32 %v1810, 1.0
      %v2038 = vadd.f32 %v1850, 1.0
      %v2039 = vadd.f32 %v1890, 1.0
      %v2040 = vadd.f32 %v1930, 1.0
      %v2041 = vadd.f32 %v1970, 1.0
      %v2042 = vadd.f32 %v2010, 1.0
      %v2043 = vmul.f32 %v667, %v2011
      %v2044 = vmul.f32 %v668, %v2012
      %v2045 = vmul.f32 %v669, %v2013
      %v2046 = vmul.f32 %v670, %v2014
      %v2047 = vmul.f32 %v671, %v2015
      %v2048 = vmul.f32 %v672, %v2016
      %v2049 = vmul.f32 %v673, %v2017
      %v2050 = vmul.f32 %v674, %v2018
      %v2051 = vmul.f32 %v675, %v2019
      %v2052 = vmul.f32 %v676, %v2020
      %v2053 = vmul.f32 %v677, %v2021
      %v2054 = vmul.f32 %v678, %v2022
      %v2055 = vmul.f32 %v679, %v2023
      %v2056 = vmul.f32 %v680, %v2024
      %v2057 = vmul.f32 %v681, %v2025
      %v2058 = vmul.f32 %v682, %v2026
      %v2059 = vmul.f32 %v683, %v2027
      %v2060 = vmul.f32 %v684, %v2028
      %v2061 = vmul.f32 %v685, %v2029
      %v2062 = vmul.f32 %v686, %v2030
      %v2063 = vmul.f32 %v687, %v2031
      %v2064 = vmul.f32 %v688, %v2032
      %v2065 = vmul.f32 %v689, %v2033
      %v2066 = vmul.f32 %v690, %v2034
      %v2067 = vmul.f32 %v691, %v2035
      %v2068 = vmul.f32 %v692, %v2036
      %v2069 = vmul.f32 %v693, %v2037
      %v2070 = vmul.f32 %v694, %v2038
      %v2071 = vmul.f32 %v695, %v2039
      %v2072 = vmul.f32 %v696, %v2040
      %v2073 = vmul.f32 %v697, %v2041
      %v2074 = vmul.f32 %v698, %v2042
      %v2075 = vpack.c.bf16 %v2045, %v2043
      %v2076 = vpack.c.bf16 %v2046, %v2044
      %v2077 = vpack.c.bf16 %v2049, %v2047
      %v2078 = vpack.c.bf16 %v2050, %v2048
      %v2079 = vpack.c.bf16 %v2053, %v2051
      %v2080 = vpack.c.bf16 %v2054, %v2052
      %v2081 = vpack.c.bf16 %v2057, %v2055
      %v2082 = vpack.c.bf16 %v2058, %v2056
      %v2083 = vpack.c.bf16 %v2061, %v2059
      %v2084 = vpack.c.bf16 %v2062, %v2060
      %v2085 = vpack.c.bf16 %v2065, %v2063
      %v2086 = vpack.c.bf16 %v2066, %v2064
      %v2087 = vpack.c.bf16 %v2069, %v2067
      %v2088 = vpack.c.bf16 %v2070, %v2068
      %v2089 = vpack.c.bf16 %v2073, %v2071
      %v2090 = vpack.c.bf16 %v2074, %v2072
      %s2091 = scalar_lea.vmem %s1, 256
      %v2092 = vld [vmem:[%s2091] sm:$0xff]
      %v2093 = vld [vmem:[%s2091 + $0x8] sm:$0xff]
      %v2094 = vld [vmem:[%s2091 + $0x10] sm:$0xff]
      %v2095 = vld [vmem:[%s2091 + $0x18] sm:$0xff]
      %v2096 = vld [vmem:[%s2091 + $0x20] sm:$0xff]
      %v2097 = vld [vmem:[%s2091 + $0x28] sm:$0xff]
      %v2098 = vld [vmem:[%s2091 + $0x30] sm:$0xff]
      %v2099 = vld [vmem:[%s2091 + $0x38] sm:$0xff]
      %v2100 = vld [vmem:[%s2091 + $0x40] sm:$0xff]
      %v2101 = vld [vmem:[%s2091 + $0x48] sm:$0xff]
      %v2102 = vld [vmem:[%s2091 + $0x50] sm:$0xff]
      %v2103 = vld [vmem:[%s2091 + $0x58] sm:$0xff]
      %v2104 = vld [vmem:[%s2091 + $0x60] sm:$0xff]
      %v2105 = vld [vmem:[%s2091 + $0x68] sm:$0xff]
      %v2106 = vld [vmem:[%s2091 + $0x70] sm:$0xff]
      %v2107 = vld [vmem:[%s2091 + $0x78] sm:$0xff]
      %v2108 = vld [vmem:[%s2091 + $0x80] sm:$0xff]
      %v2109 = vld [vmem:[%s2091 + $0x88] sm:$0xff]
      %v2110 = vld [vmem:[%s2091 + $0x90] sm:$0xff]
      %v2111 = vld [vmem:[%s2091 + $0x98] sm:$0xff]
      %v2112 = vld [vmem:[%s2091 + $0xa0] sm:$0xff]
      %v2113 = vld [vmem:[%s2091 + $0xa8] sm:$0xff]
      %v2114 = vld [vmem:[%s2091 + $0xb0] sm:$0xff]
      %v2115 = vld [vmem:[%s2091 + $0xb8] sm:$0xff]
      %v2116 = vld [vmem:[%s2091 + $0xc0] sm:$0xff]
      %v2117 = vld [vmem:[%s2091 + $0xc8] sm:$0xff]
      %v2118 = vld [vmem:[%s2091 + $0xd0] sm:$0xff]
      %v2119 = vld [vmem:[%s2091 + $0xd8] sm:$0xff]
      %v2120 = vld [vmem:[%s2091 + $0xe0] sm:$0xff]
      %v2121 = vld [vmem:[%s2091 + $0xe8] sm:$0xff]
      %v2122 = vld [vmem:[%s2091 + $0xf0] sm:$0xff]
      %v2123 = vld [vmem:[%s2091 + $0xf8] sm:$0xff]
      %s2124 = scalar_lea.vmem %s2, 1
      %v2125 = vld [vmem:[%s2124] ss:$8 sm:$0x3]
      %v2127 = vperm.slane %v2125, 0
      %v2128 = vperm.slane %v2125, 1
      %v2163 = vunpack.c.l.b16 %v2092
      %v2164 = vunpack.c.h.b16 %v2092
      %v2165 = vunpack.c.l.b16 %v2093
      %v2166 = vunpack.c.h.b16 %v2093
      %v2167 = vunpack.c.l.b16 %v2094
      %v2168 = vunpack.c.h.b16 %v2094
      %v2169 = vunpack.c.l.b16 %v2095
      %v2170 = vunpack.c.h.b16 %v2095
      %v2171 = vunpack.c.l.b16 %v2096
      %v2172 = vunpack.c.h.b16 %v2096
      %v2173 = vunpack.c.l.b16 %v2097
      %v2174 = vunpack.c.h.b16 %v2097
      %v2175 = vunpack.c.l.b16 %v2098
      %v2176 = vunpack.c.h.b16 %v2098
      %v2177 = vunpack.c.l.b16 %v2099
      %v2178 = vunpack.c.h.b16 %v2099
      %v2179 = vunpack.c.l.b16 %v2100
      %v2180 = vunpack.c.h.b16 %v2100
      %v2181 = vunpack.c.l.b16 %v2101
      %v2182 = vunpack.c.h.b16 %v2101
      %v2183 = vunpack.c.l.b16 %v2102
      %v2184 = vunpack.c.h.b16 %v2102
      %v2185 = vunpack.c.l.b16 %v2103
      %v2186 = vunpack.c.h.b16 %v2103
      %v2187 = vunpack.c.l.b16 %v2104
      %v2188 = vunpack.c.h.b16 %v2104
      %v2189 = vunpack.c.l.b16 %v2105
      %v2190 = vunpack.c.h.b16 %v2105
      %v2191 = vunpack.c.l.b16 %v2106
      %v2192 = vunpack.c.h.b16 %v2106
      %v2193 = vunpack.c.l.b16 %v2107
      %v2194 = vunpack.c.h.b16 %v2107
      %v2195 = vunpack.c.l.b16 %v2108
      %v2196 = vunpack.c.h.b16 %v2108
      %v2197 = vunpack.c.l.b16 %v2109
      %v2198 = vunpack.c.h.b16 %v2109
      %v2199 = vunpack.c.l.b16 %v2110
      %v2200 = vunpack.c.h.b16 %v2110
      %v2201 = vunpack.c.l.b16 %v2111
      %v2202 = vunpack.c.h.b16 %v2111
      %v2203 = vunpack.c.l.b16 %v2112
      %v2204 = vunpack.c.h.b16 %v2112
      %v2205 = vunpack.c.l.b16 %v2113
      %v2206 = vunpack.c.h.b16 %v2113
      %v2207 = vunpack.c.l.b16 %v2114
      %v2208 = vunpack.c.h.b16 %v2114
      %v2209 = vunpack.c.l.b16 %v2115
      %v2210 = vunpack.c.h.b16 %v2115
      %v2211 = vunpack.c.l.b16 %v2116
      %v2212 = vunpack.c.h.b16 %v2116
      %v2213 = vunpack.c.l.b16 %v2117
      %v2214 = vunpack.c.h.b16 %v2117
      %v2215 = vunpack.c.l.b16 %v2118
      %v2216 = vunpack.c.h.b16 %v2118
      %v2217 = vunpack.c.l.b16 %v2119
      %v2218 = vunpack.c.h.b16 %v2119
      %v2219 = vunpack.c.l.b16 %v2120
      %v2220 = vunpack.c.h.b16 %v2120
      %v2221 = vunpack.c.l.b16 %v2121
      %v2222 = vunpack.c.h.b16 %v2121
      %v2223 = vunpack.c.l.b16 %v2122
      %v2224 = vunpack.c.h.b16 %v2122
      %v2225 = vunpack.c.l.b16 %v2123
      %v2226 = vunpack.c.h.b16 %v2123
      %v2227 = vpack.c.b16 %v2165, %v2163
      %v2228 = vpack.c.b16 %v2166, %v2164
      %v2229 = vpack.c.b16 %v2169, %v2167
      %v2230 = vpack.c.b16 %v2170, %v2168
      %v2231 = vpack.c.b16 %v2173, %v2171
      %v2232 = vpack.c.b16 %v2174, %v2172
      %v2233 = vpack.c.b16 %v2177, %v2175
      %v2234 = vpack.c.b16 %v2178, %v2176
      %v2235 = vpack.c.b16 %v2181, %v2179
      %v2236 = vpack.c.b16 %v2182, %v2180
      %v2237 = vpack.c.b16 %v2185, %v2183
      %v2238 = vpack.c.b16 %v2186, %v2184
      %v2239 = vpack.c.b16 %v2189, %v2187
      %v2240 = vpack.c.b16 %v2190, %v2188
      %v2241 = vpack.c.b16 %v2193, %v2191
      %v2242 = vpack.c.b16 %v2194, %v2192
      %v2243 = vpack.c.b16 %v2197, %v2195
      %v2244 = vpack.c.b16 %v2198, %v2196
      %v2245 = vpack.c.b16 %v2201, %v2199
      %v2246 = vpack.c.b16 %v2202, %v2200
      %v2247 = vpack.c.b16 %v2205, %v2203
      %v2248 = vpack.c.b16 %v2206, %v2204
      %v2249 = vpack.c.b16 %v2209, %v2207
      %v2250 = vpack.c.b16 %v2210, %v2208
      %v2251 = vpack.c.b16 %v2213, %v2211
      %v2252 = vpack.c.b16 %v2214, %v2212
      %v2253 = vpack.c.b16 %v2217, %v2215
      %v2254 = vpack.c.b16 %v2218, %v2216
      %v2255 = vpack.c.b16 %v2221, %v2219
      %v2256 = vpack.c.b16 %v2222, %v2220
      %v2257 = vpack.c.b16 %v2225, %v2223
      %v2258 = vpack.c.b16 %v2226, %v2224
      %2291 = vmatpush.bf16.msra.mxu0 %v2241
      %2292 = vmatpush.bf16.msra.mxu0 %v2239
      %2293 = vmatpush.bf16.msra.mxu0 %v2237
      %2294 = vmatpush.bf16.msra.mxu0 %v2235
      %2295 = vmatpush.bf16.msra.mxu0 %v2233
      %2296 = vmatpush.bf16.msra.mxu0 %v2231
      %2297 = vmatpush.bf16.msra.mxu0 %v2229
      %2298 = vmatpush.bf16.msra.mxu0 %v2227
      %2299 = vmatmul.bf16.gmra.mxu0 %v2075
      %v2300 = vpop.f32.mrf.mxu0
      %v2301 = vadd.f32 %v2127, %v2300
      %v2302 = vpop.f32.mrf.mxu0
      %v2303 = vadd.f32 %v2127, %v2302
      %2304 = vmatmul.bf16.gmra.mxu0 %v2077
      %v2305 = vpop.f32.mrf.mxu0
      %v2306 = vadd.f32 %v2127, %v2305
      %v2307 = vpop.f32.mrf.mxu0
      %v2308 = vadd.f32 %v2127, %v2307
      %2309 = vmatmul.bf16.gmra.mxu0 %v2079
      %v2310 = vpop.f32.mrf.mxu0
      %v2311 = vadd.f32 %v2127, %v2310
      %v2312 = vpop.f32.mrf.mxu0
      %v2313 = vadd.f32 %v2127, %v2312
      %2314 = vmatmul.bf16.gmra.mxu0 %v2081
      %v2315 = vpop.f32.mrf.mxu0
      %v2316 = vadd.f32 %v2127, %v2315
      %v2317 = vpop.f32.mrf.mxu0
      %v2318 = vadd.f32 %v2127, %v2317
      %2319 = vmatmul.bf16.gmra.mxu0 %v2083
      %v2320 = vpop.f32.mrf.mxu0
      %v2321 = vadd.f32 %v2127, %v2320
      %v2322 = vpop.f32.mrf.mxu0
      %v2323 = vadd.f32 %v2127, %v2322
      %2324 = vmatmul.bf16.gmra.mxu0 %v2085
      %v2325 = vpop.f32.mrf.mxu0
      %v2326 = vadd.f32 %v2127, %v2325
      %v2327 = vpop.f32.mrf.mxu0
      %v2328 = vadd.f32 %v2127, %v2327
      %2329 = vmatmul.bf16.gmra.mxu0 %v2087
      %v2330 = vpop.f32.mrf.mxu0
      %v2331 = vadd.f32 %v2127, %v2330
      %v2332 = vpop.f32.mrf.mxu0
      %v2333 = vadd.f32 %v2127, %v2332
      %2334 = vmatmul.bf16.gmra.mxu0 %v2089
      %v2335 = vpop.f32.mrf.mxu0
      %v2336 = vadd.f32 %v2127, %v2335
      %v2337 = vpop.f32.mrf.mxu0
      %v2338 = vadd.f32 %v2127, %v2337
      %2339 = vdwg.mxu0
      %2340 = vmatpush.bf16.msra.mxu0 %v2257
      %2341 = vmatpush.bf16.msra.mxu0 %v2255
      %2342 = vmatpush.bf16.msra.mxu0 %v2253
      %2343 = vmatpush.bf16.msra.mxu0 %v2251
      %2344 = vmatpush.bf16.msra.mxu0 %v2249
      %2345 = vmatpush.bf16.msra.mxu0 %v2247
      %2346 = vmatpush.bf16.msra.mxu0 %v2245
      %2347 = vmatpush.bf16.msra.mxu0 %v2243
      %2348 = vmatmul.bf16.gmra.mxu0 %v2076
      %v2349 = vpop.f32.mrf.mxu0
      %v2350 = vadd.f32 %v2301, %v2349
      %v2351 = vpop.f32.mrf.mxu0
      %v2352 = vadd.f32 %v2303, %v2351
      %2353 = vmatmul.bf16.gmra.mxu0 %v2078
      %v2354 = vpop.f32.mrf.mxu0
      %v2355 = vadd.f32 %v2306, %v2354
      %v2356 = vpop.f32.mrf.mxu0
      %v2357 = vadd.f32 %v2308, %v2356
      %2358 = vmatmul.bf16.gmra.mxu0 %v2080
      %v2359 = vpop.f32.mrf.mxu0
      %v2360 = vadd.f32 %v2311, %v2359
      %v2361 = vpop.f32.mrf.mxu0
      %v2362 = vadd.f32 %v2313, %v2361
      %2363 = vmatmul.bf16.gmra.mxu0 %v2082
      %v2364 = vpop.f32.mrf.mxu0
      %v2365 = vadd.f32 %v2316, %v2364
      %v2366 = vpop.f32.mrf.mxu0
      %v2367 = vadd.f32 %v2318, %v2366
      %2368 = vmatmul.bf16.gmra.mxu0 %v2084
      %v2369 = vpop.f32.mrf.mxu0
      %v2370 = vadd.f32 %v2321, %v2369
      %v2371 = vpop.f32.mrf.mxu0
      %v2372 = vadd.f32 %v2323, %v2371
      %2373 = vmatmul.bf16.gmra.mxu0 %v2086
      %v2374 = vpop.f32.mrf.mxu0
      %v2375 = vadd.f32 %v2326, %v2374
      %v2376 = vpop.f32.mrf.mxu0
      %v2377 = vadd.f32 %v2328, %v2376
      %2378 = vmatmul.bf16.gmra.mxu0 %v2088
      %v2379 = vpop.f32.mrf.mxu0
      %v2380 = vadd.f32 %v2331, %v2379
      %v2381 = vpop.f32.mrf.mxu0
      %v2382 = vadd.f32 %v2333, %v2381
      %2383 = vmatmul.bf16.gmra.mxu0 %v2090
      %v2384 = vpop.f32.mrf.mxu0
      %v2385 = vadd.f32 %v2336, %v2384
      %v2386 = vpop.f32.mrf.mxu0
      %v2387 = vadd.f32 %v2338, %v2386
      %2388 = vdwg.mxu0
      %2389 = vmatpush.bf16.msra.mxu0 %v2242
      %2390 = vmatpush.bf16.msra.mxu0 %v2240
      %2391 = vmatpush.bf16.msra.mxu0 %v2238
      %2392 = vmatpush.bf16.msra.mxu0 %v2236
      %2393 = vmatpush.bf16.msra.mxu0 %v2234
      %2394 = vmatpush.bf16.msra.mxu0 %v2232
      %2395 = vmatpush.bf16.msra.mxu0 %v2230
      %2396 = vmatpush.bf16.msra.mxu0 %v2228
      %2397 = vmatmul.bf16.gmra.mxu0 %v2075
      %v2398 = vpop.f32.mrf.mxu0
      %v2399 = vadd.f32 %v2128, %v2398
      %v2400 = vpop.f32.mrf.mxu0
      %v2401 = vadd.f32 %v2128, %v2400
      %2402 = vmatmul.bf16.gmra.mxu0 %v2077
      %v2403 = vpop.f32.mrf.mxu0
      %v2404 = vadd.f32 %v2128, %v2403
      %v2405 = vpop.f32.mrf.mxu0
      %v2406 = vadd.f32 %v2128, %v2405
      %2407 = vmatmul.bf16.gmra.mxu0 %v2079
      %v2408 = vpop.f32.mrf.mxu0
      %v2409 = vadd.f32 %v2128, %v2408
      %v2410 = vpop.f32.mrf.mxu0
      %v2411 = vadd.f32 %v2128, %v2410
      %2412 = vmatmul.bf16.gmra.mxu0 %v2081
      %v2413 = vpop.f32.mrf.mxu0
      %v2414 = vadd.f32 %v2128, %v2413
      %v2415 = vpop.f32.mrf.mxu0
      %v2416 = vadd.f32 %v2128, %v2415
      %2417 = vmatmul.bf16.gmra.mxu0 %v2083
      %v2418 = vpop.f32.mrf.mxu0
      %v2419 = vadd.f32 %v2128, %v2418
      %v2420 = vpop.f32.mrf.mxu0
      %v2421 = vadd.f32 %v2128, %v2420
      %2422 = vmatmul.bf16.gmra.mxu0 %v2085
      %v2423 = vpop.f32.mrf.mxu0
      %v2424 = vadd.f32 %v2128, %v2423
      %v2425 = vpop.f32.mrf.mxu0
      %v2426 = vadd.f32 %v2128, %v2425
      %2427 = vmatmul.bf16.gmra.mxu0 %v2087
      %v2428 = vpop.f32.mrf.mxu0
      %v2429 = vadd.f32 %v2128, %v2428
      %v2430 = vpop.f32.mrf.mxu0
      %v2431 = vadd.f32 %v2128, %v2430
      %2432 = vmatmul.bf16.gmra.mxu0 %v2089
      %v2433 = vpop.f32.mrf.mxu0
      %v2434 = vadd.f32 %v2128, %v2433
      %v2435 = vpop.f32.mrf.mxu0
      %v2436 = vadd.f32 %v2128, %v2435
      %2437 = vdwg.mxu0
      %2438 = vmatpush.bf16.msra.mxu0 %v2258
      %2439 = vmatpush.bf16.msra.mxu0 %v2256
      %2440 = vmatpush.bf16.msra.mxu0 %v2254
      %2441 = vmatpush.bf16.msra.mxu0 %v2252
      %2442 = vmatpush.bf16.msra.mxu0 %v2250
      %2443 = vmatpush.bf16.msra.mxu0 %v2248
      %2444 = vmatpush.bf16.msra.mxu0 %v2246
      %2445 = vmatpush.bf16.msra.mxu0 %v2244
      %2446 = vmatmul.bf16.gmra.mxu0 %v2076
      %v2447 = vpop.f32.mrf.mxu0
      %v2448 = vadd.f32 %v2399, %v2447
      %v2449 = vpop.f32.mrf.mxu0
      %v2450 = vadd.f32 %v2401, %v2449
      %2451 = vmatmul.bf16.gmra.mxu0 %v2078
      %v2452 = vpop.f32.mrf.mxu0
      %v2453 = vadd.f32 %v2404, %v2452
      %v2454 = vpop.f32.mrf.mxu0
      %v2455 = vadd.f32 %v2406, %v2454
      %2456 = vmatmul.bf16.gmra.mxu0 %v2080
      %v2457 = vpop.f32.mrf.mxu0
      %v2458 = vadd.f32 %v2409, %v2457
      %v2459 = vpop.f32.mrf.mxu0
      %v2460 = vadd.f32 %v2411, %v2459
      %2461 = vmatmul.bf16.gmra.mxu0 %v2082
      %v2462 = vpop.f32.mrf.mxu0
      %v2463 = vadd.f32 %v2414, %v2462
      %v2464 = vpop.f32.mrf.mxu0
      %v2465 = vadd.f32 %v2416, %v2464
      %2466 = vmatmul.bf16.gmra.mxu0 %v2084
      %v2467 = vpop.f32.mrf.mxu0
      %v2468 = vadd.f32 %v2419, %v2467
      %v2469 = vpop.f32.mrf.mxu0
      %v2470 = vadd.f32 %v2421, %v2469
      %2471 = vmatmul.bf16.gmra.mxu0 %v2086
      %v2472 = vpop.f32.mrf.mxu0
      %v2473 = vadd.f32 %v2424, %v2472
      %v2474 = vpop.f32.mrf.mxu0
      %v2475 = vadd.f32 %v2426, %v2474
      %2476 = vmatmul.bf16.gmra.mxu0 %v2088
      %v2477 = vpop.f32.mrf.mxu0
      %v2478 = vadd.f32 %v2429, %v2477
      %v2479 = vpop.f32.mrf.mxu0
      %v2480 = vadd.f32 %v2431, %v2479
      %2481 = vmatmul.bf16.gmra.mxu0 %v2090
      %v2482 = vpop.f32.mrf.mxu0
      %v2483 = vadd.f32 %v2434, %v2482
      %v2484 = vpop.f32.mrf.mxu0
      %v2485 = vadd.f32 %v2436, %v2484
      %2486 = vdwg.mxu0
      %v2487 = vmul.f32 %v2350, 0.5
      %v2488 = vmul.f32 %v2448, 0.5
      %v2489 = vmul.f32 %v2352, 0.5
      %v2490 = vmul.f32 %v2450, 0.5
      %v2491 = vmul.f32 %v2355, 0.5
      %v2492 = vmul.f32 %v2453, 0.5
      %v2493 = vmul.f32 %v2357, 0.5
      %v2494 = vmul.f32 %v2455, 0.5
      %v2495 = vmul.f32 %v2360, 0.5
      %v2496 = vmul.f32 %v2458, 0.5
      %v2497 = vmul.f32 %v2362, 0.5
      %v2498 = vmul.f32 %v2460, 0.5
      %v2499 = vmul.f32 %v2365, 0.5
      %v2500 = vmul.f32 %v2463, 0.5
      %v2501 = vmul.f32 %v2367, 0.5
      %v2502 = vmul.f32 %v2465, 0.5
      %v2503 = vmul.f32 %v2370, 0.5
      %v2504 = vmul.f32 %v2468, 0.5
      %v2505 = vmul.f32 %v2372, 0.5
      %v2506 = vmul.f32 %v2470, 0.5
      %v2507 = vmul.f32 %v2375, 0.5
      %v2508 = vmul.f32 %v2473, 0.5
      %v2509 = vmul.f32 %v2377, 0.5
      %v2510 = vmul.f32 %v2475, 0.5
      %v2511 = vmul.f32 %v2380, 0.5
      %v2512 = vmul.f32 %v2478, 0.5
      %v2513 = vmul.f32 %v2382, 0.5
      %v2514 = vmul.f32 %v2480, 0.5
      %v2515 = vmul.f32 %v2385, 0.5
      %v2516 = vmul.f32 %v2483, 0.5
      %v2517 = vmul.f32 %v2387, 0.5
      %v2518 = vmul.f32 %v2485, 0.5
      %v2519 = vmul.f32 %v2350, 0.70710677
      %v2520 = vmul.f32 %v2448, 0.70710677
      %v2521 = vmul.f32 %v2352, 0.70710677
      %v2522 = vmul.f32 %v2450, 0.70710677
      %v2523 = vmul.f32 %v2355, 0.70710677
      %v2524 = vmul.f32 %v2453, 0.70710677
      %v2525 = vmul.f32 %v2357, 0.70710677
      %v2526 = vmul.f32 %v2455, 0.70710677
      %v2527 = vmul.f32 %v2360, 0.70710677
      %v2528 = vmul.f32 %v2458, 0.70710677
      %v2529 = vmul.f32 %v2362, 0.70710677
      %v2530 = vmul.f32 %v2460, 0.70710677
      %v2531 = vmul.f32 %v2365, 0.70710677
      %v2532 = vmul.f32 %v2463, 0.70710677
      %v2533 = vmul.f32 %v2367, 0.70710677
      %v2534 = vmul.f32 %v2465, 0.70710677
      %v2535 = vmul.f32 %v2370, 0.70710677
      %v2536 = vmul.f32 %v2468, 0.70710677
      %v2537 = vmul.f32 %v2372, 0.70710677
      %v2538 = vmul.f32 %v2470, 0.70710677
      %v2539 = vmul.f32 %v2375, 0.70710677
      %v2540 = vmul.f32 %v2473, 0.70710677
      %v2541 = vmul.f32 %v2377, 0.70710677
      %v2542 = vmul.f32 %v2475, 0.70710677
      %v2543 = vmul.f32 %v2380, 0.70710677
      %v2544 = vmul.f32 %v2478, 0.70710677
      %v2545 = vmul.f32 %v2382, 0.70710677
      %v2546 = vmul.f32 %v2480, 0.70710677
      %v2547 = vmul.f32 %v2385, 0.70710677
      %v2548 = vmul.f32 %v2483, 0.70710677
      %v2549 = vmul.f32 %v2387, 0.70710677
      %v2550 = vmul.f32 %v2485, 0.70710677
      %v2551 = vmul.f32 %v2519, %v2519
      %v2552 = vmin.f32 16.0, %v2551
      %v2553 = vmul.f32 %v2552, 2.1237322e-06
      %v2554 = vadd.f32 %v2553, 0.00028619796
      %v2555 = vmul.f32 %v2552, %v2554
      %v2556 = vadd.f32 %v2555, 0.0036580483
      %v2557 = vmul.f32 %v2552, %v2556
      %v2558 = vadd.f32 %v2557, 0.05243302
      %v2559 = vmul.f32 %v2552, %v2558
      %v2560 = vadd.f32 %v2559, 0.18741608
      %v2561 = vmul.f32 %v2552, %v2560
      %v2562 = vadd.f32 %v2561, 1.1283791
      %v2563 = vmul.f32 %v2519, %v2562
      %v2564 = vmul.f32 %v2552, 3.8918573e-05
      %v2565 = vadd.f32 %v2564, 0.001143296
      %v2566 = vmul.f32 %v2552, %v2565
      %v2567 = vadd.f32 %v2566, 0.014752088
      %v2568 = vmul.f32 %v2552, %v2567
      %v2569 = vadd.f32 %v2568, 0.112945676
      %v2570 = vmul.f32 %v2552, %v2569
      %v2571 = vadd.f32 %v2570, 0.4994258
      %v2572 = vmul.f32 %v2552, %v2571
      %v2573 = vadd.f32 %v2572, 1.0
      %v2574 = vrcp.pop %v2573
      %v2575 = vmul.f32 %v2573, %v2574
      %v2576 = vsub.f32 1.0, %v2575
      %v2577 = vmul.f32 %v2574, %v2576
      %v2578 = vadd.f32 %v2574, %v2577
      %vm2579 = vweird.f32 %v2573
      %vm2580 = vweird.f32 %v2574
      %vm2581 = vmor %vm2579, %vm2580
      %v2582 = vsel %vm2581, %v2574, %v2578
      %v2583 = vand.u32 2147483647, %v2573
      %vm2584 = vcmp.eq.f32.partialorder %v2583, 8.507059e+37
      %v2585 = vand.u32 %v2573, 2147483648
      %v2586 = vor.u32 1.1754944e-38, %v2585
      %v2587 = vsel %vm2584, %v2586, %v2582
      %v2588 = vmul.f32 %v2563, %v2587
      %v2589 = vmin.f32 %v2588, 1.0
      %v2590 = vmax.f32 %v2589, -1.0
      %v2591 = vmul.f32 %v2520, %v2520
      %v2592 = vmin.f32 16.0, %v2591
      %v2593 = vmul.f32 %v2592, 2.1237322e-06
      %v2594 = vadd.f32 %v2593, 0.00028619796
      %v2595 = vmul.f32 %v2592, %v2594
      %v2596 = vadd.f32 %v2595, 0.0036580483
      %v2597 = vmul.f32 %v2592, %v2596
      %v2598 = vadd.f32 %v2597, 0.05243302
      %v2599 = vmul.f32 %v2592, %v2598
      %v2600 = vadd.f32 %v2599, 0.18741608
      %v2601 = vmul.f32 %v2592, %v2600
      %v2602 = vadd.f32 %v2601, 1.1283791
      %v2603 = vmul.f32 %v2520, %v2602
      %v2604 = vmul.f32 %v2592, 3.8918573e-05
      %v2605 = vadd.f32 %v2604, 0.001143296
      %v2606 = vmul.f32 %v2592, %v2605
      %v2607 = vadd.f32 %v2606, 0.014752088
      %v2608 = vmul.f32 %v2592, %v2607
      %v2609 = vadd.f32 %v2608, 0.112945676
      %v2610 = vmul.f32 %v2592, %v2609
      %v2611 = vadd.f32 %v2610, 0.4994258
      %v2612 = vmul.f32 %v2592, %v2611
      %v2613 = vadd.f32 %v2612, 1.0
      %v2614 = vrcp.pop %v2613
      %v2615 = vmul.f32 %v2613, %v2614
      %v2616 = vsub.f32 1.0, %v2615
      %v2617 = vmul.f32 %v2614, %v2616
      %v2618 = vadd.f32 %v2614, %v2617
      %vm2619 = vweird.f32 %v2613
      %vm2620 = vweird.f32 %v2614
      %vm2621 = vmor %vm2619, %vm2620
      %v2622 = vsel %vm2621, %v2614, %v2618
      %v2623 = vand.u32 2147483647, %v2613
      %vm2624 = vcmp.eq.f32.partialorder %v2623, 8.507059e+37
      %v2625 = vand.u32 %v2613, 2147483648
      %v2626 = vor.u32 1.1754944e-38, %v2625
      %v2627 = vsel %vm2624, %v2626, %v2622
      %v2628 = vmul.f32 %v2603, %v2627
      %v2629 = vmin.f32 %v2628, 1.0
      %v2630 = vmax.f32 %v2629, -1.0
      %v2631 = vmul.f32 %v2521, %v2521
      %v2632 = vmin.f32 16.0, %v2631
      %v2633 = vmul.f32 %v2632, 2.1237322e-06
      %v2634 = vadd.f32 %v2633, 0.00028619796
      %v2635 = vmul.f32 %v2632, %v2634
      %v2636 = vadd.f32 %v2635, 0.0036580483
      %v2637 = vmul.f32 %v2632, %v2636
      %v2638 = vadd.f32 %v2637, 0.05243302
      %v2639 = vmul.f32 %v2632, %v2638
      %v2640 = vadd.f32 %v2639, 0.18741608
      %v2641 = vmul.f32 %v2632, %v2640
      %v2642 = vadd.f32 %v2641, 1.1283791
      %v2643 = vmul.f32 %v2521, %v2642
      %v2644 = vmul.f32 %v2632, 3.8918573e-05
      %v2645 = vadd.f32 %v2644, 0.001143296
      %v2646 = vmul.f32 %v2632, %v2645
      %v2647 = vadd.f32 %v2646, 0.014752088
      %v2648 = vmul.f32 %v2632, %v2647
      %v2649 = vadd.f32 %v2648, 0.112945676
      %v2650 = vmul.f32 %v2632, %v2649
      %v2651 = vadd.f32 %v2650, 0.4994258
      %v2652 = vmul.f32 %v2632, %v2651
      %v2653 = vadd.f32 %v2652, 1.0
      %v2654 = vrcp.pop %v2653
      %v2655 = vmul.f32 %v2653, %v2654
      %v2656 = vsub.f32 1.0, %v2655
      %v2657 = vmul.f32 %v2654, %v2656
      %v2658 = vadd.f32 %v2654, %v2657
      %vm2659 = vweird.f32 %v2653
      %vm2660 = vweird.f32 %v2654
      %vm2661 = vmor %vm2659, %vm2660
      %v2662 = vsel %vm2661, %v2654, %v2658
      %v2663 = vand.u32 2147483647, %v2653
      %vm2664 = vcmp.eq.f32.partialorder %v2663, 8.507059e+37
      %v2665 = vand.u32 %v2653, 2147483648
      %v2666 = vor.u32 1.1754944e-38, %v2665
      %v2667 = vsel %vm2664, %v2666, %v2662
      %v2668 = vmul.f32 %v2643, %v2667
      %v2669 = vmin.f32 %v2668, 1.0
      %v2670 = vmax.f32 %v2669, -1.0
      %v2671 = vmul.f32 %v2522, %v2522
      %v2672 = vmin.f32 16.0, %v2671
      %v2673 = vmul.f32 %v2672, 2.1237322e-06
      %v2674 = vadd.f32 %v2673, 0.00028619796
      %v2675 = vmul.f32 %v2672, %v2674
      %v2676 = vadd.f32 %v2675, 0.0036580483
      %v2677 = vmul.f32 %v2672, %v2676
      %v2678 = vadd.f32 %v2677, 0.05243302
      %v2679 = vmul.f32 %v2672, %v2678
      %v2680 = vadd.f32 %v2679, 0.18741608
      %v2681 = vmul.f32 %v2672, %v2680
      %v2682 = vadd.f32 %v2681, 1.1283791
      %v2683 = vmul.f32 %v2522, %v2682
      %v2684 = vmul.f32 %v2672, 3.8918573e-05
      %v2685 = vadd.f32 %v2684, 0.001143296
      %v2686 = vmul.f32 %v2672, %v2685
      %v2687 = vadd.f32 %v2686, 0.014752088
      %v2688 = vmul.f32 %v2672, %v2687
      %v2689 = vadd.f32 %v2688, 0.112945676
      %v2690 = vmul.f32 %v2672, %v2689
      %v2691 = vadd.f32 %v2690, 0.4994258
      %v2692 = vmul.f32 %v2672, %v2691
      %v2693 = vadd.f32 %v2692, 1.0
      %v2694 = vrcp.pop %v2693
      %v2695 = vmul.f32 %v2693, %v2694
      %v2696 = vsub.f32 1.0, %v2695
      %v2697 = vmul.f32 %v2694, %v2696
      %v2698 = vadd.f32 %v2694, %v2697
      %vm2699 = vweird.f32 %v2693
      %vm2700 = vweird.f32 %v2694
      %vm2701 = vmor %vm2699, %vm2700
      %v2702 = vsel %vm2701, %v2694, %v2698
      %v2703 = vand.u32 2147483647, %v2693
      %vm2704 = vcmp.eq.f32.partialorder %v2703, 8.507059e+37
      %v2705 = vand.u32 %v2693, 2147483648
      %v2706 = vor.u32 1.1754944e-38, %v2705
      %v2707 = vsel %vm2704, %v2706, %v2702
      %v2708 = vmul.f32 %v2683, %v2707
      %v2709 = vmin.f32 %v2708, 1.0
      %v2710 = vmax.f32 %v2709, -1.0
      %v2711 = vmul.f32 %v2523, %v2523
      %v2712 = vmin.f32 16.0, %v2711
      %v2713 = vmul.f32 %v2712, 2.1237322e-06
      %v2714 = vadd.f32 %v2713, 0.00028619796
      %v2715 = vmul.f32 %v2712, %v2714
      %v2716 = vadd.f32 %v2715, 0.0036580483
      %v2717 = vmul.f32 %v2712, %v2716
      %v2718 = vadd.f32 %v2717, 0.05243302
      %v2719 = vmul.f32 %v2712, %v2718
      %v2720 = vadd.f32 %v2719, 0.18741608
      %v2721 = vmul.f32 %v2712, %v2720
      %v2722 = vadd.f32 %v2721, 1.1283791
      %v2723 = vmul.f32 %v2523, %v2722
      %v2724 = vmul.f32 %v2712, 3.8918573e-05
      %v2725 = vadd.f32 %v2724, 0.001143296
      %v2726 = vmul.f32 %v2712, %v2725
      %v2727 = vadd.f32 %v2726, 0.014752088
      %v2728 = vmul.f32 %v2712, %v2727
      %v2729 = vadd.f32 %v2728, 0.112945676
      %v2730 = vmul.f32 %v2712, %v2729
      %v2731 = vadd.f32 %v2730, 0.4994258
      %v2732 = vmul.f32 %v2712, %v2731
      %v2733 = vadd.f32 %v2732, 1.0
      %v2734 = vrcp.pop %v2733
      %v2735 = vmul.f32 %v2733, %v2734
      %v2736 = vsub.f32 1.0, %v2735
      %v2737 = vmul.f32 %v2734, %v2736
      %v2738 = vadd.f32 %v2734, %v2737
      %vm2739 = vweird.f32 %v2733
      %vm2740 = vweird.f32 %v2734
      %vm2741 = vmor %vm2739, %vm2740
      %v2742 = vsel %vm2741, %v2734, %v2738
      %v2743 = vand.u32 2147483647, %v2733
      %vm2744 = vcmp.eq.f32.partialorder %v2743, 8.507059e+37
      %v2745 = vand.u32 %v2733, 2147483648
      %v2746 = vor.u32 1.1754944e-38, %v2745
      %v2747 = vsel %vm2744, %v2746, %v2742
      %v2748 = vmul.f32 %v2723, %v2747
      %v2749 = vmin.f32 %v2748, 1.0
      %v2750 = vmax.f32 %v2749, -1.0
      %v2751 = vmul.f32 %v2524, %v2524
      %v2752 = vmin.f32 16.0, %v2751
      %v2753 = vmul.f32 %v2752, 2.1237322e-06
      %v2754 = vadd.f32 %v2753, 0.00028619796
      %v2755 = vmul.f32 %v2752, %v2754
      %v2756 = vadd.f32 %v2755, 0.0036580483
      %v2757 = vmul.f32 %v2752, %v2756
      %v2758 = vadd.f32 %v2757, 0.05243302
      %v2759 = vmul.f32 %v2752, %v2758
      %v2760 = vadd.f32 %v2759, 0.18741608
      %v2761 = vmul.f32 %v2752, %v2760
      %v2762 = vadd.f32 %v2761, 1.1283791
      %v2763 = vmul.f32 %v2524, %v2762
      %v2764 = vmul.f32 %v2752, 3.8918573e-05
      %v2765 = vadd.f32 %v2764, 0.001143296
      %v2766 = vmul.f32 %v2752, %v2765
      %v2767 = vadd.f32 %v2766, 0.014752088
      %v2768 = vmul.f32 %v2752, %v2767
      %v2769 = vadd.f32 %v2768, 0.112945676
      %v2770 = vmul.f32 %v2752, %v2769
      %v2771 = vadd.f32 %v2770, 0.4994258
      %v2772 = vmul.f32 %v2752, %v2771
      %v2773 = vadd.f32 %v2772, 1.0
      %v2774 = vrcp.pop %v2773
      %v2775 = vmul.f32 %v2773, %v2774
      %v2776 = vsub.f32 1.0, %v2775
      %v2777 = vmul.f32 %v2774, %v2776
      %v2778 = vadd.f32 %v2774, %v2777
      %vm2779 = vweird.f32 %v2773
      %vm2780 = vweird.f32 %v2774
      %vm2781 = vmor %vm2779, %vm2780
      %v2782 = vsel %vm2781, %v2774, %v2778
      %v2783 = vand.u32 2147483647, %v2773
      %vm2784 = vcmp.eq.f32.partialorder %v2783, 8.507059e+37
      %v2785 = vand.u32 %v2773, 2147483648
      %v2786 = vor.u32 1.1754944e-38, %v2785
      %v2787 = vsel %vm2784, %v2786, %v2782
      %v2788 = vmul.f32 %v2763, %v2787
      %v2789 = vmin.f32 %v2788, 1.0
      %v2790 = vmax.f32 %v2789, -1.0
      %v2791 = vmul.f32 %v2525, %v2525
      %v2792 = vmin.f32 16.0, %v2791
      %v2793 = vmul.f32 %v2792, 2.1237322e-06
      %v2794 = vadd.f32 %v2793, 0.00028619796
      %v2795 = vmul.f32 %v2792, %v2794
      %v2796 = vadd.f32 %v2795, 0.0036580483
      %v2797 = vmul.f32 %v2792, %v2796
      %v2798 = vadd.f32 %v2797, 0.05243302
      %v2799 = vmul.f32 %v2792, %v2798
      %v2800 = vadd.f32 %v2799, 0.18741608
      %v2801 = vmul.f32 %v2792, %v2800
      %v2802 = vadd.f32 %v2801, 1.1283791
      %v2803 = vmul.f32 %v2525, %v2802
      %v2804 = vmul.f32 %v2792, 3.8918573e-05
      %v2805 = vadd.f32 %v2804, 0.001143296
      %v2806 = vmul.f32 %v2792, %v2805
      %v2807 = vadd.f32 %v2806, 0.014752088
      %v2808 = vmul.f32 %v2792, %v2807
      %v2809 = vadd.f32 %v2808, 0.112945676
      %v2810 = vmul.f32 %v2792, %v2809
      %v2811 = vadd.f32 %v2810, 0.4994258
      %v2812 = vmul.f32 %v2792, %v2811
      %v2813 = vadd.f32 %v2812, 1.0
      %v2814 = vrcp.pop %v2813
      %v2815 = vmul.f32 %v2813, %v2814
      %v2816 = vsub.f32 1.0, %v2815
      %v2817 = vmul.f32 %v2814, %v2816
      %v2818 = vadd.f32 %v2814, %v2817
      %vm2819 = vweird.f32 %v2813
      %vm2820 = vweird.f32 %v2814
      %vm2821 = vmor %vm2819, %vm2820
      %v2822 = vsel %vm2821, %v2814, %v2818
      %v2823 = vand.u32 2147483647, %v2813
      %vm2824 = vcmp.eq.f32.partialorder %v2823, 8.507059e+37
      %v2825 = vand.u32 %v2813, 2147483648
      %v2826 = vor.u32 1.1754944e-38, %v2825
      %v2827 = vsel %vm2824, %v2826, %v2822
      %v2828 = vmul.f32 %v2803, %v2827
      %v2829 = vmin.f32 %v2828, 1.0
      %v2830 = vmax.f32 %v2829, -1.0
      %v2831 = vmul.f32 %v2526, %v2526
      %v2832 = vmin.f32 16.0, %v2831
      %v2833 = vmul.f32 %v2832, 2.1237322e-06
      %v2834 = vadd.f32 %v2833, 0.00028619796
      %v2835 = vmul.f32 %v2832, %v2834
      %v2836 = vadd.f32 %v2835, 0.0036580483
      %v2837 = vmul.f32 %v2832, %v2836
      %v2838 = vadd.f32 %v2837, 0.05243302
      %v2839 = vmul.f32 %v2832, %v2838
      %v2840 = vadd.f32 %v2839, 0.18741608
      %v2841 = vmul.f32 %v2832, %v2840
      %v2842 = vadd.f32 %v2841, 1.1283791
      %v2843 = vmul.f32 %v2526, %v2842
      %v2844 = vmul.f32 %v2832, 3.8918573e-05
      %v2845 = vadd.f32 %v2844, 0.001143296
      %v2846 = vmul.f32 %v2832, %v2845
      %v2847 = vadd.f32 %v2846, 0.014752088
      %v2848 = vmul.f32 %v2832, %v2847
      %v2849 = vadd.f32 %v2848, 0.112945676
      %v2850 = vmul.f32 %v2832, %v2849
      %v2851 = vadd.f32 %v2850, 0.4994258
      %v2852 = vmul.f32 %v2832, %v2851
      %v2853 = vadd.f32 %v2852, 1.0
      %v2854 = vrcp.pop %v2853
      %v2855 = vmul.f32 %v2853, %v2854
      %v2856 = vsub.f32 1.0, %v2855
      %v2857 = vmul.f32 %v2854, %v2856
      %v2858 = vadd.f32 %v2854, %v2857
      %vm2859 = vweird.f32 %v2853
      %vm2860 = vweird.f32 %v2854
      %vm2861 = vmor %vm2859, %vm2860
      %v2862 = vsel %vm2861, %v2854, %v2858
      %v2863 = vand.u32 2147483647, %v2853
      %vm2864 = vcmp.eq.f32.partialorder %v2863, 8.507059e+37
      %v2865 = vand.u32 %v2853, 2147483648
      %v2866 = vor.u32 1.1754944e-38, %v2865
      %v2867 = vsel %vm2864, %v2866, %v2862
      %v2868 = vmul.f32 %v2843, %v2867
      %v2869 = vmin.f32 %v2868, 1.0
      %v2870 = vmax.f32 %v2869, -1.0
      %v2871 = vmul.f32 %v2527, %v2527
      %v2872 = vmin.f32 16.0, %v2871
      %v2873 = vmul.f32 %v2872, 2.1237322e-06
      %v2874 = vadd.f32 %v2873, 0.00028619796
      %v2875 = vmul.f32 %v2872, %v2874
      %v2876 = vadd.f32 %v2875, 0.0036580483
      %v2877 = vmul.f32 %v2872, %v2876
      %v2878 = vadd.f32 %v2877, 0.05243302
      %v2879 = vmul.f32 %v2872, %v2878
      %v2880 = vadd.f32 %v2879, 0.18741608
      %v2881 = vmul.f32 %v2872, %v2880
      %v2882 = vadd.f32 %v2881, 1.1283791
      %v2883 = vmul.f32 %v2527, %v2882
      %v2884 = vmul.f32 %v2872, 3.8918573e-05
      %v2885 = vadd.f32 %v2884, 0.001143296
      %v2886 = vmul.f32 %v2872, %v2885
      %v2887 = vadd.f32 %v2886, 0.014752088
      %v2888 = vmul.f32 %v2872, %v2887
      %v2889 = vadd.f32 %v2888, 0.112945676
      %v2890 = vmul.f32 %v2872, %v2889
      %v2891 = vadd.f32 %v2890, 0.4994258
      %v2892 = vmul.f32 %v2872, %v2891
      %v2893 = vadd.f32 %v2892, 1.0
      %v2894 = vrcp.pop %v2893
      %v2895 = vmul.f32 %v2893, %v2894
      %v2896 = vsub.f32 1.0, %v2895
      %v2897 = vmul.f32 %v2894, %v2896
      %v2898 = vadd.f32 %v2894, %v2897
      %vm2899 = vweird.f32 %v2893
      %vm2900 = vweird.f32 %v2894
      %vm2901 = vmor %vm2899, %vm2900
      %v2902 = vsel %vm2901, %v2894, %v2898
      %v2903 = vand.u32 2147483647, %v2893
      %vm2904 = vcmp.eq.f32.partialorder %v2903, 8.507059e+37
      %v2905 = vand.u32 %v2893, 2147483648
      %v2906 = vor.u32 1.1754944e-38, %v2905
      %v2907 = vsel %vm2904, %v2906, %v2902
      %v2908 = vmul.f32 %v2883, %v2907
      %v2909 = vmin.f32 %v2908, 1.0
      %v2910 = vmax.f32 %v2909, -1.0
      %v2911 = vmul.f32 %v2528, %v2528
      %v2912 = vmin.f32 16.0, %v2911
      %v2913 = vmul.f32 %v2912, 2.1237322e-06
      %v2914 = vadd.f32 %v2913, 0.00028619796
      %v2915 = vmul.f32 %v2912, %v2914
      %v2916 = vadd.f32 %v2915, 0.0036580483
      %v2917 = vmul.f32 %v2912, %v2916
      %v2918 = vadd.f32 %v2917, 0.05243302
      %v2919 = vmul.f32 %v2912, %v2918
      %v2920 = vadd.f32 %v2919, 0.18741608
      %v2921 = vmul.f32 %v2912, %v2920
      %v2922 = vadd.f32 %v2921, 1.1283791
      %v2923 = vmul.f32 %v2528, %v2922
      %v2924 = vmul.f32 %v2912, 3.8918573e-05
      %v2925 = vadd.f32 %v2924, 0.001143296
      %v2926 = vmul.f32 %v2912, %v2925
      %v2927 = vadd.f32 %v2926, 0.014752088
      %v2928 = vmul.f32 %v2912, %v2927
      %v2929 = vadd.f32 %v2928, 0.112945676
      %v2930 = vmul.f32 %v2912, %v2929
      %v2931 = vadd.f32 %v2930, 0.4994258
      %v2932 = vmul.f32 %v2912, %v2931
      %v2933 = vadd.f32 %v2932, 1.0
      %v2934 = vrcp.pop %v2933
      %v2935 = vmul.f32 %v2933, %v2934
      %v2936 = vsub.f32 1.0, %v2935
      %v2937 = vmul.f32 %v2934, %v2936
      %v2938 = vadd.f32 %v2934, %v2937
      %vm2939 = vweird.f32 %v2933
      %vm2940 = vweird.f32 %v2934
      %vm2941 = vmor %vm2939, %vm2940
      %v2942 = vsel %vm2941, %v2934, %v2938
      %v2943 = vand.u32 2147483647, %v2933
      %vm2944 = vcmp.eq.f32.partialorder %v2943, 8.507059e+37
      %v2945 = vand.u32 %v2933, 2147483648
      %v2946 = vor.u32 1.1754944e-38, %v2945
      %v2947 = vsel %vm2944, %v2946, %v2942
      %v2948 = vmul.f32 %v2923, %v2947
      %v2949 = vmin.f32 %v2948, 1.0
      %v2950 = vmax.f32 %v2949, -1.0
      %v2951 = vmul.f32 %v2529, %v2529
      %v2952 = vmin.f32 16.0, %v2951
      %v2953 = vmul.f32 %v2952, 2.1237322e-06
      %v2954 = vadd.f32 %v2953, 0.00028619796
      %v2955 = vmul.f32 %v2952, %v2954
      %v2956 = vadd.f32 %v2955, 0.0036580483
      %v2957 = vmul.f32 %v2952, %v2956
      %v2958 = vadd.f32 %v2957, 0.05243302
      %v2959 = vmul.f32 %v2952, %v2958
      %v2960 = vadd.f32 %v2959, 0.18741608
      %v2961 = vmul.f32 %v2952, %v2960
      %v2962 = vadd.f32 %v2961, 1.1283791
      %v2963 = vmul.f32 %v2529, %v2962
      %v2964 = vmul.f32 %v2952, 3.8918573e-05
      %v2965 = vadd.f32 %v2964, 0.001143296
      %v2966 = vmul.f32 %v2952, %v2965
      %v2967 = vadd.f32 %v2966, 0.014752088
      %v2968 = vmul.f32 %v2952, %v2967
      %v2969 = vadd.f32 %v2968, 0.112945676
      %v2970 = vmul.f32 %v2952, %v2969
      %v2971 = vadd.f32 %v2970, 0.4994258
      %v2972 = vmul.f32 %v2952, %v2971
      %v2973 = vadd.f32 %v2972, 1.0
      %v2974 = vrcp.pop %v2973
      %v2975 = vmul.f32 %v2973, %v2974
      %v2976 = vsub.f32 1.0, %v2975
      %v2977 = vmul.f32 %v2974, %v2976
      %v2978 = vadd.f32 %v2974, %v2977
      %vm2979 = vweird.f32 %v2973
      %vm2980 = vweird.f32 %v2974
      %vm2981 = vmor %vm2979, %vm2980
      %v2982 = vsel %vm2981, %v2974, %v2978
      %v2983 = vand.u32 2147483647, %v2973
      %vm2984 = vcmp.eq.f32.partialorder %v2983, 8.507059e+37
      %v2985 = vand.u32 %v2973, 2147483648
      %v2986 = vor.u32 1.1754944e-38, %v2985
      %v2987 = vsel %vm2984, %v2986, %v2982
      %v2988 = vmul.f32 %v2963, %v2987
      %v2989 = vmin.f32 %v2988, 1.0
      %v2990 = vmax.f32 %v2989, -1.0
      %v2991 = vmul.f32 %v2530, %v2530
      %v2992 = vmin.f32 16.0, %v2991
      %v2993 = vmul.f32 %v2992, 2.1237322e-06
      %v2994 = vadd.f32 %v2993, 0.00028619796
      %v2995 = vmul.f32 %v2992, %v2994
      %v2996 = vadd.f32 %v2995, 0.0036580483
      %v2997 = vmul.f32 %v2992, %v2996
      %v2998 = vadd.f32 %v2997, 0.05243302
      %v2999 = vmul.f32 %v2992, %v2998
      %v3000 = vadd.f32 %v2999, 0.18741608
      %v3001 = vmul.f32 %v2992, %v3000
      %v3002 = vadd.f32 %v3001, 1.1283791
      %v3003 = vmul.f32 %v2530, %v3002
      %v3004 = vmul.f32 %v2992, 3.8918573e-05
      %v3005 = vadd.f32 %v3004, 0.001143296
      %v3006 = vmul.f32 %v2992, %v3005
      %v3007 = vadd.f32 %v3006, 0.014752088
      %v3008 = vmul.f32 %v2992, %v3007
      %v3009 = vadd.f32 %v3008, 0.112945676
      %v3010 = vmul.f32 %v2992, %v3009
      %v3011 = vadd.f32 %v3010, 0.4994258
      %v3012 = vmul.f32 %v2992, %v3011
      %v3013 = vadd.f32 %v3012, 1.0
      %v3014 = vrcp.pop %v3013
      %v3015 = vmul.f32 %v3013, %v3014
      %v3016 = vsub.f32 1.0, %v3015
      %v3017 = vmul.f32 %v3014, %v3016
      %v3018 = vadd.f32 %v3014, %v3017
      %vm3019 = vweird.f32 %v3013
      %vm3020 = vweird.f32 %v3014
      %vm3021 = vmor %vm3019, %vm3020
      %v3022 = vsel %vm3021, %v3014, %v3018
      %v3023 = vand.u32 2147483647, %v3013
      %vm3024 = vcmp.eq.f32.partialorder %v3023, 8.507059e+37
      %v3025 = vand.u32 %v3013, 2147483648
      %v3026 = vor.u32 1.1754944e-38, %v3025
      %v3027 = vsel %vm3024, %v3026, %v3022
      %v3028 = vmul.f32 %v3003, %v3027
      %v3029 = vmin.f32 %v3028, 1.0
      %v3030 = vmax.f32 %v3029, -1.0
      %v3031 = vmul.f32 %v2531, %v2531
      %v3032 = vmin.f32 16.0, %v3031
      %v3033 = vmul.f32 %v3032, 2.1237322e-06
      %v3034 = vadd.f32 %v3033, 0.00028619796
      %v3035 = vmul.f32 %v3032, %v3034
      %v3036 = vadd.f32 %v3035, 0.0036580483
      %v3037 = vmul.f32 %v3032, %v3036
      %v3038 = vadd.f32 %v3037, 0.05243302
      %v3039 = vmul.f32 %v3032, %v3038
      %v3040 = vadd.f32 %v3039, 0.18741608
      %v3041 = vmul.f32 %v3032, %v3040
      %v3042 = vadd.f32 %v3041, 1.1283791
      %v3043 = vmul.f32 %v2531, %v3042
      %v3044 = vmul.f32 %v3032, 3.8918573e-05
      %v3045 = vadd.f32 %v3044, 0.001143296
      %v3046 = vmul.f32 %v3032, %v3045
      %v3047 = vadd.f32 %v3046, 0.014752088
      %v3048 = vmul.f32 %v3032, %v3047
      %v3049 = vadd.f32 %v3048, 0.112945676
      %v3050 = vmul.f32 %v3032, %v3049
      %v3051 = vadd.f32 %v3050, 0.4994258
      %v3052 = vmul.f32 %v3032, %v3051
      %v3053 = vadd.f32 %v3052, 1.0
      %v3054 = vrcp.pop %v3053
      %v3055 = vmul.f32 %v3053, %v3054
      %v3056 = vsub.f32 1.0, %v3055
      %v3057 = vmul.f32 %v3054, %v3056
      %v3058 = vadd.f32 %v3054, %v3057
      %vm3059 = vweird.f32 %v3053
      %vm3060 = vweird.f32 %v3054
      %vm3061 = vmor %vm3059, %vm3060
      %v3062 = vsel %vm3061, %v3054, %v3058
      %v3063 = vand.u32 2147483647, %v3053
      %vm3064 = vcmp.eq.f32.partialorder %v3063, 8.507059e+37
      %v3065 = vand.u32 %v3053, 2147483648
      %v3066 = vor.u32 1.1754944e-38, %v3065
      %v3067 = vsel %vm3064, %v3066, %v3062
      %v3068 = vmul.f32 %v3043, %v3067
      %v3069 = vmin.f32 %v3068, 1.0
      %v3070 = vmax.f32 %v3069, -1.0
      %v3071 = vmul.f32 %v2532, %v2532
      %v3072 = vmin.f32 16.0, %v3071
      %v3073 = vmul.f32 %v3072, 2.1237322e-06
      %v3074 = vadd.f32 %v3073, 0.00028619796
      %v3075 = vmul.f32 %v3072, %v3074
      %v3076 = vadd.f32 %v3075, 0.0036580483
      %v3077 = vmul.f32 %v3072, %v3076
      %v3078 = vadd.f32 %v3077, 0.05243302
      %v3079 = vmul.f32 %v3072, %v3078
      %v3080 = vadd.f32 %v3079, 0.18741608
      %v3081 = vmul.f32 %v3072, %v3080
      %v3082 = vadd.f32 %v3081, 1.1283791
      %v3083 = vmul.f32 %v2532, %v3082
      %v3084 = vmul.f32 %v3072, 3.8918573e-05
      %v3085 = vadd.f32 %v3084, 0.001143296
      %v3086 = vmul.f32 %v3072, %v3085
      %v3087 = vadd.f32 %v3086, 0.014752088
      %v3088 = vmul.f32 %v3072, %v3087
      %v3089 = vadd.f32 %v3088, 0.112945676
      %v3090 = vmul.f32 %v3072, %v3089
      %v3091 = vadd.f32 %v3090, 0.4994258
      %v3092 = vmul.f32 %v3072, %v3091
      %v3093 = vadd.f32 %v3092, 1.0
      %v3094 = vrcp.pop %v3093
      %v3095 = vmul.f32 %v3093, %v3094
      %v3096 = vsub.f32 1.0, %v3095
      %v3097 = vmul.f32 %v3094, %v3096
      %v3098 = vadd.f32 %v3094, %v3097
      %vm3099 = vweird.f32 %v3093
      %vm3100 = vweird.f32 %v3094
      %vm3101 = vmor %vm3099, %vm3100
      %v3102 = vsel %vm3101, %v3094, %v3098
      %v3103 = vand.u32 2147483647, %v3093
      %vm3104 = vcmp.eq.f32.partialorder %v3103, 8.507059e+37
      %v3105 = vand.u32 %v3093, 2147483648
      %v3106 = vor.u32 1.1754944e-38, %v3105
      %v3107 = vsel %vm3104, %v3106, %v3102
      %v3108 = vmul.f32 %v3083, %v3107
      %v3109 = vmin.f32 %v3108, 1.0
      %v3110 = vmax.f32 %v3109, -1.0
      %v3111 = vmul.f32 %v2533, %v2533
      %v3112 = vmin.f32 16.0, %v3111
      %v3113 = vmul.f32 %v3112, 2.1237322e-06
      %v3114 = vadd.f32 %v3113, 0.00028619796
      %v3115 = vmul.f32 %v3112, %v3114
      %v3116 = vadd.f32 %v3115, 0.0036580483
      %v3117 = vmul.f32 %v3112, %v3116
      %v3118 = vadd.f32 %v3117, 0.05243302
      %v3119 = vmul.f32 %v3112, %v3118
      %v3120 = vadd.f32 %v3119, 0.18741608
      %v3121 = vmul.f32 %v3112, %v3120
      %v3122 = vadd.f32 %v3121, 1.1283791
      %v3123 = vmul.f32 %v2533, %v3122
      %v3124 = vmul.f32 %v3112, 3.8918573e-05
      %v3125 = vadd.f32 %v3124, 0.001143296
      %v3126 = vmul.f32 %v3112, %v3125
      %v3127 = vadd.f32 %v3126, 0.014752088
      %v3128 = vmul.f32 %v3112, %v3127
      %v3129 = vadd.f32 %v3128, 0.112945676
      %v3130 = vmul.f32 %v3112, %v3129
      %v3131 = vadd.f32 %v3130, 0.4994258
      %v3132 = vmul.f32 %v3112, %v3131
      %v3133 = vadd.f32 %v3132, 1.0
      %v3134 = vrcp.pop %v3133
      %v3135 = vmul.f32 %v3133, %v3134
      %v3136 = vsub.f32 1.0, %v3135
      %v3137 = vmul.f32 %v3134, %v3136
      %v3138 = vadd.f32 %v3134, %v3137
      %vm3139 = vweird.f32 %v3133
      %vm3140 = vweird.f32 %v3134
      %vm3141 = vmor %vm3139, %vm3140
      %v3142 = vsel %vm3141, %v3134, %v3138
      %v3143 = vand.u32 2147483647, %v3133
      %vm3144 = vcmp.eq.f32.partialorder %v3143, 8.507059e+37
      %v3145 = vand.u32 %v3133, 2147483648
      %v3146 = vor.u32 1.1754944e-38, %v3145
      %v3147 = vsel %vm3144, %v3146, %v3142
      %v3148 = vmul.f32 %v3123, %v3147
      %v3149 = vmin.f32 %v3148, 1.0
      %v3150 = vmax.f32 %v3149, -1.0
      %v3151 = vmul.f32 %v2534, %v2534
      %v3152 = vmin.f32 16.0, %v3151
      %v3153 = vmul.f32 %v3152, 2.1237322e-06
      %v3154 = vadd.f32 %v3153, 0.00028619796
      %v3155 = vmul.f32 %v3152, %v3154
      %v3156 = vadd.f32 %v3155, 0.0036580483
      %v3157 = vmul.f32 %v3152, %v3156
      %v3158 = vadd.f32 %v3157, 0.05243302
      %v3159 = vmul.f32 %v3152, %v3158
      %v3160 = vadd.f32 %v3159, 0.18741608
      %v3161 = vmul.f32 %v3152, %v3160
      %v3162 = vadd.f32 %v3161, 1.1283791
      %v3163 = vmul.f32 %v2534, %v3162
      %v3164 = vmul.f32 %v3152, 3.8918573e-05
      %v3165 = vadd.f32 %v3164, 0.001143296
      %v3166 = vmul.f32 %v3152, %v3165
      %v3167 = vadd.f32 %v3166, 0.014752088
      %v3168 = vmul.f32 %v3152, %v3167
      %v3169 = vadd.f32 %v3168, 0.112945676
      %v3170 = vmul.f32 %v3152, %v3169
      %v3171 = vadd.f32 %v3170, 0.4994258
      %v3172 = vmul.f32 %v3152, %v3171
      %v3173 = vadd.f32 %v3172, 1.0
      %v3174 = vrcp.pop %v3173
      %v3175 = vmul.f32 %v3173, %v3174
      %v3176 = vsub.f32 1.0, %v3175
      %v3177 = vmul.f32 %v3174, %v3176
      %v3178 = vadd.f32 %v3174, %v3177
      %vm3179 = vweird.f32 %v3173
      %vm3180 = vweird.f32 %v3174
      %vm3181 = vmor %vm3179, %vm3180
      %v3182 = vsel %vm3181, %v3174, %v3178
      %v3183 = vand.u32 2147483647, %v3173
      %vm3184 = vcmp.eq.f32.partialorder %v3183, 8.507059e+37
      %v3185 = vand.u32 %v3173, 2147483648
      %v3186 = vor.u32 1.1754944e-38, %v3185
      %v3187 = vsel %vm3184, %v3186, %v3182
      %v3188 = vmul.f32 %v3163, %v3187
      %v3189 = vmin.f32 %v3188, 1.0
      %v3190 = vmax.f32 %v3189, -1.0
      %v3191 = vmul.f32 %v2535, %v2535
      %v3192 = vmin.f32 16.0, %v3191
      %v3193 = vmul.f32 %v3192, 2.1237322e-06
      %v3194 = vadd.f32 %v3193, 0.00028619796
      %v3195 = vmul.f32 %v3192, %v3194
      %v3196 = vadd.f32 %v3195, 0.0036580483
      %v3197 = vmul.f32 %v3192, %v3196
      %v3198 = vadd.f32 %v3197, 0.05243302
      %v3199 = vmul.f32 %v3192, %v3198
      %v3200 = vadd.f32 %v3199, 0.18741608
      %v3201 = vmul.f32 %v3192, %v3200
      %v3202 = vadd.f32 %v3201, 1.1283791
      %v3203 = vmul.f32 %v2535, %v3202
      %v3204 = vmul.f32 %v3192, 3.8918573e-05
      %v3205 = vadd.f32 %v3204, 0.001143296
      %v3206 = vmul.f32 %v3192, %v3205
      %v3207 = vadd.f32 %v3206, 0.014752088
      %v3208 = vmul.f32 %v3192, %v3207
      %v3209 = vadd.f32 %v3208, 0.112945676
      %v3210 = vmul.f32 %v3192, %v3209
      %v3211 = vadd.f32 %v3210, 0.4994258
      %v3212 = vmul.f32 %v3192, %v3211
      %v3213 = vadd.f32 %v3212, 1.0
      %v3214 = vrcp.pop %v3213
      %v3215 = vmul.f32 %v3213, %v3214
      %v3216 = vsub.f32 1.0, %v3215
      %v3217 = vmul.f32 %v3214, %v3216
      %v3218 = vadd.f32 %v3214, %v3217
      %vm3219 = vweird.f32 %v3213
      %vm3220 = vweird.f32 %v3214
      %vm3221 = vmor %vm3219, %vm3220
      %v3222 = vsel %vm3221, %v3214, %v3218
      %v3223 = vand.u32 2147483647, %v3213
      %vm3224 = vcmp.eq.f32.partialorder %v3223, 8.507059e+37
      %v3225 = vand.u32 %v3213, 2147483648
      %v3226 = vor.u32 1.1754944e-38, %v3225
      %v3227 = vsel %vm3224, %v3226, %v3222
      %v3228 = vmul.f32 %v3203, %v3227
      %v3229 = vmin.f32 %v3228, 1.0
      %v3230 = vmax.f32 %v3229, -1.0
      %v3231 = vmul.f32 %v2536, %v2536
      %v3232 = vmin.f32 16.0, %v3231
      %v3233 = vmul.f32 %v3232, 2.1237322e-06
      %v3234 = vadd.f32 %v3233, 0.00028619796
      %v3235 = vmul.f32 %v3232, %v3234
      %v3236 = vadd.f32 %v3235, 0.0036580483
      %v3237 = vmul.f32 %v3232, %v3236
      %v3238 = vadd.f32 %v3237, 0.05243302
      %v3239 = vmul.f32 %v3232, %v3238
      %v3240 = vadd.f32 %v3239, 0.18741608
      %v3241 = vmul.f32 %v3232, %v3240
      %v3242 = vadd.f32 %v3241, 1.1283791
      %v3243 = vmul.f32 %v2536, %v3242
      %v3244 = vmul.f32 %v3232, 3.8918573e-05
      %v3245 = vadd.f32 %v3244, 0.001143296
      %v3246 = vmul.f32 %v3232, %v3245
      %v3247 = vadd.f32 %v3246, 0.014752088
      %v3248 = vmul.f32 %v3232, %v3247
      %v3249 = vadd.f32 %v3248, 0.112945676
      %v3250 = vmul.f32 %v3232, %v3249
      %v3251 = vadd.f32 %v3250, 0.4994258
      %v3252 = vmul.f32 %v3232, %v3251
      %v3253 = vadd.f32 %v3252, 1.0
      %v3254 = vrcp.pop %v3253
      %v3255 = vmul.f32 %v3253, %v3254
      %v3256 = vsub.f32 1.0, %v3255
      %v3257 = vmul.f32 %v3254, %v3256
      %v3258 = vadd.f32 %v3254, %v3257
      %vm3259 = vweird.f32 %v3253
      %vm3260 = vweird.f32 %v3254
      %vm3261 = vmor %vm3259, %vm3260
      %v3262 = vsel %vm3261, %v3254, %v3258
      %v3263 = vand.u32 2147483647, %v3253
      %vm3264 = vcmp.eq.f32.partialorder %v3263, 8.507059e+37
      %v3265 = vand.u32 %v3253, 2147483648
      %v3266 = vor.u32 1.1754944e-38, %v3265
      %v3267 = vsel %vm3264, %v3266, %v3262
      %v3268 = vmul.f32 %v3243, %v3267
      %v3269 = vmin.f32 %v3268, 1.0
      %v3270 = vmax.f32 %v3269, -1.0
      %v3271 = vmul.f32 %v2537, %v2537
      %v3272 = vmin.f32 16.0, %v3271
      %v3273 = vmul.f32 %v3272, 2.1237322e-06
      %v3274 = vadd.f32 %v3273, 0.00028619796
      %v3275 = vmul.f32 %v3272, %v3274
      %v3276 = vadd.f32 %v3275, 0.0036580483
      %v3277 = vmul.f32 %v3272, %v3276
      %v3278 = vadd.f32 %v3277, 0.05243302
      %v3279 = vmul.f32 %v3272, %v3278
      %v3280 = vadd.f32 %v3279, 0.18741608
      %v3281 = vmul.f32 %v3272, %v3280
      %v3282 = vadd.f32 %v3281, 1.1283791
      %v3283 = vmul.f32 %v2537, %v3282
      %v3284 = vmul.f32 %v3272, 3.8918573e-05
      %v3285 = vadd.f32 %v3284, 0.001143296
      %v3286 = vmul.f32 %v3272, %v3285
      %v3287 = vadd.f32 %v3286, 0.014752088
      %v3288 = vmul.f32 %v3272, %v3287
      %v3289 = vadd.f32 %v3288, 0.112945676
      %v3290 = vmul.f32 %v3272, %v3289
      %v3291 = vadd.f32 %v3290, 0.4994258
      %v3292 = vmul.f32 %v3272, %v3291
      %v3293 = vadd.f32 %v3292, 1.0
      %v3294 = vrcp.pop %v3293
      %v3295 = vmul.f32 %v3293, %v3294
      %v3296 = vsub.f32 1.0, %v3295
      %v3297 = vmul.f32 %v3294, %v3296
      %v3298 = vadd.f32 %v3294, %v3297
      %vm3299 = vweird.f32 %v3293
      %vm3300 = vweird.f32 %v3294
      %vm3301 = vmor %vm3299, %vm3300
      %v3302 = vsel %vm3301, %v3294, %v3298
      %v3303 = vand.u32 2147483647, %v3293
      %vm3304 = vcmp.eq.f32.partialorder %v3303, 8.507059e+37
      %v3305 = vand.u32 %v3293, 2147483648
      %v3306 = vor.u32 1.1754944e-38, %v3305
      %v3307 = vsel %vm3304, %v3306, %v3302
      %v3308 = vmul.f32 %v3283, %v3307
      %v3309 = vmin.f32 %v3308, 1.0
      %v3310 = vmax.f32 %v3309, -1.0
      %v3311 = vmul.f32 %v2538, %v2538
      %v3312 = vmin.f32 16.0, %v3311
      %v3313 = vmul.f32 %v3312, 2.1237322e-06
      %v3314 = vadd.f32 %v3313, 0.00028619796
      %v3315 = vmul.f32 %v3312, %v3314
      %v3316 = vadd.f32 %v3315, 0.0036580483
      %v3317 = vmul.f32 %v3312, %v3316
      %v3318 = vadd.f32 %v3317, 0.05243302
      %v3319 = vmul.f32 %v3312, %v3318
      %v3320 = vadd.f32 %v3319, 0.18741608
      %v3321 = vmul.f32 %v3312, %v3320
      %v3322 = vadd.f32 %v3321, 1.1283791
      %v3323 = vmul.f32 %v2538, %v3322
      %v3324 = vmul.f32 %v3312, 3.8918573e-05
      %v3325 = vadd.f32 %v3324, 0.001143296
      %v3326 = vmul.f32 %v3312, %v3325
      %v3327 = vadd.f32 %v3326, 0.014752088
      %v3328 = vmul.f32 %v3312, %v3327
      %v3329 = vadd.f32 %v3328, 0.112945676
      %v3330 = vmul.f32 %v3312, %v3329
      %v3331 = vadd.f32 %v3330, 0.4994258
      %v3332 = vmul.f32 %v3312, %v3331
      %v3333 = vadd.f32 %v3332, 1.0
      %v3334 = vrcp.pop %v3333
      %v3335 = vmul.f32 %v3333, %v3334
      %v3336 = vsub.f32 1.0, %v3335
      %v3337 = vmul.f32 %v3334, %v3336
      %v3338 = vadd.f32 %v3334, %v3337
      %vm3339 = vweird.f32 %v3333
      %vm3340 = vweird.f32 %v3334
      %vm3341 = vmor %vm3339, %vm3340
      %v3342 = vsel %vm3341, %v3334, %v3338
      %v3343 = vand.u32 2147483647, %v3333
      %vm3344 = vcmp.eq.f32.partialorder %v3343, 8.507059e+37
      %v3345 = vand.u32 %v3333, 2147483648
      %v3346 = vor.u32 1.1754944e-38, %v3345
      %v3347 = vsel %vm3344, %v3346, %v3342
      %v3348 = vmul.f32 %v3323, %v3347
      %v3349 = vmin.f32 %v3348, 1.0
      %v3350 = vmax.f32 %v3349, -1.0
      %v3351 = vmul.f32 %v2539, %v2539
      %v3352 = vmin.f32 16.0, %v3351
      %v3353 = vmul.f32 %v3352, 2.1237322e-06
      %v3354 = vadd.f32 %v3353, 0.00028619796
      %v3355 = vmul.f32 %v3352, %v3354
      %v3356 = vadd.f32 %v3355, 0.0036580483
      %v3357 = vmul.f32 %v3352, %v3356
      %v3358 = vadd.f32 %v3357, 0.05243302
      %v3359 = vmul.f32 %v3352, %v3358
      %v3360 = vadd.f32 %v3359, 0.18741608
      %v3361 = vmul.f32 %v3352, %v3360
      %v3362 = vadd.f32 %v3361, 1.1283791
      %v3363 = vmul.f32 %v2539, %v3362
      %v3364 = vmul.f32 %v3352, 3.8918573e-05
      %v3365 = vadd.f32 %v3364, 0.001143296
      %v3366 = vmul.f32 %v3352, %v3365
      %v3367 = vadd.f32 %v3366, 0.014752088
      %v3368 = vmul.f32 %v3352, %v3367
      %v3369 = vadd.f32 %v3368, 0.112945676
      %v3370 = vmul.f32 %v3352, %v3369
      %v3371 = vadd.f32 %v3370, 0.4994258
      %v3372 = vmul.f32 %v3352, %v3371
      %v3373 = vadd.f32 %v3372, 1.0
      %v3374 = vrcp.pop %v3373
      %v3375 = vmul.f32 %v3373, %v3374
      %v3376 = vsub.f32 1.0, %v3375
      %v3377 = vmul.f32 %v3374, %v3376
      %v3378 = vadd.f32 %v3374, %v3377
      %vm3379 = vweird.f32 %v3373
      %vm3380 = vweird.f32 %v3374
      %vm3381 = vmor %vm3379, %vm3380
      %v3382 = vsel %vm3381, %v3374, %v3378
      %v3383 = vand.u32 2147483647, %v3373
      %vm3384 = vcmp.eq.f32.partialorder %v3383, 8.507059e+37
      %v3385 = vand.u32 %v3373, 2147483648
      %v3386 = vor.u32 1.1754944e-38, %v3385
      %v3387 = vsel %vm3384, %v3386, %v3382
      %v3388 = vmul.f32 %v3363, %v3387
      %v3389 = vmin.f32 %v3388, 1.0
      %v3390 = vmax.f32 %v3389, -1.0
      %v3391 = vmul.f32 %v2540, %v2540
      %v3392 = vmin.f32 16.0, %v3391
      %v3393 = vmul.f32 %v3392, 2.1237322e-06
      %v3394 = vadd.f32 %v3393, 0.00028619796
      %v3395 = vmul.f32 %v3392, %v3394
      %v3396 = vadd.f32 %v3395, 0.0036580483
      %v3397 = vmul.f32 %v3392, %v3396
      %v3398 = vadd.f32 %v3397, 0.05243302
      %v3399 = vmul.f32 %v3392, %v3398
      %v3400 = vadd.f32 %v3399, 0.18741608
      %v3401 = vmul.f32 %v3392, %v3400
      %v3402 = vadd.f32 %v3401, 1.1283791
      %v3403 = vmul.f32 %v2540, %v3402
      %v3404 = vmul.f32 %v3392, 3.8918573e-05
      %v3405 = vadd.f32 %v3404, 0.001143296
      %v3406 = vmul.f32 %v3392, %v3405
      %v3407 = vadd.f32 %v3406, 0.014752088
      %v3408 = vmul.f32 %v3392, %v3407
      %v3409 = vadd.f32 %v3408, 0.112945676
      %v3410 = vmul.f32 %v3392, %v3409
      %v3411 = vadd.f32 %v3410, 0.4994258
      %v3412 = vmul.f32 %v3392, %v3411
      %v3413 = vadd.f32 %v3412, 1.0
      %v3414 = vrcp.pop %v3413
      %v3415 = vmul.f32 %v3413, %v3414
      %v3416 = vsub.f32 1.0, %v3415
      %v3417 = vmul.f32 %v3414, %v3416
      %v3418 = vadd.f32 %v3414, %v3417
      %vm3419 = vweird.f32 %v3413
      %vm3420 = vweird.f32 %v3414
      %vm3421 = vmor %vm3419, %vm3420
      %v3422 = vsel %vm3421, %v3414, %v3418
      %v3423 = vand.u32 2147483647, %v3413
      %vm3424 = vcmp.eq.f32.partialorder %v3423, 8.507059e+37
      %v3425 = vand.u32 %v3413, 2147483648
      %v3426 = vor.u32 1.1754944e-38, %v3425
      %v3427 = vsel %vm3424, %v3426, %v3422
      %v3428 = vmul.f32 %v3403, %v3427
      %v3429 = vmin.f32 %v3428, 1.0
      %v3430 = vmax.f32 %v3429, -1.0
      %v3431 = vmul.f32 %v2541, %v2541
      %v3432 = vmin.f32 16.0, %v3431
      %v3433 = vmul.f32 %v3432, 2.1237322e-06
      %v3434 = vadd.f32 %v3433, 0.00028619796
      %v3435 = vmul.f32 %v3432, %v3434
      %v3436 = vadd.f32 %v3435, 0.0036580483
      %v3437 = vmul.f32 %v3432, %v3436
      %v3438 = vadd.f32 %v3437, 0.05243302
      %v3439 = vmul.f32 %v3432, %v3438
      %v3440 = vadd.f32 %v3439, 0.18741608
      %v3441 = vmul.f32 %v3432, %v3440
      %v3442 = vadd.f32 %v3441, 1.1283791
      %v3443 = vmul.f32 %v2541, %v3442
      %v3444 = vmul.f32 %v3432, 3.8918573e-05
      %v3445 = vadd.f32 %v3444, 0.001143296
      %v3446 = vmul.f32 %v3432, %v3445
      %v3447 = vadd.f32 %v3446, 0.014752088
      %v3448 = vmul.f32 %v3432, %v3447
      %v3449 = vadd.f32 %v3448, 0.112945676
      %v3450 = vmul.f32 %v3432, %v3449
      %v3451 = vadd.f32 %v3450, 0.4994258
      %v3452 = vmul.f32 %v3432, %v3451
      %v3453 = vadd.f32 %v3452, 1.0
      %v3454 = vrcp.pop %v3453
      %v3455 = vmul.f32 %v3453, %v3454
      %v3456 = vsub.f32 1.0, %v3455
      %v3457 = vmul.f32 %v3454, %v3456
      %v3458 = vadd.f32 %v3454, %v3457
      %vm3459 = vweird.f32 %v3453
      %vm3460 = vweird.f32 %v3454
      %vm3461 = vmor %vm3459, %vm3460
      %v3462 = vsel %vm3461, %v3454, %v3458
      %v3463 = vand.u32 2147483647, %v3453
      %vm3464 = vcmp.eq.f32.partialorder %v3463, 8.507059e+37
      %v3465 = vand.u32 %v3453, 2147483648
      %v3466 = vor.u32 1.1754944e-38, %v3465
      %v3467 = vsel %vm3464, %v3466, %v3462
      %v3468 = vmul.f32 %v3443, %v3467
      %v3469 = vmin.f32 %v3468, 1.0
      %v3470 = vmax.f32 %v3469, -1.0
      %v3471 = vmul.f32 %v2542, %v2542
      %v3472 = vmin.f32 16.0, %v3471
      %v3473 = vmul.f32 %v3472, 2.1237322e-06
      %v3474 = vadd.f32 %v3473, 0.00028619796
      %v3475 = vmul.f32 %v3472, %v3474
      %v3476 = vadd.f32 %v3475, 0.0036580483
      %v3477 = vmul.f32 %v3472, %v3476
      %v3478 = vadd.f32 %v3477, 0.05243302
      %v3479 = vmul.f32 %v3472, %v3478
      %v3480 = vadd.f32 %v3479, 0.18741608
      %v3481 = vmul.f32 %v3472, %v3480
      %v3482 = vadd.f32 %v3481, 1.1283791
      %v3483 = vmul.f32 %v2542, %v3482
      %v3484 = vmul.f32 %v3472, 3.8918573e-05
      %v3485 = vadd.f32 %v3484, 0.001143296
      %v3486 = vmul.f32 %v3472, %v3485
      %v3487 = vadd.f32 %v3486, 0.014752088
      %v3488 = vmul.f32 %v3472, %v3487
      %v3489 = vadd.f32 %v3488, 0.112945676
      %v3490 = vmul.f32 %v3472, %v3489
      %v3491 = vadd.f32 %v3490, 0.4994258
      %v3492 = vmul.f32 %v3472, %v3491
      %v3493 = vadd.f32 %v3492, 1.0
      %v3494 = vrcp.pop %v3493
      %v3495 = vmul.f32 %v3493, %v3494
      %v3496 = vsub.f32 1.0, %v3495
      %v3497 = vmul.f32 %v3494, %v3496
      %v3498 = vadd.f32 %v3494, %v3497
      %vm3499 = vweird.f32 %v3493
      %vm3500 = vweird.f32 %v3494
      %vm3501 = vmor %vm3499, %vm3500
      %v3502 = vsel %vm3501, %v3494, %v3498
      %v3503 = vand.u32 2147483647, %v3493
      %vm3504 = vcmp.eq.f32.partialorder %v3503, 8.507059e+37
      %v3505 = vand.u32 %v3493, 2147483648
      %v3506 = vor.u32 1.1754944e-38, %v3505
      %v3507 = vsel %vm3504, %v3506, %v3502
      %v3508 = vmul.f32 %v3483, %v3507
      %v3509 = vmin.f32 %v3508, 1.0
      %v3510 = vmax.f32 %v3509, -1.0
      %v3511 = vmul.f32 %v2543, %v2543
      %v3512 = vmin.f32 16.0, %v3511
      %v3513 = vmul.f32 %v3512, 2.1237322e-06
      %v3514 = vadd.f32 %v3513, 0.00028619796
      %v3515 = vmul.f32 %v3512, %v3514
      %v3516 = vadd.f32 %v3515, 0.0036580483
      %v3517 = vmul.f32 %v3512, %v3516
      %v3518 = vadd.f32 %v3517, 0.05243302
      %v3519 = vmul.f32 %v3512, %v3518
      %v3520 = vadd.f32 %v3519, 0.18741608
      %v3521 = vmul.f32 %v3512, %v3520
      %v3522 = vadd.f32 %v3521, 1.1283791
      %v3523 = vmul.f32 %v2543, %v3522
      %v3524 = vmul.f32 %v3512, 3.8918573e-05
      %v3525 = vadd.f32 %v3524, 0.001143296
      %v3526 = vmul.f32 %v3512, %v3525
      %v3527 = vadd.f32 %v3526, 0.014752088
      %v3528 = vmul.f32 %v3512, %v3527
      %v3529 = vadd.f32 %v3528, 0.112945676
      %v3530 = vmul.f32 %v3512, %v3529
      %v3531 = vadd.f32 %v3530, 0.4994258
      %v3532 = vmul.f32 %v3512, %v3531
      %v3533 = vadd.f32 %v3532, 1.0
      %v3534 = vrcp.pop %v3533
      %v3535 = vmul.f32 %v3533, %v3534
      %v3536 = vsub.f32 1.0, %v3535
      %v3537 = vmul.f32 %v3534, %v3536
      %v3538 = vadd.f32 %v3534, %v3537
      %vm3539 = vweird.f32 %v3533
      %vm3540 = vweird.f32 %v3534
      %vm3541 = vmor %vm3539, %vm3540
      %v3542 = vsel %vm3541, %v3534, %v3538
      %v3543 = vand.u32 2147483647, %v3533
      %vm3544 = vcmp.eq.f32.partialorder %v3543, 8.507059e+37
      %v3545 = vand.u32 %v3533, 2147483648
      %v3546 = vor.u32 1.1754944e-38, %v3545
      %v3547 = vsel %vm3544, %v3546, %v3542
      %v3548 = vmul.f32 %v3523, %v3547
      %v3549 = vmin.f32 %v3548, 1.0
      %v3550 = vmax.f32 %v3549, -1.0
      %v3551 = vmul.f32 %v2544, %v2544
      %v3552 = vmin.f32 16.0, %v3551
      %v3553 = vmul.f32 %v3552, 2.1237322e-06
      %v3554 = vadd.f32 %v3553, 0.00028619796
      %v3555 = vmul.f32 %v3552, %v3554
      %v3556 = vadd.f32 %v3555, 0.0036580483
      %v3557 = vmul.f32 %v3552, %v3556
      %v3558 = vadd.f32 %v3557, 0.05243302
      %v3559 = vmul.f32 %v3552, %v3558
      %v3560 = vadd.f32 %v3559, 0.18741608
      %v3561 = vmul.f32 %v3552, %v3560
      %v3562 = vadd.f32 %v3561, 1.1283791
      %v3563 = vmul.f32 %v2544, %v3562
      %v3564 = vmul.f32 %v3552, 3.8918573e-05
      %v3565 = vadd.f32 %v3564, 0.001143296
      %v3566 = vmul.f32 %v3552, %v3565
      %v3567 = vadd.f32 %v3566, 0.014752088
      %v3568 = vmul.f32 %v3552, %v3567
      %v3569 = vadd.f32 %v3568, 0.112945676
      %v3570 = vmul.f32 %v3552, %v3569
      %v3571 = vadd.f32 %v3570, 0.4994258
      %v3572 = vmul.f32 %v3552, %v3571
      %v3573 = vadd.f32 %v3572, 1.0
      %v3574 = vrcp.pop %v3573
      %v3575 = vmul.f32 %v3573, %v3574
      %v3576 = vsub.f32 1.0, %v3575
      %v3577 = vmul.f32 %v3574, %v3576
      %v3578 = vadd.f32 %v3574, %v3577
      %vm3579 = vweird.f32 %v3573
      %vm3580 = vweird.f32 %v3574
      %vm3581 = vmor %vm3579, %vm3580
      %v3582 = vsel %vm3581, %v3574, %v3578
      %v3583 = vand.u32 2147483647, %v3573
      %vm3584 = vcmp.eq.f32.partialorder %v3583, 8.507059e+37
      %v3585 = vand.u32 %v3573, 2147483648
      %v3586 = vor.u32 1.1754944e-38, %v3585
      %v3587 = vsel %vm3584, %v3586, %v3582
      %v3588 = vmul.f32 %v3563, %v3587
      %v3589 = vmin.f32 %v3588, 1.0
      %v3590 = vmax.f32 %v3589, -1.0
      %v3591 = vmul.f32 %v2545, %v2545
      %v3592 = vmin.f32 16.0, %v3591
      %v3593 = vmul.f32 %v3592, 2.1237322e-06
      %v3594 = vadd.f32 %v3593, 0.00028619796
      %v3595 = vmul.f32 %v3592, %v3594
      %v3596 = vadd.f32 %v3595, 0.0036580483
      %v3597 = vmul.f32 %v3592, %v3596
      %v3598 = vadd.f32 %v3597, 0.05243302
      %v3599 = vmul.f32 %v3592, %v3598
      %v3600 = vadd.f32 %v3599, 0.18741608
      %v3601 = vmul.f32 %v3592, %v3600
      %v3602 = vadd.f32 %v3601, 1.1283791
      %v3603 = vmul.f32 %v2545, %v3602
      %v3604 = vmul.f32 %v3592, 3.8918573e-05
      %v3605 = vadd.f32 %v3604, 0.001143296
      %v3606 = vmul.f32 %v3592, %v3605
      %v3607 = vadd.f32 %v3606, 0.014752088
      %v3608 = vmul.f32 %v3592, %v3607
      %v3609 = vadd.f32 %v3608, 0.112945676
      %v3610 = vmul.f32 %v3592, %v3609
      %v3611 = vadd.f32 %v3610, 0.4994258
      %v3612 = vmul.f32 %v3592, %v3611
      %v3613 = vadd.f32 %v3612, 1.0
      %v3614 = vrcp.pop %v3613
      %v3615 = vmul.f32 %v3613, %v3614
      %v3616 = vsub.f32 1.0, %v3615
      %v3617 = vmul.f32 %v3614, %v3616
      %v3618 = vadd.f32 %v3614, %v3617
      %vm3619 = vweird.f32 %v3613
      %vm3620 = vweird.f32 %v3614
      %vm3621 = vmor %vm3619, %vm3620
      %v3622 = vsel %vm3621, %v3614, %v3618
      %v3623 = vand.u32 2147483647, %v3613
      %vm3624 = vcmp.eq.f32.partialorder %v3623, 8.507059e+37
      %v3625 = vand.u32 %v3613, 2147483648
      %v3626 = vor.u32 1.1754944e-38, %v3625
      %v3627 = vsel %vm3624, %v3626, %v3622
      %v3628 = vmul.f32 %v3603, %v3627
      %v3629 = vmin.f32 %v3628, 1.0
      %v3630 = vmax.f32 %v3629, -1.0
      %v3631 = vmul.f32 %v2546, %v2546
      %v3632 = vmin.f32 16.0, %v3631
      %v3633 = vmul.f32 %v3632, 2.1237322e-06
      %v3634 = vadd.f32 %v3633, 0.00028619796
      %v3635 = vmul.f32 %v3632, %v3634
      %v3636 = vadd.f32 %v3635, 0.0036580483
      %v3637 = vmul.f32 %v3632, %v3636
      %v3638 = vadd.f32 %v3637, 0.05243302
      %v3639 = vmul.f32 %v3632, %v3638
      %v3640 = vadd.f32 %v3639, 0.18741608
      %v3641 = vmul.f32 %v3632, %v3640
      %v3642 = vadd.f32 %v3641, 1.1283791
      %v3643 = vmul.f32 %v2546, %v3642
      %v3644 = vmul.f32 %v3632, 3.8918573e-05
      %v3645 = vadd.f32 %v3644, 0.001143296
      %v3646 = vmul.f32 %v3632, %v3645
      %v3647 = vadd.f32 %v3646, 0.014752088
      %v3648 = vmul.f32 %v3632, %v3647
      %v3649 = vadd.f32 %v3648, 0.112945676
      %v3650 = vmul.f32 %v3632, %v3649
      %v3651 = vadd.f32 %v3650, 0.4994258
      %v3652 = vmul.f32 %v3632, %v3651
      %v3653 = vadd.f32 %v3652, 1.0
      %v3654 = vrcp.pop %v3653
      %v3655 = vmul.f32 %v3653, %v3654
      %v3656 = vsub.f32 1.0, %v3655
      %v3657 = vmul.f32 %v3654, %v3656
      %v3658 = vadd.f32 %v3654, %v3657
      %vm3659 = vweird.f32 %v3653
      %vm3660 = vweird.f32 %v3654
      %vm3661 = vmor %vm3659, %vm3660
      %v3662 = vsel %vm3661, %v3654, %v3658
      %v3663 = vand.u32 2147483647, %v3653
      %vm3664 = vcmp.eq.f32.partialorder %v3663, 8.507059e+37
      %v3665 = vand.u32 %v3653, 2147483648
      %v3666 = vor.u32 1.1754944e-38, %v3665
      %v3667 = vsel %vm3664, %v3666, %v3662
      %v3668 = vmul.f32 %v3643, %v3667
      %v3669 = vmin.f32 %v3668, 1.0
      %v3670 = vmax.f32 %v3669, -1.0
      %v3671 = vmul.f32 %v2547, %v2547
      %v3672 = vmin.f32 16.0, %v3671
      %v3673 = vmul.f32 %v3672, 2.1237322e-06
      %v3674 = vadd.f32 %v3673, 0.00028619796
      %v3675 = vmul.f32 %v3672, %v3674
      %v3676 = vadd.f32 %v3675, 0.0036580483
      %v3677 = vmul.f32 %v3672, %v3676
      %v3678 = vadd.f32 %v3677, 0.05243302
      %v3679 = vmul.f32 %v3672, %v3678
      %v3680 = vadd.f32 %v3679, 0.18741608
      %v3681 = vmul.f32 %v3672, %v3680
      %v3682 = vadd.f32 %v3681, 1.1283791
      %v3683 = vmul.f32 %v2547, %v3682
      %v3684 = vmul.f32 %v3672, 3.8918573e-05
      %v3685 = vadd.f32 %v3684, 0.001143296
      %v3686 = vmul.f32 %v3672, %v3685
      %v3687 = vadd.f32 %v3686, 0.014752088
      %v3688 = vmul.f32 %v3672, %v3687
      %v3689 = vadd.f32 %v3688, 0.112945676
      %v3690 = vmul.f32 %v3672, %v3689
      %v3691 = vadd.f32 %v3690, 0.4994258
      %v3692 = vmul.f32 %v3672, %v3691
      %v3693 = vadd.f32 %v3692, 1.0
      %v3694 = vrcp.pop %v3693
      %v3695 = vmul.f32 %v3693, %v3694
      %v3696 = vsub.f32 1.0, %v3695
      %v3697 = vmul.f32 %v3694, %v3696
      %v3698 = vadd.f32 %v3694, %v3697
      %vm3699 = vweird.f32 %v3693
      %vm3700 = vweird.f32 %v3694
      %vm3701 = vmor %vm3699, %vm3700
      %v3702 = vsel %vm3701, %v3694, %v3698
      %v3703 = vand.u32 2147483647, %v3693
      %vm3704 = vcmp.eq.f32.partialorder %v3703, 8.507059e+37
      %v3705 = vand.u32 %v3693, 2147483648
      %v3706 = vor.u32 1.1754944e-38, %v3705
      %v3707 = vsel %vm3704, %v3706, %v3702
      %v3708 = vmul.f32 %v3683, %v3707
      %v3709 = vmin.f32 %v3708, 1.0
      %v3710 = vmax.f32 %v3709, -1.0
      %v3711 = vmul.f32 %v2548, %v2548
      %v3712 = vmin.f32 16.0, %v3711
      %v3713 = vmul.f32 %v3712, 2.1237322e-06
      %v3714 = vadd.f32 %v3713, 0.00028619796
      %v3715 = vmul.f32 %v3712, %v3714
      %v3716 = vadd.f32 %v3715, 0.0036580483
      %v3717 = vmul.f32 %v3712, %v3716
      %v3718 = vadd.f32 %v3717, 0.05243302
      %v3719 = vmul.f32 %v3712, %v3718
      %v3720 = vadd.f32 %v3719, 0.18741608
      %v3721 = vmul.f32 %v3712, %v3720
      %v3722 = vadd.f32 %v3721, 1.1283791
      %v3723 = vmul.f32 %v2548, %v3722
      %v3724 = vmul.f32 %v3712, 3.8918573e-05
      %v3725 = vadd.f32 %v3724, 0.001143296
      %v3726 = vmul.f32 %v3712, %v3725
      %v3727 = vadd.f32 %v3726, 0.014752088
      %v3728 = vmul.f32 %v3712, %v3727
      %v3729 = vadd.f32 %v3728, 0.112945676
      %v3730 = vmul.f32 %v3712, %v3729
      %v3731 = vadd.f32 %v3730, 0.4994258
      %v3732 = vmul.f32 %v3712, %v3731
      %v3733 = vadd.f32 %v3732, 1.0
      %v3734 = vrcp.pop %v3733
      %v3735 = vmul.f32 %v3733, %v3734
      %v3736 = vsub.f32 1.0, %v3735
      %v3737 = vmul.f32 %v3734, %v3736
      %v3738 = vadd.f32 %v3734, %v3737
      %vm3739 = vweird.f32 %v3733
      %vm3740 = vweird.f32 %v3734
      %vm3741 = vmor %vm3739, %vm3740
      %v3742 = vsel %vm3741, %v3734, %v3738
      %v3743 = vand.u32 2147483647, %v3733
      %vm3744 = vcmp.eq.f32.partialorder %v3743, 8.507059e+37
      %v3745 = vand.u32 %v3733, 2147483648
      %v3746 = vor.u32 1.1754944e-38, %v3745
      %v3747 = vsel %vm3744, %v3746, %v3742
      %v3748 = vmul.f32 %v3723, %v3747
      %v3749 = vmin.f32 %v3748, 1.0
      %v3750 = vmax.f32 %v3749, -1.0
      %v3751 = vmul.f32 %v2549, %v2549
      %v3752 = vmin.f32 16.0, %v3751
      %v3753 = vmul.f32 %v3752, 2.1237322e-06
      %v3754 = vadd.f32 %v3753, 0.00028619796
      %v3755 = vmul.f32 %v3752, %v3754
      %v3756 = vadd.f32 %v3755, 0.0036580483
      %v3757 = vmul.f32 %v3752, %v3756
      %v3758 = vadd.f32 %v3757, 0.05243302
      %v3759 = vmul.f32 %v3752, %v3758
      %v3760 = vadd.f32 %v3759, 0.18741608
      %v3761 = vmul.f32 %v3752, %v3760
      %v3762 = vadd.f32 %v3761, 1.1283791
      %v3763 = vmul.f32 %v2549, %v3762
      %v3764 = vmul.f32 %v3752, 3.8918573e-05
      %v3765 = vadd.f32 %v3764, 0.001143296
      %v3766 = vmul.f32 %v3752, %v3765
      %v3767 = vadd.f32 %v3766, 0.014752088
      %v3768 = vmul.f32 %v3752, %v3767
      %v3769 = vadd.f32 %v3768, 0.112945676
      %v3770 = vmul.f32 %v3752, %v3769
      %v3771 = vadd.f32 %v3770, 0.4994258
      %v3772 = vmul.f32 %v3752, %v3771
      %v3773 = vadd.f32 %v3772, 1.0
      %v3774 = vrcp.pop %v3773
      %v3775 = vmul.f32 %v3773, %v3774
      %v3776 = vsub.f32 1.0, %v3775
      %v3777 = vmul.f32 %v3774, %v3776
      %v3778 = vadd.f32 %v3774, %v3777
      %vm3779 = vweird.f32 %v3773
      %vm3780 = vweird.f32 %v3774
      %vm3781 = vmor %vm3779, %vm3780
      %v3782 = vsel %vm3781, %v3774, %v3778
      %v3783 = vand.u32 2147483647, %v3773
      %vm3784 = vcmp.eq.f32.partialorder %v3783, 8.507059e+37
      %v3785 = vand.u32 %v3773, 2147483648
      %v3786 = vor.u32 1.1754944e-38, %v3785
      %v3787 = vsel %vm3784, %v3786, %v3782
      %v3788 = vmul.f32 %v3763, %v3787
      %v3789 = vmin.f32 %v3788, 1.0
      %v3790 = vmax.f32 %v3789, -1.0
      %v3791 = vmul.f32 %v2550, %v2550
      %v3792 = vmin.f32 16.0, %v3791
      %v3793 = vmul.f32 %v3792, 2.1237322e-06
      %v3794 = vadd.f32 %v3793, 0.00028619796
      %v3795 = vmul.f32 %v3792, %v3794
      %v3796 = vadd.f32 %v3795, 0.0036580483
      %v3797 = vmul.f32 %v3792, %v3796
      %v3798 = vadd.f32 %v3797, 0.05243302
      %v3799 = vmul.f32 %v3792, %v3798
      %v3800 = vadd.f32 %v3799, 0.18741608
      %v3801 = vmul.f32 %v3792, %v3800
      %v3802 = vadd.f32 %v3801, 1.1283791
      %v3803 = vmul.f32 %v2550, %v3802
      %v3804 = vmul.f32 %v3792, 3.8918573e-05
      %v3805 = vadd.f32 %v3804, 0.001143296
      %v3806 = vmul.f32 %v3792, %v3805
      %v3807 = vadd.f32 %v3806, 0.014752088
      %v3808 = vmul.f32 %v3792, %v3807
      %v3809 = vadd.f32 %v3808, 0.112945676
      %v3810 = vmul.f32 %v3792, %v3809
      %v3811 = vadd.f32 %v3810, 0.4994258
      %v3812 = vmul.f32 %v3792, %v3811
      %v3813 = vadd.f32 %v3812, 1.0
      %v3814 = vrcp.pop %v3813
      %v3815 = vmul.f32 %v3813, %v3814
      %v3816 = vsub.f32 1.0, %v3815
      %v3817 = vmul.f32 %v3814, %v3816
      %v3818 = vadd.f32 %v3814, %v3817
      %vm3819 = vweird.f32 %v3813
      %vm3820 = vweird.f32 %v3814
      %vm3821 = vmor %vm3819, %vm3820
      %v3822 = vsel %vm3821, %v3814, %v3818
      %v3823 = vand.u32 2147483647, %v3813
      %vm3824 = vcmp.eq.f32.partialorder %v3823, 8.507059e+37
      %v3825 = vand.u32 %v3813, 2147483648
      %v3826 = vor.u32 1.1754944e-38, %v3825
      %v3827 = vsel %vm3824, %v3826, %v3822
      %v3828 = vmul.f32 %v3803, %v3827
      %v3829 = vmin.f32 %v3828, 1.0
      %v3830 = vmax.f32 %v3829, -1.0
      %v3831 = vadd.f32 %v2590, 1.0
      %v3832 = vadd.f32 %v2630, 1.0
      %v3833 = vadd.f32 %v2670, 1.0
      %v3834 = vadd.f32 %v2710, 1.0
      %v3835 = vadd.f32 %v2750, 1.0
      %v3836 = vadd.f32 %v2790, 1.0
      %v3837 = vadd.f32 %v2830, 1.0
      %v3838 = vadd.f32 %v2870, 1.0
      %v3839 = vadd.f32 %v2910, 1.0
      %v3840 = vadd.f32 %v2950, 1.0
      %v3841 = vadd.f32 %v2990, 1.0
      %v3842 = vadd.f32 %v3030, 1.0
      %v3843 = vadd.f32 %v3070, 1.0
      %v3844 = vadd.f32 %v3110, 1.0
      %v3845 = vadd.f32 %v3150, 1.0
      %v3846 = vadd.f32 %v3190, 1.0
      %v3847 = vadd.f32 %v3230, 1.0
      %v3848 = vadd.f32 %v3270, 1.0
      %v3849 = vadd.f32 %v3310, 1.0
      %v3850 = vadd.f32 %v3350, 1.0
      %v3851 = vadd.f32 %v3390, 1.0
      %v3852 = vadd.f32 %v3430, 1.0
      %v3853 = vadd.f32 %v3470, 1.0
      %v3854 = vadd.f32 %v3510, 1.0
      %v3855 = vadd.f32 %v3550, 1.0
      %v3856 = vadd.f32 %v3590, 1.0
      %v3857 = vadd.f32 %v3630, 1.0
      %v3858 = vadd.f32 %v3670, 1.0
      %v3859 = vadd.f32 %v3710, 1.0
      %v3860 = vadd.f32 %v3750, 1.0
      %v3861 = vadd.f32 %v3790, 1.0
      %v3862 = vadd.f32 %v3830, 1.0
      %v3863 = vmul.f32 %v2487, %v3831
      %v3864 = vmul.f32 %v2488, %v3832
      %v3865 = vmul.f32 %v2489, %v3833
      %v3866 = vmul.f32 %v2490, %v3834
      %v3867 = vmul.f32 %v2491, %v3835
      %v3868 = vmul.f32 %v2492, %v3836
      %v3869 = vmul.f32 %v2493, %v3837
      %v3870 = vmul.f32 %v2494, %v3838
      %v3871 = vmul.f32 %v2495, %v3839
      %v3872 = vmul.f32 %v2496, %v3840
      %v3873 = vmul.f32 %v2497, %v3841
      %v3874 = vmul.f32 %v2498, %v3842
      %v3875 = vmul.f32 %v2499, %v3843
      %v3876 = vmul.f32 %v2500, %v3844
      %v3877 = vmul.f32 %v2501, %v3845
      %v3878 = vmul.f32 %v2502, %v3846
      %v3879 = vmul.f32 %v2503, %v3847
      %v3880 = vmul.f32 %v2504, %v3848
      %v3881 = vmul.f32 %v2505, %v3849
      %v3882 = vmul.f32 %v2506, %v3850
      %v3883 = vmul.f32 %v2507, %v3851
      %v3884 = vmul.f32 %v2508, %v3852
      %v3885 = vmul.f32 %v2509, %v3853
      %v3886 = vmul.f32 %v2510, %v3854
      %v3887 = vmul.f32 %v2511, %v3855
      %v3888 = vmul.f32 %v2512, %v3856
      %v3889 = vmul.f32 %v2513, %v3857
      %v3890 = vmul.f32 %v2514, %v3858
      %v3891 = vmul.f32 %v2515, %v3859
      %v3892 = vmul.f32 %v2516, %v3860
      %v3893 = vmul.f32 %v2517, %v3861
      %v3894 = vmul.f32 %v2518, %v3862
      %v3895 = vpack.c.bf16 %v3865, %v3863
      %v3896 = vpack.c.bf16 %v3866, %v3864
      %v3897 = vpack.c.bf16 %v3869, %v3867
      %v3898 = vpack.c.bf16 %v3870, %v3868
      %v3899 = vpack.c.bf16 %v3873, %v3871
      %v3900 = vpack.c.bf16 %v3874, %v3872
      %v3901 = vpack.c.bf16 %v3877, %v3875
      %v3902 = vpack.c.bf16 %v3878, %v3876
      %v3903 = vpack.c.bf16 %v3881, %v3879
      %v3904 = vpack.c.bf16 %v3882, %v3880
      %v3905 = vpack.c.bf16 %v3885, %v3883
      %v3906 = vpack.c.bf16 %v3886, %v3884
      %v3907 = vpack.c.bf16 %v3889, %v3887
      %v3908 = vpack.c.bf16 %v3890, %v3888
      %v3909 = vpack.c.bf16 %v3893, %v3891
      %v3910 = vpack.c.bf16 %v3894, %v3892
      %s3911 = scalar_lea.vmem %s1, 512
      %v3912 = vld [vmem:[%s3911] sm:$0xff]
      %v3913 = vld [vmem:[%s3911 + $0x8] sm:$0xff]
      %v3914 = vld [vmem:[%s3911 + $0x10] sm:$0xff]
      %v3915 = vld [vmem:[%s3911 + $0x18] sm:$0xff]
      %v3916 = vld [vmem:[%s3911 + $0x20] sm:$0xff]
      %v3917 = vld [vmem:[%s3911 + $0x28] sm:$0xff]
      %v3918 = vld [vmem:[%s3911 + $0x30] sm:$0xff]
      %v3919 = vld [vmem:[%s3911 + $0x38] sm:$0xff]
      %v3920 = vld [vmem:[%s3911 + $0x40] sm:$0xff]
      %v3921 = vld [vmem:[%s3911 + $0x48] sm:$0xff]
      %v3922 = vld [vmem:[%s3911 + $0x50] sm:$0xff]
      %v3923 = vld [vmem:[%s3911 + $0x58] sm:$0xff]
      %v3924 = vld [vmem:[%s3911 + $0x60] sm:$0xff]
      %v3925 = vld [vmem:[%s3911 + $0x68] sm:$0xff]
      %v3926 = vld [vmem:[%s3911 + $0x70] sm:$0xff]
      %v3927 = vld [vmem:[%s3911 + $0x78] sm:$0xff]
      %v3928 = vld [vmem:[%s3911 + $0x80] sm:$0xff]
      %v3929 = vld [vmem:[%s3911 + $0x88] sm:$0xff]
      %v3930 = vld [vmem:[%s3911 + $0x90] sm:$0xff]
      %v3931 = vld [vmem:[%s3911 + $0x98] sm:$0xff]
      %v3932 = vld [vmem:[%s3911 + $0xa0] sm:$0xff]
      %v3933 = vld [vmem:[%s3911 + $0xa8] sm:$0xff]
      %v3934 = vld [vmem:[%s3911 + $0xb0] sm:$0xff]
      %v3935 = vld [vmem:[%s3911 + $0xb8] sm:$0xff]
      %v3936 = vld [vmem:[%s3911 + $0xc0] sm:$0xff]
      %v3937 = vld [vmem:[%s3911 + $0xc8] sm:$0xff]
      %v3938 = vld [vmem:[%s3911 + $0xd0] sm:$0xff]
      %v3939 = vld [vmem:[%s3911 + $0xd8] sm:$0xff]
      %v3940 = vld [vmem:[%s3911 + $0xe0] sm:$0xff]
      %v3941 = vld [vmem:[%s3911 + $0xe8] sm:$0xff]
      %v3942 = vld [vmem:[%s3911 + $0xf0] sm:$0xff]
      %v3943 = vld [vmem:[%s3911 + $0xf8] sm:$0xff]
      %s3944 = scalar_lea.vmem %s2, 2
      %v3945 = vld [vmem:[%s3944] ss:$8 sm:$0x3]
      %v3947 = vperm.slane %v3945, 0
      %v3948 = vperm.slane %v3945, 1
      %v3983 = vunpack.c.l.b16 %v3912
      %v3984 = vunpack.c.h.b16 %v3912
      %v3985 = vunpack.c.l.b16 %v3913
      %v3986 = vunpack.c.h.b16 %v3913
      %v3987 = vunpack.c.l.b16 %v3914
      %v3988 = vunpack.c.h.b16 %v3914
      %v3989 = vunpack.c.l.b16 %v3915
      %v3990 = vunpack.c.h.b16 %v3915
      %v3991 = vunpack.c.l.b16 %v3916
      %v3992 = vunpack.c.h.b16 %v3916
      %v3993 = vunpack.c.l.b16 %v3917
      %v3994 = vunpack.c.h.b16 %v3917
      %v3995 = vunpack.c.l.b16 %v3918
      %v3996 = vunpack.c.h.b16 %v3918
      %v3997 = vunpack.c.l.b16 %v3919
      %v3998 = vunpack.c.h.b16 %v3919
      %v3999 = vunpack.c.l.b16 %v3920
      %v4000 = vunpack.c.h.b16 %v3920
      %v4001 = vunpack.c.l.b16 %v3921
      %v4002 = vunpack.c.h.b16 %v3921
      %v4003 = vunpack.c.l.b16 %v3922
      %v4004 = vunpack.c.h.b16 %v3922
      %v4005 = vunpack.c.l.b16 %v3923
      %v4006 = vunpack.c.h.b16 %v3923
      %v4007 = vunpack.c.l.b16 %v3924
      %v4008 = vunpack.c.h.b16 %v3924
      %v4009 = vunpack.c.l.b16 %v3925
      %v4010 = vunpack.c.h.b16 %v3925
      %v4011 = vunpack.c.l.b16 %v3926
      %v4012 = vunpack.c.h.b16 %v3926
      %v4013 = vunpack.c.l.b16 %v3927
      %v4014 = vunpack.c.h.b16 %v3927
      %v4015 = vunpack.c.l.b16 %v3928
      %v4016 = vunpack.c.h.b16 %v3928
      %v4017 = vunpack.c.l.b16 %v3929
      %v4018 = vunpack.c.h.b16 %v3929
      %v4019 = vunpack.c.l.b16 %v3930
      %v4020 = vunpack.c.h.b16 %v3930
      %v4021 = vunpack.c.l.b16 %v3931
      %v4022 = vunpack.c.h.b16 %v3931
      %v4023 = vunpack.c.l.b16 %v3932
      %v4024 = vunpack.c.h.b16 %v3932
      %v4025 = vunpack.c.l.b16 %v3933
      %v4026 = vunpack.c.h.b16 %v3933
      %v4027 = vunpack.c.l.b16 %v3934
      %v4028 = vunpack.c.h.b16 %v3934
      %v4029 = vunpack.c.l.b16 %v3935
      %v4030 = vunpack.c.h.b16 %v3935
      %v4031 = vunpack.c.l.b16 %v3936
      %v4032 = vunpack.c.h.b16 %v3936
      %v4033 = vunpack.c.l.b16 %v3937
      %v4034 = vunpack.c.h.b16 %v3937
      %v4035 = vunpack.c.l.b16 %v3938
      %v4036 = vunpack.c.h.b16 %v3938
      %v4037 = vunpack.c.l.b16 %v3939
      %v4038 = vunpack.c.h.b16 %v3939
      %v4039 = vunpack.c.l.b16 %v3940
      %v4040 = vunpack.c.h.b16 %v3940
      %v4041 = vunpack.c.l.b16 %v3941
      %v4042 = vunpack.c.h.b16 %v3941
      %v4043 = vunpack.c.l.b16 %v3942
      %v4044 = vunpack.c.h.b16 %v3942
      %v4045 = vunpack.c.l.b16 %v3943
      %v4046 = vunpack.c.h.b16 %v3943
      %v4047 = vpack.c.b16 %v3985, %v3983
      %v4048 = vpack.c.b16 %v3986, %v3984
      %v4049 = vpack.c.b16 %v3989, %v3987
      %v4050 = vpack.c.b16 %v3990, %v3988
      %v4051 = vpack.c.b16 %v3993, %v3991
      %v4052 = vpack.c.b16 %v3994, %v3992
      %v4053 = vpack.c.b16 %v3997, %v3995
      %v4054 = vpack.c.b16 %v3998, %v3996
      %v4055 = vpack.c.b16 %v4001, %v3999
      %v4056 = vpack.c.b16 %v4002, %v4000
      %v4057 = vpack.c.b16 %v4005, %v4003
      %v4058 = vpack.c.b16 %v4006, %v4004
      %v4059 = vpack.c.b16 %v4009, %v4007
      %v4060 = vpack.c.b16 %v4010, %v4008
      %v4061 = vpack.c.b16 %v4013, %v4011
      %v4062 = vpack.c.b16 %v4014, %v4012
      %v4063 = vpack.c.b16 %v4017, %v4015
      %v4064 = vpack.c.b16 %v4018, %v4016
      %v4065 = vpack.c.b16 %v4021, %v4019
      %v4066 = vpack.c.b16 %v4022, %v4020
      %v4067 = vpack.c.b16 %v4025, %v4023
      %v4068 = vpack.c.b16 %v4026, %v4024
      %v4069 = vpack.c.b16 %v4029, %v4027
      %v4070 = vpack.c.b16 %v4030, %v4028
      %v4071 = vpack.c.b16 %v4033, %v4031
      %v4072 = vpack.c.b16 %v4034, %v4032
      %v4073 = vpack.c.b16 %v4037, %v4035
      %v4074 = vpack.c.b16 %v4038, %v4036
      %v4075 = vpack.c.b16 %v4041, %v4039
      %v4076 = vpack.c.b16 %v4042, %v4040
      %v4077 = vpack.c.b16 %v4045, %v4043
      %v4078 = vpack.c.b16 %v4046, %v4044
      %4111 = vmatpush.bf16.msra.mxu0 %v4061
      %4112 = vmatpush.bf16.msra.mxu0 %v4059
      %4113 = vmatpush.bf16.msra.mxu0 %v4057
      %4114 = vmatpush.bf16.msra.mxu0 %v4055
      %4115 = vmatpush.bf16.msra.mxu0 %v4053
      %4116 = vmatpush.bf16.msra.mxu0 %v4051
      %4117 = vmatpush.bf16.msra.mxu0 %v4049
      %4118 = vmatpush.bf16.msra.mxu0 %v4047
      %4119 = vmatmul.bf16.gmra.mxu0 %v3895
      %v4120 = vpop.f32.mrf.mxu0
      %v4121 = vadd.f32 %v3947, %v4120
      %v4122 = vpop.f32.mrf.mxu0
      %v4123 = vadd.f32 %v3947, %v4122
      %4124 = vmatmul.bf16.gmra.mxu0 %v3897
      %v4125 = vpop.f32.mrf.mxu0
      %v4126 = vadd.f32 %v3947, %v4125
      %v4127 = vpop.f32.mrf.mxu0
      %v4128 = vadd.f32 %v3947, %v4127
      %4129 = vmatmul.bf16.gmra.mxu0 %v3899
      %v4130 = vpop.f32.mrf.mxu0
      %v4131 = vadd.f32 %v3947, %v4130
      %v4132 = vpop.f32.mrf.mxu0
      %v4133 = vadd.f32 %v3947, %v4132
      %4134 = vmatmul.bf16.gmra.mxu0 %v3901
      %v4135 = vpop.f32.mrf.mxu0
      %v4136 = vadd.f32 %v3947, %v4135
      %v4137 = vpop.f32.mrf.mxu0
      %v4138 = vadd.f32 %v3947, %v4137
      %4139 = vmatmul.bf16.gmra.mxu0 %v3903
      %v4140 = vpop.f32.mrf.mxu0
      %v4141 = vadd.f32 %v3947, %v4140
      %v4142 = vpop.f32.mrf.mxu0
      %v4143 = vadd.f32 %v3947, %v4142
      %4144 = vmatmul.bf16.gmra.mxu0 %v3905
      %v4145 = vpop.f32.mrf.mxu0
      %v4146 = vadd.f32 %v3947, %v4145
      %v4147 = vpop.f32.mrf.mxu0
      %v4148 = vadd.f32 %v3947, %v4147
      %4149 = vmatmul.bf16.gmra.mxu0 %v3907
      %v4150 = vpop.f32.mrf.mxu0
      %v4151 = vadd.f32 %v3947, %v4150
      %v4152 = vpop.f32.mrf.mxu0
      %v4153 = vadd.f32 %v3947, %v4152
      %4154 = vmatmul.bf16.gmra.mxu0 %v3909
      %v4155 = vpop.f32.mrf.mxu0
      %v4156 = vadd.f32 %v3947, %v4155
      %v4157 = vpop.f32.mrf.mxu0
      %v4158 = vadd.f32 %v3947, %v4157
      %4159 = vdwg.mxu0
      %4160 = vmatpush.bf16.msra.mxu0 %v4077
      %4161 = vmatpush.bf16.msra.mxu0 %v4075
      %4162 = vmatpush.bf16.msra.mxu0 %v4073
      %4163 = vmatpush.bf16.msra.mxu0 %v4071
      %4164 = vmatpush.bf16.msra.mxu0 %v4069
      %4165 = vmatpush.bf16.msra.mxu0 %v4067
      %4166 = vmatpush.bf16.msra.mxu0 %v4065
      %4167 = vmatpush.bf16.msra.mxu0 %v4063
      %4168 = vmatmul.bf16.gmra.mxu0 %v3896
      %v4169 = vpop.f32.mrf.mxu0
      %v4170 = vadd.f32 %v4121, %v4169
      %v4171 = vpop.f32.mrf.mxu0
      %v4172 = vadd.f32 %v4123, %v4171
      %4173 = vmatmul.bf16.gmra.mxu0 %v3898
      %v4174 = vpop.f32.mrf.mxu0
      %v4175 = vadd.f32 %v4126, %v4174
      %v4176 = vpop.f32.mrf.mxu0
      %v4177 = vadd.f32 %v4128, %v4176
      %4178 = vmatmul.bf16.gmra.mxu0 %v3900
      %v4179 = vpop.f32.mrf.mxu0
      %v4180 = vadd.f32 %v4131, %v4179
      %v4181 = vpop.f32.mrf.mxu0
      %v4182 = vadd.f32 %v4133, %v4181
      %4183 = vmatmul.bf16.gmra.mxu0 %v3902
      %v4184 = vpop.f32.mrf.mxu0
      %v4185 = vadd.f32 %v4136, %v4184
      %v4186 = vpop.f32.mrf.mxu0
      %v4187 = vadd.f32 %v4138, %v4186
      %4188 = vmatmul.bf16.gmra.mxu0 %v3904
      %v4189 = vpop.f32.mrf.mxu0
      %v4190 = vadd.f32 %v4141, %v4189
      %v4191 = vpop.f32.mrf.mxu0
      %v4192 = vadd.f32 %v4143, %v4191
      %4193 = vmatmul.bf16.gmra.mxu0 %v3906
      %v4194 = vpop.f32.mrf.mxu0
      %v4195 = vadd.f32 %v4146, %v4194
      %v4196 = vpop.f32.mrf.mxu0
      %v4197 = vadd.f32 %v4148, %v4196
      %4198 = vmatmul.bf16.gmra.mxu0 %v3908
      %v4199 = vpop.f32.mrf.mxu0
      %v4200 = vadd.f32 %v4151, %v4199
      %v4201 = vpop.f32.mrf.mxu0
      %v4202 = vadd.f32 %v4153, %v4201
      %4203 = vmatmul.bf16.gmra.mxu0 %v3910
      %v4204 = vpop.f32.mrf.mxu0
      %v4205 = vadd.f32 %v4156, %v4204
      %v4206 = vpop.f32.mrf.mxu0
      %v4207 = vadd.f32 %v4158, %v4206
      %4208 = vdwg.mxu0
      %4209 = vmatpush.bf16.msra.mxu0 %v4062
      %4210 = vmatpush.bf16.msra.mxu0 %v4060
      %4211 = vmatpush.bf16.msra.mxu0 %v4058
      %4212 = vmatpush.bf16.msra.mxu0 %v4056
      %4213 = vmatpush.bf16.msra.mxu0 %v4054
      %4214 = vmatpush.bf16.msra.mxu0 %v4052
      %4215 = vmatpush.bf16.msra.mxu0 %v4050
      %4216 = vmatpush.bf16.msra.mxu0 %v4048
      %4217 = vmatmul.bf16.gmra.mxu0 %v3895
      %v4218 = vpop.f32.mrf.mxu0
      %v4219 = vadd.f32 %v3948, %v4218
      %v4220 = vpop.f32.mrf.mxu0
      %v4221 = vadd.f32 %v3948, %v4220
      %4222 = vmatmul.bf16.gmra.mxu0 %v3897
      %v4223 = vpop.f32.mrf.mxu0
      %v4224 = vadd.f32 %v3948, %v4223
      %v4225 = vpop.f32.mrf.mxu0
      %v4226 = vadd.f32 %v3948, %v4225
      %4227 = vmatmul.bf16.gmra.mxu0 %v3899
      %v4228 = vpop.f32.mrf.mxu0
      %v4229 = vadd.f32 %v3948, %v4228
      %v4230 = vpop.f32.mrf.mxu0
      %v4231 = vadd.f32 %v3948, %v4230
      %4232 = vmatmul.bf16.gmra.mxu0 %v3901
      %v4233 = vpop.f32.mrf.mxu0
      %v4234 = vadd.f32 %v3948, %v4233
      %v4235 = vpop.f32.mrf.mxu0
      %v4236 = vadd.f32 %v3948, %v4235
      %4237 = vmatmul.bf16.gmra.mxu0 %v3903
      %v4238 = vpop.f32.mrf.mxu0
      %v4239 = vadd.f32 %v3948, %v4238
      %v4240 = vpop.f32.mrf.mxu0
      %v4241 = vadd.f32 %v3948, %v4240
      %4242 = vmatmul.bf16.gmra.mxu0 %v3905
      %v4243 = vpop.f32.mrf.mxu0
      %v4244 = vadd.f32 %v3948, %v4243
      %v4245 = vpop.f32.mrf.mxu0
      %v4246 = vadd.f32 %v3948, %v4245
      %4247 = vmatmul.bf16.gmra.mxu0 %v3907
      %v4248 = vpop.f32.mrf.mxu0
      %v4249 = vadd.f32 %v3948, %v4248
      %v4250 = vpop.f32.mrf.mxu0
      %v4251 = vadd.f32 %v3948, %v4250
      %4252 = vmatmul.bf16.gmra.mxu0 %v3909
      %v4253 = vpop.f32.mrf.mxu0
      %v4254 = vadd.f32 %v3948, %v4253
      %v4255 = vpop.f32.mrf.mxu0
      %v4256 = vadd.f32 %v3948, %v4255
      %4257 = vdwg.mxu0
      %4258 = vmatpush.bf16.msra.mxu0 %v4078
      %4259 = vmatpush.bf16.msra.mxu0 %v4076
      %4260 = vmatpush.bf16.msra.mxu0 %v4074
      %4261 = vmatpush.bf16.msra.mxu0 %v4072
      %4262 = vmatpush.bf16.msra.mxu0 %v4070
      %4263 = vmatpush.bf16.msra.mxu0 %v4068
      %4264 = vmatpush.bf16.msra.mxu0 %v4066
      %4265 = vmatpush.bf16.msra.mxu0 %v4064
      %4266 = vmatmul.bf16.gmra.mxu0 %v3896
      %v4267 = vpop.f32.mrf.mxu0
      %v4268 = vadd.f32 %v4219, %v4267
      %v4269 = vpop.f32.mrf.mxu0
      %v4270 = vadd.f32 %v4221, %v4269
      %4271 = vmatmul.bf16.gmra.mxu0 %v3898
      %v4272 = vpop.f32.mrf.mxu0
      %v4273 = vadd.f32 %v4224, %v4272
      %v4274 = vpop.f32.mrf.mxu0
      %v4275 = vadd.f32 %v4226, %v4274
      %4276 = vmatmul.bf16.gmra.mxu0 %v3900
      %v4277 = vpop.f32.mrf.mxu0
      %v4278 = vadd.f32 %v4229, %v4277
      %v4279 = vpop.f32.mrf.mxu0
      %v4280 = vadd.f32 %v4231, %v4279
      %4281 = vmatmul.bf16.gmra.mxu0 %v3902
      %v4282 = vpop.f32.mrf.mxu0
      %v4283 = vadd.f32 %v4234, %v4282
      %v4284 = vpop.f32.mrf.mxu0
      %v4285 = vadd.f32 %v4236, %v4284
      %4286 = vmatmul.bf16.gmra.mxu0 %v3904
      %v4287 = vpop.f32.mrf.mxu0
      %v4288 = vadd.f32 %v4239, %v4287
      %v4289 = vpop.f32.mrf.mxu0
      %v4290 = vadd.f32 %v4241, %v4289
      %4291 = vmatmul.bf16.gmra.mxu0 %v3906
      %v4292 = vpop.f32.mrf.mxu0
      %v4293 = vadd.f32 %v4244, %v4292
      %v4294 = vpop.f32.mrf.mxu0
      %v4295 = vadd.f32 %v4246, %v4294
      %4296 = vmatmul.bf16.gmra.mxu0 %v3908
      %v4297 = vpop.f32.mrf.mxu0
      %v4298 = vadd.f32 %v4249, %v4297
      %v4299 = vpop.f32.mrf.mxu0
      %v4300 = vadd.f32 %v4251, %v4299
      %4301 = vmatmul.bf16.gmra.mxu0 %v3910
      %v4302 = vpop.f32.mrf.mxu0
      %v4303 = vadd.f32 %v4254, %v4302
      %v4304 = vpop.f32.mrf.mxu0
      %v4305 = vadd.f32 %v4256, %v4304
      %4306 = vdwg.mxu0
      %v4307 = vmul.f32 %v4170, 0.5
      %v4308 = vmul.f32 %v4268, 0.5
      %v4309 = vmul.f32 %v4172, 0.5
      %v4310 = vmul.f32 %v4270, 0.5
      %v4311 = vmul.f32 %v4175, 0.5
      %v4312 = vmul.f32 %v4273, 0.5
      %v4313 = vmul.f32 %v4177, 0.5
      %v4314 = vmul.f32 %v4275, 0.5
      %v4315 = vmul.f32 %v4180, 0.5
      %v4316 = vmul.f32 %v4278, 0.5
      %v4317 = vmul.f32 %v4182, 0.5
      %v4318 = vmul.f32 %v4280, 0.5
      %v4319 = vmul.f32 %v4185, 0.5
      %v4320 = vmul.f32 %v4283, 0.5
      %v4321 = vmul.f32 %v4187, 0.5
      %v4322 = vmul.f32 %v4285, 0.5
      %v4323 = vmul.f32 %v4190, 0.5
      %v4324 = vmul.f32 %v4288, 0.5
      %v4325 = vmul.f32 %v4192, 0.5
      %v4326 = vmul.f32 %v4290, 0.5
      %v4327 = vmul.f32 %v4195, 0.5
      %v4328 = vmul.f32 %v4293, 0.5
      %v4329 = vmul.f32 %v4197, 0.5
      %v4330 = vmul.f32 %v4295, 0.5
      %v4331 = vmul.f32 %v4200, 0.5
      %v4332 = vmul.f32 %v4298, 0.5
      %v4333 = vmul.f32 %v4202, 0.5
      %v4334 = vmul.f32 %v4300, 0.5
      %v4335 = vmul.f32 %v4205, 0.5
      %v4336 = vmul.f32 %v4303, 0.5
      %v4337 = vmul.f32 %v4207, 0.5
      %v4338 = vmul.f32 %v4305, 0.5
      %v4339 = vmul.f32 %v4170, 0.70710677
      %v4340 = vmul.f32 %v4268, 0.70710677
      %v4341 = vmul.f32 %v4172, 0.70710677
      %v4342 = vmul.f32 %v4270, 0.70710677
      %v4343 = vmul.f32 %v4175, 0.70710677
      %v4344 = vmul.f32 %v4273, 0.70710677
      %v4345 = vmul.f32 %v4177, 0.70710677
      %v4346 = vmul.f32 %v4275, 0.70710677
      %v4347 = vmul.f32 %v4180, 0.70710677
      %v4348 = vmul.f32 %v4278, 0.70710677
      %v4349 = vmul.f32 %v4182, 0.70710677
      %v4350 = vmul.f32 %v4280, 0.70710677
      %v4351 = vmul.f32 %v4185, 0.70710677
      %v4352 = vmul.f32 %v4283, 0.70710677
      %v4353 = vmul.f32 %v4187, 0.70710677
      %v4354 = vmul.f32 %v4285, 0.70710677
      %v4355 = vmul.f32 %v4190, 0.70710677
      %v4356 = vmul.f32 %v4288, 0.70710677
      %v4357 = vmul.f32 %v4192, 0.70710677
      %v4358 = vmul.f32 %v4290, 0.70710677
      %v4359 = vmul.f32 %v4195, 0.70710677
      %v4360 = vmul.f32 %v4293, 0.70710677
      %v4361 = vmul.f32 %v4197, 0.70710677
      %v4362 = vmul.f32 %v4295, 0.70710677
      %v4363 = vmul.f32 %v4200, 0.70710677
      %v4364 = vmul.f32 %v4298, 0.70710677
      %v4365 = vmul.f32 %v4202, 0.70710677
      %v4366 = vmul.f32 %v4300, 0.70710677
      %v4367 = vmul.f32 %v4205, 0.70710677
      %v4368 = vmul.f32 %v4303, 0.70710677
      %v4369 = vmul.f32 %v4207, 0.70710677
      %v4370 = vmul.f32 %v4305, 0.70710677
      %v4371 = vmul.f32 %v4339, %v4339
      %v4372 = vmin.f32 16.0, %v4371
      %v4373 = vmul.f32 %v4372, 2.1237322e-06
      %v4374 = vadd.f32 %v4373, 0.00028619796
      %v4375 = vmul.f32 %v4372, %v4374
      %v4376 = vadd.f32 %v4375, 0.0036580483
      %v4377 = vmul.f32 %v4372, %v4376
      %v4378 = vadd.f32 %v4377, 0.05243302
      %v4379 = vmul.f32 %v4372, %v4378
      %v4380 = vadd.f32 %v4379, 0.18741608
      %v4381 = vmul.f32 %v4372, %v4380
      %v4382 = vadd.f32 %v4381, 1.1283791
      %v4383 = vmul.f32 %v4339, %v4382
      %v4384 = vmul.f32 %v4372, 3.8918573e-05
      %v4385 = vadd.f32 %v4384, 0.001143296
      %v4386 = vmul.f32 %v4372, %v4385
      %v4387 = vadd.f32 %v4386, 0.014752088
      %v4388 = vmul.f32 %v4372, %v4387
      %v4389 = vadd.f32 %v4388, 0.112945676
      %v4390 = vmul.f32 %v4372, %v4389
      %v4391 = vadd.f32 %v4390, 0.4994258
      %v4392 = vmul.f32 %v4372, %v4391
      %v4393 = vadd.f32 %v4392, 1.0
      %v4394 = vrcp.pop %v4393
      %v4395 = vmul.f32 %v4393, %v4394
      %v4396 = vsub.f32 1.0, %v4395
      %v4397 = vmul.f32 %v4394, %v4396
      %v4398 = vadd.f32 %v4394, %v4397
      %vm4399 = vweird.f32 %v4393
      %vm4400 = vweird.f32 %v4394
      %vm4401 = vmor %vm4399, %vm4400
      %v4402 = vsel %vm4401, %v4394, %v4398
      %v4403 = vand.u32 2147483647, %v4393
      %vm4404 = vcmp.eq.f32.partialorder %v4403, 8.507059e+37
      %v4405 = vand.u32 %v4393, 2147483648
      %v4406 = vor.u32 1.1754944e-38, %v4405
      %v4407 = vsel %vm4404, %v4406, %v4402
      %v4408 = vmul.f32 %v4383, %v4407
      %v4409 = vmin.f32 %v4408, 1.0
      %v4410 = vmax.f32 %v4409, -1.0
      %v4411 = vmul.f32 %v4340, %v4340
      %v4412 = vmin.f32 16.0, %v4411
      %v4413 = vmul.f32 %v4412, 2.1237322e-06
      %v4414 = vadd.f32 %v4413, 0.00028619796
      %v4415 = vmul.f32 %v4412, %v4414
      %v4416 = vadd.f32 %v4415, 0.0036580483
      %v4417 = vmul.f32 %v4412, %v4416
      %v4418 = vadd.f32 %v4417, 0.05243302
      %v4419 = vmul.f32 %v4412, %v4418
      %v4420 = vadd.f32 %v4419, 0.18741608
      %v4421 = vmul.f32 %v4412, %v4420
      %v4422 = vadd.f32 %v4421, 1.1283791
      %v4423 = vmul.f32 %v4340, %v4422
      %v4424 = vmul.f32 %v4412, 3.8918573e-05
      %v4425 = vadd.f32 %v4424, 0.001143296
      %v4426 = vmul.f32 %v4412, %v4425
      %v4427 = vadd.f32 %v4426, 0.014752088
      %v4428 = vmul.f32 %v4412, %v4427
      %v4429 = vadd.f32 %v4428, 0.112945676
      %v4430 = vmul.f32 %v4412, %v4429
      %v4431 = vadd.f32 %v4430, 0.4994258
      %v4432 = vmul.f32 %v4412, %v4431
      %v4433 = vadd.f32 %v4432, 1.0
      %v4434 = vrcp.pop %v4433
      %v4435 = vmul.f32 %v4433, %v4434
      %v4436 = vsub.f32 1.0, %v4435
      %v4437 = vmul.f32 %v4434, %v4436
      %v4438 = vadd.f32 %v4434, %v4437
      %vm4439 = vweird.f32 %v4433
      %vm4440 = vweird.f32 %v4434
      %vm4441 = vmor %vm4439, %vm4440
      %v4442 = vsel %vm4441, %v4434, %v4438
      %v4443 = vand.u32 2147483647, %v4433
      %vm4444 = vcmp.eq.f32.partialorder %v4443, 8.507059e+37
      %v4445 = vand.u32 %v4433, 2147483648
      %v4446 = vor.u32 1.1754944e-38, %v4445
      %v4447 = vsel %vm4444, %v4446, %v4442
      %v4448 = vmul.f32 %v4423, %v4447
      %v4449 = vmin.f32 %v4448, 1.0
      %v4450 = vmax.f32 %v4449, -1.0
      %v4451 = vmul.f32 %v4341, %v4341
      %v4452 = vmin.f32 16.0, %v4451
      %v4453 = vmul.f32 %v4452, 2.1237322e-06
      %v4454 = vadd.f32 %v4453, 0.00028619796
      %v4455 = vmul.f32 %v4452, %v4454
      %v4456 = vadd.f32 %v4455, 0.0036580483
      %v4457 = vmul.f32 %v4452, %v4456
      %v4458 = vadd.f32 %v4457, 0.05243302
      %v4459 = vmul.f32 %v4452, %v4458
      %v4460 = vadd.f32 %v4459, 0.18741608
      %v4461 = vmul.f32 %v4452, %v4460
      %v4462 = vadd.f32 %v4461, 1.1283791
      %v4463 = vmul.f32 %v4341, %v4462
      %v4464 = vmul.f32 %v4452, 3.8918573e-05
      %v4465 = vadd.f32 %v4464, 0.001143296
      %v4466 = vmul.f32 %v4452, %v4465
      %v4467 = vadd.f32 %v4466, 0.014752088
      %v4468 = vmul.f32 %v4452, %v4467
      %v4469 = vadd.f32 %v4468, 0.112945676
      %v4470 = vmul.f32 %v4452, %v4469
      %v4471 = vadd.f32 %v4470, 0.4994258
      %v4472 = vmul.f32 %v4452, %v4471
      %v4473 = vadd.f32 %v4472, 1.0
      %v4474 = vrcp.pop %v4473
      %v4475 = vmul.f32 %v4473, %v4474
      %v4476 = vsub.f32 1.0, %v4475
      %v4477 = vmul.f32 %v4474, %v4476
      %v4478 = vadd.f32 %v4474, %v4477
      %vm4479 = vweird.f32 %v4473
      %vm4480 = vweird.f32 %v4474
      %vm4481 = vmor %vm4479, %vm4480
      %v4482 = vsel %vm4481, %v4474, %v4478
      %v4483 = vand.u32 2147483647, %v4473
      %vm4484 = vcmp.eq.f32.partialorder %v4483, 8.507059e+37
      %v4485 = vand.u32 %v4473, 2147483648
      %v4486 = vor.u32 1.1754944e-38, %v4485
      %v4487 = vsel %vm4484, %v4486, %v4482
      %v4488 = vmul.f32 %v4463, %v4487
      %v4489 = vmin.f32 %v4488, 1.0
      %v4490 = vmax.f32 %v4489, -1.0
      %v4491 = vmul.f32 %v4342, %v4342
      %v4492 = vmin.f32 16.0, %v4491
      %v4493 = vmul.f32 %v4492, 2.1237322e-06
      %v4494 = vadd.f32 %v4493, 0.00028619796
      %v4495 = vmul.f32 %v4492, %v4494
      %v4496 = vadd.f32 %v4495, 0.0036580483
      %v4497 = vmul.f32 %v4492, %v4496
      %v4498 = vadd.f32 %v4497, 0.05243302
      %v4499 = vmul.f32 %v4492, %v4498
      %v4500 = vadd.f32 %v4499, 0.18741608
      %v4501 = vmul.f32 %v4492, %v4500
      %v4502 = vadd.f32 %v4501, 1.1283791
      %v4503 = vmul.f32 %v4342, %v4502
      %v4504 = vmul.f32 %v4492, 3.8918573e-05
      %v4505 = vadd.f32 %v4504, 0.001143296
      %v4506 = vmul.f32 %v4492, %v4505
      %v4507 = vadd.f32 %v4506, 0.014752088
      %v4508 = vmul.f32 %v4492, %v4507
      %v4509 = vadd.f32 %v4508, 0.112945676
      %v4510 = vmul.f32 %v4492, %v4509
      %v4511 = vadd.f32 %v4510, 0.4994258
      %v4512 = vmul.f32 %v4492, %v4511
      %v4513 = vadd.f32 %v4512, 1.0
      %v4514 = vrcp.pop %v4513
      %v4515 = vmul.f32 %v4513, %v4514
      %v4516 = vsub.f32 1.0, %v4515
      %v4517 = vmul.f32 %v4514, %v4516
      %v4518 = vadd.f32 %v4514, %v4517
      %vm4519 = vweird.f32 %v4513
      %vm4520 = vweird.f32 %v4514
      %vm4521 = vmor %vm4519, %vm4520
      %v4522 = vsel %vm4521, %v4514, %v4518
      %v4523 = vand.u32 2147483647, %v4513
      %vm4524 = vcmp.eq.f32.partialorder %v4523, 8.507059e+37
      %v4525 = vand.u32 %v4513, 2147483648
      %v4526 = vor.u32 1.1754944e-38, %v4525
      %v4527 = vsel %vm4524, %v4526, %v4522
      %v4528 = vmul.f32 %v4503, %v4527
      %v4529 = vmin.f32 %v4528, 1.0
      %v4530 = vmax.f32 %v4529, -1.0
      %v4531 = vmul.f32 %v4343, %v4343
      %v4532 = vmin.f32 16.0, %v4531
      %v4533 = vmul.f32 %v4532, 2.1237322e-06
      %v4534 = vadd.f32 %v4533, 0.00028619796
      %v4535 = vmul.f32 %v4532, %v4534
      %v4536 = vadd.f32 %v4535, 0.0036580483
      %v4537 = vmul.f32 %v4532, %v4536
      %v4538 = vadd.f32 %v4537, 0.05243302
      %v4539 = vmul.f32 %v4532, %v4538
      %v4540 = vadd.f32 %v4539, 0.18741608
      %v4541 = vmul.f32 %v4532, %v4540
      %v4542 = vadd.f32 %v4541, 1.1283791
      %v4543 = vmul.f32 %v4343, %v4542
      %v4544 = vmul.f32 %v4532, 3.8918573e-05
      %v4545 = vadd.f32 %v4544, 0.001143296
      %v4546 = vmul.f32 %v4532, %v4545
      %v4547 = vadd.f32 %v4546, 0.014752088
      %v4548 = vmul.f32 %v4532, %v4547
      %v4549 = vadd.f32 %v4548, 0.112945676
      %v4550 = vmul.f32 %v4532, %v4549
      %v4551 = vadd.f32 %v4550, 0.4994258
      %v4552 = vmul.f32 %v4532, %v4551
      %v4553 = vadd.f32 %v4552, 1.0
      %v4554 = vrcp.pop %v4553
      %v4555 = vmul.f32 %v4553, %v4554
      %v4556 = vsub.f32 1.0, %v4555
      %v4557 = vmul.f32 %v4554, %v4556
      %v4558 = vadd.f32 %v4554, %v4557
      %vm4559 = vweird.f32 %v4553
      %vm4560 = vweird.f32 %v4554
      %vm4561 = vmor %vm4559, %vm4560
      %v4562 = vsel %vm4561, %v4554, %v4558
      %v4563 = vand.u32 2147483647, %v4553
      %vm4564 = vcmp.eq.f32.partialorder %v4563, 8.507059e+37
      %v4565 = vand.u32 %v4553, 2147483648
      %v4566 = vor.u32 1.1754944e-38, %v4565
      %v4567 = vsel %vm4564, %v4566, %v4562
      %v4568 = vmul.f32 %v4543, %v4567
      %v4569 = vmin.f32 %v4568, 1.0
      %v4570 = vmax.f32 %v4569, -1.0
      %v4571 = vmul.f32 %v4344, %v4344
      %v4572 = vmin.f32 16.0, %v4571
      %v4573 = vmul.f32 %v4572, 2.1237322e-06
      %v4574 = vadd.f32 %v4573, 0.00028619796
      %v4575 = vmul.f32 %v4572, %v4574
      %v4576 = vadd.f32 %v4575, 0.0036580483
      %v4577 = vmul.f32 %v4572, %v4576
      %v4578 = vadd.f32 %v4577, 0.05243302
      %v4579 = vmul.f32 %v4572, %v4578
      %v4580 = vadd.f32 %v4579, 0.18741608
      %v4581 = vmul.f32 %v4572, %v4580
      %v4582 = vadd.f32 %v4581, 1.1283791
      %v4583 = vmul.f32 %v4344, %v4582
      %v4584 = vmul.f32 %v4572, 3.8918573e-05
      %v4585 = vadd.f32 %v4584, 0.001143296
      %v4586 = vmul.f32 %v4572, %v4585
      %v4587 = vadd.f32 %v4586, 0.014752088
      %v4588 = vmul.f32 %v4572, %v4587
      %v4589 = vadd.f32 %v4588, 0.112945676
      %v4590 = vmul.f32 %v4572, %v4589
      %v4591 = vadd.f32 %v4590, 0.4994258
      %v4592 = vmul.f32 %v4572, %v4591
      %v4593 = vadd.f32 %v4592, 1.0
      %v4594 = vrcp.pop %v4593
      %v4595 = vmul.f32 %v4593, %v4594
      %v4596 = vsub.f32 1.0, %v4595
      %v4597 = vmul.f32 %v4594, %v4596
      %v4598 = vadd.f32 %v4594, %v4597
      %vm4599 = vweird.f32 %v4593
      %vm4600 = vweird.f32 %v4594
      %vm4601 = vmor %vm4599, %vm4600
      %v4602 = vsel %vm4601, %v4594, %v4598
      %v4603 = vand.u32 2147483647, %v4593
      %vm4604 = vcmp.eq.f32.partialorder %v4603, 8.507059e+37
      %v4605 = vand.u32 %v4593, 2147483648
      %v4606 = vor.u32 1.1754944e-38, %v4605
      %v4607 = vsel %vm4604, %v4606, %v4602
      %v4608 = vmul.f32 %v4583, %v4607
      %v4609 = vmin.f32 %v4608, 1.0
      %v4610 = vmax.f32 %v4609, -1.0
      %v4611 = vmul.f32 %v4345, %v4345
      %v4612 = vmin.f32 16.0, %v4611
      %v4613 = vmul.f32 %v4612, 2.1237322e-06
      %v4614 = vadd.f32 %v4613, 0.00028619796
      %v4615 = vmul.f32 %v4612, %v4614
      %v4616 = vadd.f32 %v4615, 0.0036580483
      %v4617 = vmul.f32 %v4612, %v4616
      %v4618 = vadd.f32 %v4617, 0.05243302
      %v4619 = vmul.f32 %v4612, %v4618
      %v4620 = vadd.f32 %v4619, 0.18741608
      %v4621 = vmul.f32 %v4612, %v4620
      %v4622 = vadd.f32 %v4621, 1.1283791
      %v4623 = vmul.f32 %v4345, %v4622
      %v4624 = vmul.f32 %v4612, 3.8918573e-05
      %v4625 = vadd.f32 %v4624, 0.001143296
      %v4626 = vmul.f32 %v4612, %v4625
      %v4627 = vadd.f32 %v4626, 0.014752088
      %v4628 = vmul.f32 %v4612, %v4627
      %v4629 = vadd.f32 %v4628, 0.112945676
      %v4630 = vmul.f32 %v4612, %v4629
      %v4631 = vadd.f32 %v4630, 0.4994258
      %v4632 = vmul.f32 %v4612, %v4631
      %v4633 = vadd.f32 %v4632, 1.0
      %v4634 = vrcp.pop %v4633
      %v4635 = vmul.f32 %v4633, %v4634
      %v4636 = vsub.f32 1.0, %v4635
      %v4637 = vmul.f32 %v4634, %v4636
      %v4638 = vadd.f32 %v4634, %v4637
      %vm4639 = vweird.f32 %v4633
      %vm4640 = vweird.f32 %v4634
      %vm4641 = vmor %vm4639, %vm4640
      %v4642 = vsel %vm4641, %v4634, %v4638
      %v4643 = vand.u32 2147483647, %v4633
      %vm4644 = vcmp.eq.f32.partialorder %v4643, 8.507059e+37
      %v4645 = vand.u32 %v4633, 2147483648
      %v4646 = vor.u32 1.1754944e-38, %v4645
      %v4647 = vsel %vm4644, %v4646, %v4642
      %v4648 = vmul.f32 %v4623, %v4647
      %v4649 = vmin.f32 %v4648, 1.0
      %v4650 = vmax.f32 %v4649, -1.0
      %v4651 = vmul.f32 %v4346, %v4346
      %v4652 = vmin.f32 16.0, %v4651
      %v4653 = vmul.f32 %v4652, 2.1237322e-06
      %v4654 = vadd.f32 %v4653, 0.00028619796
      %v4655 = vmul.f32 %v4652, %v4654
      %v4656 = vadd.f32 %v4655, 0.0036580483
      %v4657 = vmul.f32 %v4652, %v4656
      %v4658 = vadd.f32 %v4657, 0.05243302
      %v4659 = vmul.f32 %v4652, %v4658
      %v4660 = vadd.f32 %v4659, 0.18741608
      %v4661 = vmul.f32 %v4652, %v4660
      %v4662 = vadd.f32 %v4661, 1.1283791
      %v4663 = vmul.f32 %v4346, %v4662
      %v4664 = vmul.f32 %v4652, 3.8918573e-05
      %v4665 = vadd.f32 %v4664, 0.001143296
      %v4666 = vmul.f32 %v4652, %v4665
      %v4667 = vadd.f32 %v4666, 0.014752088
      %v4668 = vmul.f32 %v4652, %v4667
      %v4669 = vadd.f32 %v4668, 0.112945676
      %v4670 = vmul.f32 %v4652, %v4669
      %v4671 = vadd.f32 %v4670, 0.4994258
      %v4672 = vmul.f32 %v4652, %v4671
      %v4673 = vadd.f32 %v4672, 1.0
      %v4674 = vrcp.pop %v4673
      %v4675 = vmul.f32 %v4673, %v4674
      %v4676 = vsub.f32 1.0, %v4675
      %v4677 = vmul.f32 %v4674, %v4676
      %v4678 = vadd.f32 %v4674, %v4677
      %vm4679 = vweird.f32 %v4673
      %vm4680 = vweird.f32 %v4674
      %vm4681 = vmor %vm4679, %vm4680
      %v4682 = vsel %vm4681, %v4674, %v4678
      %v4683 = vand.u32 2147483647, %v4673
      %vm4684 = vcmp.eq.f32.partialorder %v4683, 8.507059e+37
      %v4685 = vand.u32 %v4673, 2147483648
      %v4686 = vor.u32 1.1754944e-38, %v4685
      %v4687 = vsel %vm4684, %v4686, %v4682
      %v4688 = vmul.f32 %v4663, %v4687
      %v4689 = vmin.f32 %v4688, 1.0
      %v4690 = vmax.f32 %v4689, -1.0
      %v4691 = vmul.f32 %v4347, %v4347
      %v4692 = vmin.f32 16.0, %v4691
      %v4693 = vmul.f32 %v4692, 2.1237322e-06
      %v4694 = vadd.f32 %v4693, 0.00028619796
      %v4695 = vmul.f32 %v4692, %v4694
      %v4696 = vadd.f32 %v4695, 0.0036580483
      %v4697 = vmul.f32 %v4692, %v4696
      %v4698 = vadd.f32 %v4697, 0.05243302
      %v4699 = vmul.f32 %v4692, %v4698
      %v4700 = vadd.f32 %v4699, 0.18741608
      %v4701 = vmul.f32 %v4692, %v4700
      %v4702 = vadd.f32 %v4701, 1.1283791
      %v4703 = vmul.f32 %v4347, %v4702
      %v4704 = vmul.f32 %v4692, 3.8918573e-05
      %v4705 = vadd.f32 %v4704, 0.001143296
      %v4706 = vmul.f32 %v4692, %v4705
      %v4707 = vadd.f32 %v4706, 0.014752088
      %v4708 = vmul.f32 %v4692, %v4707
      %v4709 = vadd.f32 %v4708, 0.112945676
      %v4710 = vmul.f32 %v4692, %v4709
      %v4711 = vadd.f32 %v4710, 0.4994258
      %v4712 = vmul.f32 %v4692, %v4711
      %v4713 = vadd.f32 %v4712, 1.0
      %v4714 = vrcp.pop %v4713
      %v4715 = vmul.f32 %v4713, %v4714
      %v4716 = vsub.f32 1.0, %v4715
      %v4717 = vmul.f32 %v4714, %v4716
      %v4718 = vadd.f32 %v4714, %v4717
      %vm4719 = vweird.f32 %v4713
      %vm4720 = vweird.f32 %v4714
      %vm4721 = vmor %vm4719, %vm4720
      %v4722 = vsel %vm4721, %v4714, %v4718
      %v4723 = vand.u32 2147483647, %v4713
      %vm4724 = vcmp.eq.f32.partialorder %v4723, 8.507059e+37
      %v4725 = vand.u32 %v4713, 2147483648
      %v4726 = vor.u32 1.1754944e-38, %v4725
      %v4727 = vsel %vm4724, %v4726, %v4722
      %v4728 = vmul.f32 %v4703, %v4727
      %v4729 = vmin.f32 %v4728, 1.0
      %v4730 = vmax.f32 %v4729, -1.0
      %v4731 = vmul.f32 %v4348, %v4348
      %v4732 = vmin.f32 16.0, %v4731
      %v4733 = vmul.f32 %v4732, 2.1237322e-06
      %v4734 = vadd.f32 %v4733, 0.00028619796
      %v4735 = vmul.f32 %v4732, %v4734
      %v4736 = vadd.f32 %v4735, 0.0036580483
      %v4737 = vmul.f32 %v4732, %v4736
      %v4738 = vadd.f32 %v4737, 0.05243302
      %v4739 = vmul.f32 %v4732, %v4738
      %v4740 = vadd.f32 %v4739, 0.18741608
      %v4741 = vmul.f32 %v4732, %v4740
      %v4742 = vadd.f32 %v4741, 1.1283791
      %v4743 = vmul.f32 %v4348, %v4742
      %v4744 = vmul.f32 %v4732, 3.8918573e-05
      %v4745 = vadd.f32 %v4744, 0.001143296
      %v4746 = vmul.f32 %v4732, %v4745
      %v4747 = vadd.f32 %v4746, 0.014752088
      %v4748 = vmul.f32 %v4732, %v4747
      %v4749 = vadd.f32 %v4748, 0.112945676
      %v4750 = vmul.f32 %v4732, %v4749
      %v4751 = vadd.f32 %v4750, 0.4994258
      %v4752 = vmul.f32 %v4732, %v4751
      %v4753 = vadd.f32 %v4752, 1.0
      %v4754 = vrcp.pop %v4753
      %v4755 = vmul.f32 %v4753, %v4754
      %v4756 = vsub.f32 1.0, %v4755
      %v4757 = vmul.f32 %v4754, %v4756
      %v4758 = vadd.f32 %v4754, %v4757
      %vm4759 = vweird.f32 %v4753
      %vm4760 = vweird.f32 %v4754
      %vm4761 = vmor %vm4759, %vm4760
      %v4762 = vsel %vm4761, %v4754, %v4758
      %v4763 = vand.u32 2147483647, %v4753
      %vm4764 = vcmp.eq.f32.partialorder %v4763, 8.507059e+37
      %v4765 = vand.u32 %v4753, 2147483648
      %v4766 = vor.u32 1.1754944e-38, %v4765
      %v4767 = vsel %vm4764, %v4766, %v4762
      %v4768 = vmul.f32 %v4743, %v4767
      %v4769 = vmin.f32 %v4768, 1.0
      %v4770 = vmax.f32 %v4769, -1.0
      %v4771 = vmul.f32 %v4349, %v4349
      %v4772 = vmin.f32 16.0, %v4771
      %v4773 = vmul.f32 %v4772, 2.1237322e-06
      %v4774 = vadd.f32 %v4773, 0.00028619796
      %v4775 = vmul.f32 %v4772, %v4774
      %v4776 = vadd.f32 %v4775, 0.0036580483
      %v4777 = vmul.f32 %v4772, %v4776
      %v4778 = vadd.f32 %v4777, 0.05243302
      %v4779 = vmul.f32 %v4772, %v4778
      %v4780 = vadd.f32 %v4779, 0.18741608
      %v4781 = vmul.f32 %v4772, %v4780
      %v4782 = vadd.f32 %v4781, 1.1283791
      %v4783 = vmul.f32 %v4349, %v4782
      %v4784 = vmul.f32 %v4772, 3.8918573e-05
      %v4785 = vadd.f32 %v4784, 0.001143296
      %v4786 = vmul.f32 %v4772, %v4785
      %v4787 = vadd.f32 %v4786, 0.014752088
      %v4788 = vmul.f32 %v4772, %v4787
      %v4789 = vadd.f32 %v4788, 0.112945676
      %v4790 = vmul.f32 %v4772, %v4789
      %v4791 = vadd.f32 %v4790, 0.4994258
      %v4792 = vmul.f32 %v4772, %v4791
      %v4793 = vadd.f32 %v4792, 1.0
      %v4794 = vrcp.pop %v4793
      %v4795 = vmul.f32 %v4793, %v4794
      %v4796 = vsub.f32 1.0, %v4795
      %v4797 = vmul.f32 %v4794, %v4796
      %v4798 = vadd.f32 %v4794, %v4797
      %vm4799 = vweird.f32 %v4793
      %vm4800 = vweird.f32 %v4794
      %vm4801 = vmor %vm4799, %vm4800
      %v4802 = vsel %vm4801, %v4794, %v4798
      %v4803 = vand.u32 2147483647, %v4793
      %vm4804 = vcmp.eq.f32.partialorder %v4803, 8.507059e+37
      %v4805 = vand.u32 %v4793, 2147483648
      %v4806 = vor.u32 1.1754944e-38, %v4805
      %v4807 = vsel %vm4804, %v4806, %v4802
      %v4808 = vmul.f32 %v4783, %v4807
      %v4809 = vmin.f32 %v4808, 1.0
      %v4810 = vmax.f32 %v4809, -1.0
      %v4811 = vmul.f32 %v4350, %v4350
      %v4812 = vmin.f32 16.0, %v4811
      %v4813 = vmul.f32 %v4812, 2.1237322e-06
      %v4814 = vadd.f32 %v4813, 0.00028619796
      %v4815 = vmul.f32 %v4812, %v4814
      %v4816 = vadd.f32 %v4815, 0.0036580483
      %v4817 = vmul.f32 %v4812, %v4816
      %v4818 = vadd.f32 %v4817, 0.05243302
      %v4819 = vmul.f32 %v4812, %v4818
      %v4820 = vadd.f32 %v4819, 0.18741608
      %v4821 = vmul.f32 %v4812, %v4820
      %v4822 = vadd.f32 %v4821, 1.1283791
      %v4823 = vmul.f32 %v4350, %v4822
      %v4824 = vmul.f32 %v4812, 3.8918573e-05
      %v4825 = vadd.f32 %v4824, 0.001143296
      %v4826 = vmul.f32 %v4812, %v4825
      %v4827 = vadd.f32 %v4826, 0.014752088
      %v4828 = vmul.f32 %v4812, %v4827
      %v4829 = vadd.f32 %v4828, 0.112945676
      %v4830 = vmul.f32 %v4812, %v4829
      %v4831 = vadd.f32 %v4830, 0.4994258
      %v4832 = vmul.f32 %v4812, %v4831
      %v4833 = vadd.f32 %v4832, 1.0
      %v4834 = vrcp.pop %v4833
      %v4835 = vmul.f32 %v4833, %v4834
      %v4836 = vsub.f32 1.0, %v4835
      %v4837 = vmul.f32 %v4834, %v4836
      %v4838 = vadd.f32 %v4834, %v4837
      %vm4839 = vweird.f32 %v4833
      %vm4840 = vweird.f32 %v4834
      %vm4841 = vmor %vm4839, %vm4840
      %v4842 = vsel %vm4841, %v4834, %v4838
      %v4843 = vand.u32 2147483647, %v4833
      %vm4844 = vcmp.eq.f32.partialorder %v4843, 8.507059e+37
      %v4845 = vand.u32 %v4833, 2147483648
      %v4846 = vor.u32 1.1754944e-38, %v4845
      %v4847 = vsel %vm4844, %v4846, %v4842
      %v4848 = vmul.f32 %v4823, %v4847
      %v4849 = vmin.f32 %v4848, 1.0
      %v4850 = vmax.f32 %v4849, -1.0
      %v4851 = vmul.f32 %v4351, %v4351
      %v4852 = vmin.f32 16.0, %v4851
      %v4853 = vmul.f32 %v4852, 2.1237322e-06
      %v4854 = vadd.f32 %v4853, 0.00028619796
      %v4855 = vmul.f32 %v4852, %v4854
      %v4856 = vadd.f32 %v4855, 0.0036580483
      %v4857 = vmul.f32 %v4852, %v4856
      %v4858 = vadd.f32 %v4857, 0.05243302
      %v4859 = vmul.f32 %v4852, %v4858
      %v4860 = vadd.f32 %v4859, 0.18741608
      %v4861 = vmul.f32 %v4852, %v4860
      %v4862 = vadd.f32 %v4861, 1.1283791
      %v4863 = vmul.f32 %v4351, %v4862
      %v4864 = vmul.f32 %v4852, 3.8918573e-05
      %v4865 = vadd.f32 %v4864, 0.001143296
      %v4866 = vmul.f32 %v4852, %v4865
      %v4867 = vadd.f32 %v4866, 0.014752088
      %v4868 = vmul.f32 %v4852, %v4867
      %v4869 = vadd.f32 %v4868, 0.112945676
      %v4870 = vmul.f32 %v4852, %v4869
      %v4871 = vadd.f32 %v4870, 0.4994258
      %v4872 = vmul.f32 %v4852, %v4871
      %v4873 = vadd.f32 %v4872, 1.0
      %v4874 = vrcp.pop %v4873
      %v4875 = vmul.f32 %v4873, %v4874
      %v4876 = vsub.f32 1.0, %v4875
      %v4877 = vmul.f32 %v4874, %v4876
      %v4878 = vadd.f32 %v4874, %v4877
      %vm4879 = vweird.f32 %v4873
      %vm4880 = vweird.f32 %v4874
      %vm4881 = vmor %vm4879, %vm4880
      %v4882 = vsel %vm4881, %v4874, %v4878
      %v4883 = vand.u32 2147483647, %v4873
      %vm4884 = vcmp.eq.f32.partialorder %v4883, 8.507059e+37
      %v4885 = vand.u32 %v4873, 2147483648
      %v4886 = vor.u32 1.1754944e-38, %v4885
      %v4887 = vsel %vm4884, %v4886, %v4882
      %v4888 = vmul.f32 %v4863, %v4887
      %v4889 = vmin.f32 %v4888, 1.0
      %v4890 = vmax.f32 %v4889, -1.0
      %v4891 = vmul.f32 %v4352, %v4352
      %v4892 = vmin.f32 16.0, %v4891
      %v4893 = vmul.f32 %v4892, 2.1237322e-06
      %v4894 = vadd.f32 %v4893, 0.00028619796
      %v4895 = vmul.f32 %v4892, %v4894
      %v4896 = vadd.f32 %v4895, 0.0036580483
      %v4897 = vmul.f32 %v4892, %v4896
      %v4898 = vadd.f32 %v4897, 0.05243302
      %v4899 = vmul.f32 %v4892, %v4898
      %v4900 = vadd.f32 %v4899, 0.18741608
      %v4901 = vmul.f32 %v4892, %v4900
      %v4902 = vadd.f32 %v4901, 1.1283791
      %v4903 = vmul.f32 %v4352, %v4902
      %v4904 = vmul.f32 %v4892, 3.8918573e-05
      %v4905 = vadd.f32 %v4904, 0.001143296
      %v4906 = vmul.f32 %v4892, %v4905
      %v4907 = vadd.f32 %v4906, 0.014752088
      %v4908 = vmul.f32 %v4892, %v4907
      %v4909 = vadd.f32 %v4908, 0.112945676
      %v4910 = vmul.f32 %v4892, %v4909
      %v4911 = vadd.f32 %v4910, 0.4994258
      %v4912 = vmul.f32 %v4892, %v4911
      %v4913 = vadd.f32 %v4912, 1.0
      %v4914 = vrcp.pop %v4913
      %v4915 = vmul.f32 %v4913, %v4914
      %v4916 = vsub.f32 1.0, %v4915
      %v4917 = vmul.f32 %v4914, %v4916
      %v4918 = vadd.f32 %v4914, %v4917
      %vm4919 = vweird.f32 %v4913
      %vm4920 = vweird.f32 %v4914
      %vm4921 = vmor %vm4919, %vm4920
      %v4922 = vsel %vm4921, %v4914, %v4918
      %v4923 = vand.u32 2147483647, %v4913
      %vm4924 = vcmp.eq.f32.partialorder %v4923, 8.507059e+37
      %v4925 = vand.u32 %v4913, 2147483648
      %v4926 = vor.u32 1.1754944e-38, %v4925
      %v4927 = vsel %vm4924, %v4926, %v4922
      %v4928 = vmul.f32 %v4903, %v4927
      %v4929 = vmin.f32 %v4928, 1.0
      %v4930 = vmax.f32 %v4929, -1.0
      %v4931 = vmul.f32 %v4353, %v4353
      %v4932 = vmin.f32 16.0, %v4931
      %v4933 = vmul.f32 %v4932, 2.1237322e-06
      %v4934 = vadd.f32 %v4933, 0.00028619796
      %v4935 = vmul.f32 %v4932, %v4934
      %v4936 = vadd.f32 %v4935, 0.0036580483
      %v4937 = vmul.f32 %v4932, %v4936
      %v4938 = vadd.f32 %v4937, 0.05243302
      %v4939 = vmul.f32 %v4932, %v4938
      %v4940 = vadd.f32 %v4939, 0.18741608
      %v4941 = vmul.f32 %v4932, %v4940
      %v4942 = vadd.f32 %v4941, 1.1283791
      %v4943 = vmul.f32 %v4353, %v4942
      %v4944 = vmul.f32 %v4932, 3.8918573e-05
      %v4945 = vadd.f32 %v4944, 0.001143296
      %v4946 = vmul.f32 %v4932, %v4945
      %v4947 = vadd.f32 %v4946, 0.014752088
      %v4948 = vmul.f32 %v4932, %v4947
      %v4949 = vadd.f32 %v4948, 0.112945676
      %v4950 = vmul.f32 %v4932, %v4949
      %v4951 = vadd.f32 %v4950, 0.4994258
      %v4952 = vmul.f32 %v4932, %v4951
      %v4953 = vadd.f32 %v4952, 1.0
      %v4954 = vrcp.pop %v4953
      %v4955 = vmul.f32 %v4953, %v4954
      %v4956 = vsub.f32 1.0, %v4955
      %v4957 = vmul.f32 %v4954, %v4956
      %v4958 = vadd.f32 %v4954, %v4957
      %vm4959 = vweird.f32 %v4953
      %vm4960 = vweird.f32 %v4954
      %vm4961 = vmor %vm4959, %vm4960
      %v4962 = vsel %vm4961, %v4954, %v4958
      %v4963 = vand.u32 2147483647, %v4953
      %vm4964 = vcmp.eq.f32.partialorder %v4963, 8.507059e+37
      %v4965 = vand.u32 %v4953, 2147483648
      %v4966 = vor.u32 1.1754944e-38, %v4965
      %v4967 = vsel %vm4964, %v4966, %v4962
      %v4968 = vmul.f32 %v4943, %v4967
      %v4969 = vmin.f32 %v4968, 1.0
      %v4970 = vmax.f32 %v4969, -1.0
      %v4971 = vmul.f32 %v4354, %v4354
      %v4972 = vmin.f32 16.0, %v4971
      %v4973 = vmul.f32 %v4972, 2.1237322e-06
      %v4974 = vadd.f32 %v4973, 0.00028619796
      %v4975 = vmul.f32 %v4972, %v4974
      %v4976 = vadd.f32 %v4975, 0.0036580483
      %v4977 = vmul.f32 %v4972, %v4976
      %v4978 = vadd.f32 %v4977, 0.05243302
      %v4979 = vmul.f32 %v4972, %v4978
      %v4980 = vadd.f32 %v4979, 0.18741608
      %v4981 = vmul.f32 %v4972, %v4980
      %v4982 = vadd.f32 %v4981, 1.1283791
      %v4983 = vmul.f32 %v4354, %v4982
      %v4984 = vmul.f32 %v4972, 3.8918573e-05
      %v4985 = vadd.f32 %v4984, 0.001143296
      %v4986 = vmul.f32 %v4972, %v4985
      %v4987 = vadd.f32 %v4986, 0.014752088
      %v4988 = vmul.f32 %v4972, %v4987
      %v4989 = vadd.f32 %v4988, 0.112945676
      %v4990 = vmul.f32 %v4972, %v4989
      %v4991 = vadd.f32 %v4990, 0.4994258
      %v4992 = vmul.f32 %v4972, %v4991
      %v4993 = vadd.f32 %v4992, 1.0
      %v4994 = vrcp.pop %v4993
      %v4995 = vmul.f32 %v4993, %v4994
      %v4996 = vsub.f32 1.0, %v4995
      %v4997 = vmul.f32 %v4994, %v4996
      %v4998 = vadd.f32 %v4994, %v4997
      %vm4999 = vweird.f32 %v4993
      %vm5000 = vweird.f32 %v4994
      %vm5001 = vmor %vm4999, %vm5000
      %v5002 = vsel %vm5001, %v4994, %v4998
      %v5003 = vand.u32 2147483647, %v4993
      %vm5004 = vcmp.eq.f32.partialorder %v5003, 8.507059e+37
      %v5005 = vand.u32 %v4993, 2147483648
      %v5006 = vor.u32 1.1754944e-38, %v5005
      %v5007 = vsel %vm5004, %v5006, %v5002
      %v5008 = vmul.f32 %v4983, %v5007
      %v5009 = vmin.f32 %v5008, 1.0
      %v5010 = vmax.f32 %v5009, -1.0
      %v5011 = vmul.f32 %v4355, %v4355
      %v5012 = vmin.f32 16.0, %v5011
      %v5013 = vmul.f32 %v5012, 2.1237322e-06
      %v5014 = vadd.f32 %v5013, 0.00028619796
      %v5015 = vmul.f32 %v5012, %v5014
      %v5016 = vadd.f32 %v5015, 0.0036580483
      %v5017 = vmul.f32 %v5012, %v5016
      %v5018 = vadd.f32 %v5017, 0.05243302
      %v5019 = vmul.f32 %v5012, %v5018
      %v5020 = vadd.f32 %v5019, 0.18741608
      %v5021 = vmul.f32 %v5012, %v5020
      %v5022 = vadd.f32 %v5021, 1.1283791
      %v5023 = vmul.f32 %v4355, %v5022
      %v5024 = vmul.f32 %v5012, 3.8918573e-05
      %v5025 = vadd.f32 %v5024, 0.001143296
      %v5026 = vmul.f32 %v5012, %v5025
      %v5027 = vadd.f32 %v5026, 0.014752088
      %v5028 = vmul.f32 %v5012, %v5027
      %v5029 = vadd.f32 %v5028, 0.112945676
      %v5030 = vmul.f32 %v5012, %v5029
      %v5031 = vadd.f32 %v5030, 0.4994258
      %v5032 = vmul.f32 %v5012, %v5031
      %v5033 = vadd.f32 %v5032, 1.0
      %v5034 = vrcp.pop %v5033
      %v5035 = vmul.f32 %v5033, %v5034
      %v5036 = vsub.f32 1.0, %v5035
      %v5037 = vmul.f32 %v5034, %v5036
      %v5038 = vadd.f32 %v5034, %v5037
      %vm5039 = vweird.f32 %v5033
      %vm5040 = vweird.f32 %v5034
      %vm5041 = vmor %vm5039, %vm5040
      %v5042 = vsel %vm5041, %v5034, %v5038
      %v5043 = vand.u32 2147483647, %v5033
      %vm5044 = vcmp.eq.f32.partialorder %v5043, 8.507059e+37
      %v5045 = vand.u32 %v5033, 2147483648
      %v5046 = vor.u32 1.1754944e-38, %v5045
      %v5047 = vsel %vm5044, %v5046, %v5042
      %v5048 = vmul.f32 %v5023, %v5047
      %v5049 = vmin.f32 %v5048, 1.0
      %v5050 = vmax.f32 %v5049, -1.0
      %v5051 = vmul.f32 %v4356, %v4356
      %v5052 = vmin.f32 16.0, %v5051
      %v5053 = vmul.f32 %v5052, 2.1237322e-06
      %v5054 = vadd.f32 %v5053, 0.00028619796
      %v5055 = vmul.f32 %v5052, %v5054
      %v5056 = vadd.f32 %v5055, 0.0036580483
      %v5057 = vmul.f32 %v5052, %v5056
      %v5058 = vadd.f32 %v5057, 0.05243302
      %v5059 = vmul.f32 %v5052, %v5058
      %v5060 = vadd.f32 %v5059, 0.18741608
      %v5061 = vmul.f32 %v5052, %v5060
      %v5062 = vadd.f32 %v5061, 1.1283791
      %v5063 = vmul.f32 %v4356, %v5062
      %v5064 = vmul.f32 %v5052, 3.8918573e-05
      %v5065 = vadd.f32 %v5064, 0.001143296
      %v5066 = vmul.f32 %v5052, %v5065
      %v5067 = vadd.f32 %v5066, 0.014752088
      %v5068 = vmul.f32 %v5052, %v5067
      %v5069 = vadd.f32 %v5068, 0.112945676
      %v5070 = vmul.f32 %v5052, %v5069
      %v5071 = vadd.f32 %v5070, 0.4994258
      %v5072 = vmul.f32 %v5052, %v5071
      %v5073 = vadd.f32 %v5072, 1.0
      %v5074 = vrcp.pop %v5073
      %v5075 = vmul.f32 %v5073, %v5074
      %v5076 = vsub.f32 1.0, %v5075
      %v5077 = vmul.f32 %v5074, %v5076
      %v5078 = vadd.f32 %v5074, %v5077
      %vm5079 = vweird.f32 %v5073
      %vm5080 = vweird.f32 %v5074
      %vm5081 = vmor %vm5079, %vm5080
      %v5082 = vsel %vm5081, %v5074, %v5078
      %v5083 = vand.u32 2147483647, %v5073
      %vm5084 = vcmp.eq.f32.partialorder %v5083, 8.507059e+37
      %v5085 = vand.u32 %v5073, 2147483648
      %v5086 = vor.u32 1.1754944e-38, %v5085
      %v5087 = vsel %vm5084, %v5086, %v5082
      %v5088 = vmul.f32 %v5063, %v5087
      %v5089 = vmin.f32 %v5088, 1.0
      %v5090 = vmax.f32 %v5089, -1.0
      %v5091 = vmul.f32 %v4357, %v4357
      %v5092 = vmin.f32 16.0, %v5091
      %v5093 = vmul.f32 %v5092, 2.1237322e-06
      %v5094 = vadd.f32 %v5093, 0.00028619796
      %v5095 = vmul.f32 %v5092, %v5094
      %v5096 = vadd.f32 %v5095, 0.0036580483
      %v5097 = vmul.f32 %v5092, %v5096
      %v5098 = vadd.f32 %v5097, 0.05243302
      %v5099 = vmul.f32 %v5092, %v5098
      %v5100 = vadd.f32 %v5099, 0.18741608
      %v5101 = vmul.f32 %v5092, %v5100
      %v5102 = vadd.f32 %v5101, 1.1283791
      %v5103 = vmul.f32 %v4357, %v5102
      %v5104 = vmul.f32 %v5092, 3.8918573e-05
      %v5105 = vadd.f32 %v5104, 0.001143296
      %v5106 = vmul.f32 %v5092, %v5105
      %v5107 = vadd.f32 %v5106, 0.014752088
      %v5108 = vmul.f32 %v5092, %v5107
      %v5109 = vadd.f32 %v5108, 0.112945676
      %v5110 = vmul.f32 %v5092, %v5109
      %v5111 = vadd.f32 %v5110, 0.4994258
      %v5112 = vmul.f32 %v5092, %v5111
      %v5113 = vadd.f32 %v5112, 1.0
      %v5114 = vrcp.pop %v5113
      %v5115 = vmul.f32 %v5113, %v5114
      %v5116 = vsub.f32 1.0, %v5115
      %v5117 = vmul.f32 %v5114, %v5116
      %v5118 = vadd.f32 %v5114, %v5117
      %vm5119 = vweird.f32 %v5113
      %vm5120 = vweird.f32 %v5114
      %vm5121 = vmor %vm5119, %vm5120
      %v5122 = vsel %vm5121, %v5114, %v5118
      %v5123 = vand.u32 2147483647, %v5113
      %vm5124 = vcmp.eq.f32.partialorder %v5123, 8.507059e+37
      %v5125 = vand.u32 %v5113, 2147483648
      %v5126 = vor.u32 1.1754944e-38, %v5125
      %v5127 = vsel %vm5124, %v5126, %v5122
      %v5128 = vmul.f32 %v5103, %v5127
      %v5129 = vmin.f32 %v5128, 1.0
      %v5130 = vmax.f32 %v5129, -1.0
      %v5131 = vmul.f32 %v4358, %v4358
      %v5132 = vmin.f32 16.0, %v5131
      %v5133 = vmul.f32 %v5132, 2.1237322e-06
      %v5134 = vadd.f32 %v5133, 0.00028619796
      %v5135 = vmul.f32 %v5132, %v5134
      %v5136 = vadd.f32 %v5135, 0.0036580483
      %v5137 = vmul.f32 %v5132, %v5136
      %v5138 = vadd.f32 %v5137, 0.05243302
      %v5139 = vmul.f32 %v5132, %v5138
      %v5140 = vadd.f32 %v5139, 0.18741608
      %v5141 = vmul.f32 %v5132, %v5140
      %v5142 = vadd.f32 %v5141, 1.1283791
      %v5143 = vmul.f32 %v4358, %v5142
      %v5144 = vmul.f32 %v5132, 3.8918573e-05
      %v5145 = vadd.f32 %v5144, 0.001143296
      %v5146 = vmul.f32 %v5132, %v5145
      %v5147 = vadd.f32 %v5146, 0.014752088
      %v5148 = vmul.f32 %v5132, %v5147
      %v5149 = vadd.f32 %v5148, 0.112945676
      %v5150 = vmul.f32 %v5132, %v5149
      %v5151 = vadd.f32 %v5150, 0.4994258
      %v5152 = vmul.f32 %v5132, %v5151
      %v5153 = vadd.f32 %v5152, 1.0
      %v5154 = vrcp.pop %v5153
      %v5155 = vmul.f32 %v5153, %v5154
      %v5156 = vsub.f32 1.0, %v5155
      %v5157 = vmul.f32 %v5154, %v5156
      %v5158 = vadd.f32 %v5154, %v5157
      %vm5159 = vweird.f32 %v5153
      %vm5160 = vweird.f32 %v5154
      %vm5161 = vmor %vm5159, %vm5160
      %v5162 = vsel %vm5161, %v5154, %v5158
      %v5163 = vand.u32 2147483647, %v5153
      %vm5164 = vcmp.eq.f32.partialorder %v5163, 8.507059e+37
      %v5165 = vand.u32 %v5153, 2147483648
      %v5166 = vor.u32 1.1754944e-38, %v5165
      %v5167 = vsel %vm5164, %v5166, %v5162
      %v5168 = vmul.f32 %v5143, %v5167
      %v5169 = vmin.f32 %v5168, 1.0
      %v5170 = vmax.f32 %v5169, -1.0
      %v5171 = vmul.f32 %v4359, %v4359
      %v5172 = vmin.f32 16.0, %v5171
      %v5173 = vmul.f32 %v5172, 2.1237322e-06
      %v5174 = vadd.f32 %v5173, 0.00028619796
      %v5175 = vmul.f32 %v5172, %v5174
      %v5176 = vadd.f32 %v5175, 0.0036580483
      %v5177 = vmul.f32 %v5172, %v5176
      %v5178 = vadd.f32 %v5177, 0.05243302
      %v5179 = vmul.f32 %v5172, %v5178
      %v5180 = vadd.f32 %v5179, 0.18741608
      %v5181 = vmul.f32 %v5172, %v5180
      %v5182 = vadd.f32 %v5181, 1.1283791
      %v5183 = vmul.f32 %v4359, %v5182
      %v5184 = vmul.f32 %v5172, 3.8918573e-05
      %v5185 = vadd.f32 %v5184, 0.001143296
      %v5186 = vmul.f32 %v5172, %v5185
      %v5187 = vadd.f32 %v5186, 0.014752088
      %v5188 = vmul.f32 %v5172, %v5187
      %v5189 = vadd.f32 %v5188, 0.112945676
      %v5190 = vmul.f32 %v5172, %v5189
      %v5191 = vadd.f32 %v5190, 0.4994258
      %v5192 = vmul.f32 %v5172, %v5191
      %v5193 = vadd.f32 %v5192, 1.0
      %v5194 = vrcp.pop %v5193
      %v5195 = vmul.f32 %v5193, %v5194
      %v5196 = vsub.f32 1.0, %v5195
      %v5197 = vmul.f32 %v5194, %v5196
      %v5198 = vadd.f32 %v5194, %v5197
      %vm5199 = vweird.f32 %v5193
      %vm5200 = vweird.f32 %v5194
      %vm5201 = vmor %vm5199, %vm5200
      %v5202 = vsel %vm5201, %v5194, %v5198
      %v5203 = vand.u32 2147483647, %v5193
      %vm5204 = vcmp.eq.f32.partialorder %v5203, 8.507059e+37
      %v5205 = vand.u32 %v5193, 2147483648
      %v5206 = vor.u32 1.1754944e-38, %v5205
      %v5207 = vsel %vm5204, %v5206, %v5202
      %v5208 = vmul.f32 %v5183, %v5207
      %v5209 = vmin.f32 %v5208, 1.0
      %v5210 = vmax.f32 %v5209, -1.0
      %v5211 = vmul.f32 %v4360, %v4360
      %v5212 = vmin.f32 16.0, %v5211
      %v5213 = vmul.f32 %v5212, 2.1237322e-06
      %v5214 = vadd.f32 %v5213, 0.00028619796
      %v5215 = vmul.f32 %v5212, %v5214
      %v5216 = vadd.f32 %v5215, 0.0036580483
      %v5217 = vmul.f32 %v5212, %v5216
      %v5218 = vadd.f32 %v5217, 0.05243302
      %v5219 = vmul.f32 %v5212, %v5218
      %v5220 = vadd.f32 %v5219, 0.18741608
      %v5221 = vmul.f32 %v5212, %v5220
      %v5222 = vadd.f32 %v5221, 1.1283791
      %v5223 = vmul.f32 %v4360, %v5222
      %v5224 = vmul.f32 %v5212, 3.8918573e-05
      %v5225 = vadd.f32 %v5224, 0.001143296
      %v5226 = vmul.f32 %v5212, %v5225
      %v5227 = vadd.f32 %v5226, 0.014752088
      %v5228 = vmul.f32 %v5212, %v5227
      %v5229 = vadd.f32 %v5228, 0.112945676
      %v5230 = vmul.f32 %v5212, %v5229
      %v5231 = vadd.f32 %v5230, 0.4994258
      %v5232 = vmul.f32 %v5212, %v5231
      %v5233 = vadd.f32 %v5232, 1.0
      %v5234 = vrcp.pop %v5233
      %v5235 = vmul.f32 %v5233, %v5234
      %v5236 = vsub.f32 1.0, %v5235
      %v5237 = vmul.f32 %v5234, %v5236
      %v5238 = vadd.f32 %v5234, %v5237
      %vm5239 = vweird.f32 %v5233
      %vm5240 = vweird.f32 %v5234
      %vm5241 = vmor %vm5239, %vm5240
      %v5242 = vsel %vm5241, %v5234, %v5238
      %v5243 = vand.u32 2147483647, %v5233
      %vm5244 = vcmp.eq.f32.partialorder %v5243, 8.507059e+37
      %v5245 = vand.u32 %v5233, 2147483648
      %v5246 = vor.u32 1.1754944e-38, %v5245
      %v5247 = vsel %vm5244, %v5246, %v5242
      %v5248 = vmul.f32 %v5223, %v5247
      %v5249 = vmin.f32 %v5248, 1.0
      %v5250 = vmax.f32 %v5249, -1.0
      %v5251 = vmul.f32 %v4361, %v4361
      %v5252 = vmin.f32 16.0, %v5251
      %v5253 = vmul.f32 %v5252, 2.1237322e-06
      %v5254 = vadd.f32 %v5253, 0.00028619796
      %v5255 = vmul.f32 %v5252, %v5254
      %v5256 = vadd.f32 %v5255, 0.0036580483
      %v5257 = vmul.f32 %v5252, %v5256
      %v5258 = vadd.f32 %v5257, 0.05243302
      %v5259 = vmul.f32 %v5252, %v5258
      %v5260 = vadd.f32 %v5259, 0.18741608
      %v5261 = vmul.f32 %v5252, %v5260
      %v5262 = vadd.f32 %v5261, 1.1283791
      %v5263 = vmul.f32 %v4361, %v5262
      %v5264 = vmul.f32 %v5252, 3.8918573e-05
      %v5265 = vadd.f32 %v5264, 0.001143296
      %v5266 = vmul.f32 %v5252, %v5265
      %v5267 = vadd.f32 %v5266, 0.014752088
      %v5268 = vmul.f32 %v5252, %v5267
      %v5269 = vadd.f32 %v5268, 0.112945676
      %v5270 = vmul.f32 %v5252, %v5269
      %v5271 = vadd.f32 %v5270, 0.4994258
      %v5272 = vmul.f32 %v5252, %v5271
      %v5273 = vadd.f32 %v5272, 1.0
      %v5274 = vrcp.pop %v5273
      %v5275 = vmul.f32 %v5273, %v5274
      %v5276 = vsub.f32 1.0, %v5275
      %v5277 = vmul.f32 %v5274, %v5276
      %v5278 = vadd.f32 %v5274, %v5277
      %vm5279 = vweird.f32 %v5273
      %vm5280 = vweird.f32 %v5274
      %vm5281 = vmor %vm5279, %vm5280
      %v5282 = vsel %vm5281, %v5274, %v5278
      %v5283 = vand.u32 2147483647, %v5273
      %vm5284 = vcmp.eq.f32.partialorder %v5283, 8.507059e+37
      %v5285 = vand.u32 %v5273, 2147483648
      %v5286 = vor.u32 1.1754944e-38, %v5285
      %v5287 = vsel %vm5284, %v5286, %v5282
      %v5288 = vmul.f32 %v5263, %v5287
      %v5289 = vmin.f32 %v5288, 1.0
      %v5290 = vmax.f32 %v5289, -1.0
      %v5291 = vmul.f32 %v4362, %v4362
      %v5292 = vmin.f32 16.0, %v5291
      %v5293 = vmul.f32 %v5292, 2.1237322e-06
      %v5294 = vadd.f32 %v5293, 0.00028619796
      %v5295 = vmul.f32 %v5292, %v5294
      %v5296 = vadd.f32 %v5295, 0.0036580483
      %v5297 = vmul.f32 %v5292, %v5296
      %v5298 = vadd.f32 %v5297, 0.05243302
      %v5299 = vmul.f32 %v5292, %v5298
      %v5300 = vadd.f32 %v5299, 0.18741608
      %v5301 = vmul.f32 %v5292, %v5300
      %v5302 = vadd.f32 %v5301, 1.1283791
      %v5303 = vmul.f32 %v4362, %v5302
      %v5304 = vmul.f32 %v5292, 3.8918573e-05
      %v5305 = vadd.f32 %v5304, 0.001143296
      %v5306 = vmul.f32 %v5292, %v5305
      %v5307 = vadd.f32 %v5306, 0.014752088
      %v5308 = vmul.f32 %v5292, %v5307
      %v5309 = vadd.f32 %v5308, 0.112945676
      %v5310 = vmul.f32 %v5292, %v5309
      %v5311 = vadd.f32 %v5310, 0.4994258
      %v5312 = vmul.f32 %v5292, %v5311
      %v5313 = vadd.f32 %v5312, 1.0
      %v5314 = vrcp.pop %v5313
      %v5315 = vmul.f32 %v5313, %v5314
      %v5316 = vsub.f32 1.0, %v5315
      %v5317 = vmul.f32 %v5314, %v5316
      %v5318 = vadd.f32 %v5314, %v5317
      %vm5319 = vweird.f32 %v5313
      %vm5320 = vweird.f32 %v5314
      %vm5321 = vmor %vm5319, %vm5320
      %v5322 = vsel %vm5321, %v5314, %v5318
      %v5323 = vand.u32 2147483647, %v5313
      %vm5324 = vcmp.eq.f32.partialorder %v5323, 8.507059e+37
      %v5325 = vand.u32 %v5313, 2147483648
      %v5326 = vor.u32 1.1754944e-38, %v5325
      %v5327 = vsel %vm5324, %v5326, %v5322
      %v5328 = vmul.f32 %v5303, %v5327
      %v5329 = vmin.f32 %v5328, 1.0
      %v5330 = vmax.f32 %v5329, -1.0
      %v5331 = vmul.f32 %v4363, %v4363
      %v5332 = vmin.f32 16.0, %v5331
      %v5333 = vmul.f32 %v5332, 2.1237322e-06
      %v5334 = vadd.f32 %v5333, 0.00028619796
      %v5335 = vmul.f32 %v5332, %v5334
      %v5336 = vadd.f32 %v5335, 0.0036580483
      %v5337 = vmul.f32 %v5332, %v5336
      %v5338 = vadd.f32 %v5337, 0.05243302
      %v5339 = vmul.f32 %v5332, %v5338
      %v5340 = vadd.f32 %v5339, 0.18741608
      %v5341 = vmul.f32 %v5332, %v5340
      %v5342 = vadd.f32 %v5341, 1.1283791
      %v5343 = vmul.f32 %v4363, %v5342
      %v5344 = vmul.f32 %v5332, 3.8918573e-05
      %v5345 = vadd.f32 %v5344, 0.001143296
      %v5346 = vmul.f32 %v5332, %v5345
      %v5347 = vadd.f32 %v5346, 0.014752088
      %v5348 = vmul.f32 %v5332, %v5347
      %v5349 = vadd.f32 %v5348, 0.112945676
      %v5350 = vmul.f32 %v5332, %v5349
      %v5351 = vadd.f32 %v5350, 0.4994258
      %v5352 = vmul.f32 %v5332, %v5351
      %v5353 = vadd.f32 %v5352, 1.0
      %v5354 = vrcp.pop %v5353
      %v5355 = vmul.f32 %v5353, %v5354
      %v5356 = vsub.f32 1.0, %v5355
      %v5357 = vmul.f32 %v5354, %v5356
      %v5358 = vadd.f32 %v5354, %v5357
      %vm5359 = vweird.f32 %v5353
      %vm5360 = vweird.f32 %v5354
      %vm5361 = vmor %vm5359, %vm5360
      %v5362 = vsel %vm5361, %v5354, %v5358
      %v5363 = vand.u32 2147483647, %v5353
      %vm5364 = vcmp.eq.f32.partialorder %v5363, 8.507059e+37
      %v5365 = vand.u32 %v5353, 2147483648
      %v5366 = vor.u32 1.1754944e-38, %v5365
      %v5367 = vsel %vm5364, %v5366, %v5362
      %v5368 = vmul.f32 %v5343, %v5367
      %v5369 = vmin.f32 %v5368, 1.0
      %v5370 = vmax.f32 %v5369, -1.0
      %v5371 = vmul.f32 %v4364, %v4364
      %v5372 = vmin.f32 16.0, %v5371
      %v5373 = vmul.f32 %v5372, 2.1237322e-06
      %v5374 = vadd.f32 %v5373, 0.00028619796
      %v5375 = vmul.f32 %v5372, %v5374
      %v5376 = vadd.f32 %v5375, 0.0036580483
      %v5377 = vmul.f32 %v5372, %v5376
      %v5378 = vadd.f32 %v5377, 0.05243302
      %v5379 = vmul.f32 %v5372, %v5378
      %v5380 = vadd.f32 %v5379, 0.18741608
      %v5381 = vmul.f32 %v5372, %v5380
      %v5382 = vadd.f32 %v5381, 1.1283791
      %v5383 = vmul.f32 %v4364, %v5382
      %v5384 = vmul.f32 %v5372, 3.8918573e-05
      %v5385 = vadd.f32 %v5384, 0.001143296
      %v5386 = vmul.f32 %v5372, %v5385
      %v5387 = vadd.f32 %v5386, 0.014752088
      %v5388 = vmul.f32 %v5372, %v5387
      %v5389 = vadd.f32 %v5388, 0.112945676
      %v5390 = vmul.f32 %v5372, %v5389
      %v5391 = vadd.f32 %v5390, 0.4994258
      %v5392 = vmul.f32 %v5372, %v5391
      %v5393 = vadd.f32 %v5392, 1.0
      %v5394 = vrcp.pop %v5393
      %v5395 = vmul.f32 %v5393, %v5394
      %v5396 = vsub.f32 1.0, %v5395
      %v5397 = vmul.f32 %v5394, %v5396
      %v5398 = vadd.f32 %v5394, %v5397
      %vm5399 = vweird.f32 %v5393
      %vm5400 = vweird.f32 %v5394
      %vm5401 = vmor %vm5399, %vm5400
      %v5402 = vsel %vm5401, %v5394, %v5398
      %v5403 = vand.u32 2147483647, %v5393
      %vm5404 = vcmp.eq.f32.partialorder %v5403, 8.507059e+37
      %v5405 = vand.u32 %v5393, 2147483648
      %v5406 = vor.u32 1.1754944e-38, %v5405
      %v5407 = vsel %vm5404, %v5406, %v5402
      %v5408 = vmul.f32 %v5383, %v5407
      %v5409 = vmin.f32 %v5408, 1.0
      %v5410 = vmax.f32 %v5409, -1.0
      %v5411 = vmul.f32 %v4365, %v4365
      %v5412 = vmin.f32 16.0, %v5411
      %v5413 = vmul.f32 %v5412, 2.1237322e-06
      %v5414 = vadd.f32 %v5413, 0.00028619796
      %v5415 = vmul.f32 %v5412, %v5414
      %v5416 = vadd.f32 %v5415, 0.0036580483
      %v5417 = vmul.f32 %v5412, %v5416
      %v5418 = vadd.f32 %v5417, 0.05243302
      %v5419 = vmul.f32 %v5412, %v5418
      %v5420 = vadd.f32 %v5419, 0.18741608
      %v5421 = vmul.f32 %v5412, %v5420
      %v5422 = vadd.f32 %v5421, 1.1283791
      %v5423 = vmul.f32 %v4365, %v5422
      %v5424 = vmul.f32 %v5412, 3.8918573e-05
      %v5425 = vadd.f32 %v5424, 0.001143296
      %v5426 = vmul.f32 %v5412, %v5425
      %v5427 = vadd.f32 %v5426, 0.014752088
      %v5428 = vmul.f32 %v5412, %v5427
      %v5429 = vadd.f32 %v5428, 0.112945676
      %v5430 = vmul.f32 %v5412, %v5429
      %v5431 = vadd.f32 %v5430, 0.4994258
      %v5432 = vmul.f32 %v5412, %v5431
      %v5433 = vadd.f32 %v5432, 1.0
      %v5434 = vrcp.pop %v5433
      %v5435 = vmul.f32 %v5433, %v5434
      %v5436 = vsub.f32 1.0, %v5435
      %v5437 = vmul.f32 %v5434, %v5436
      %v5438 = vadd.f32 %v5434, %v5437
      %vm5439 = vweird.f32 %v5433
      %vm5440 = vweird.f32 %v5434
      %vm5441 = vmor %vm5439, %vm5440
      %v5442 = vsel %vm5441, %v5434, %v5438
      %v5443 = vand.u32 2147483647, %v5433
      %vm5444 = vcmp.eq.f32.partialorder %v5443, 8.507059e+37
      %v5445 = vand.u32 %v5433, 2147483648
      %v5446 = vor.u32 1.1754944e-38, %v5445
      %v5447 = vsel %vm5444, %v5446, %v5442
      %v5448 = vmul.f32 %v5423, %v5447
      %v5449 = vmin.f32 %v5448, 1.0
      %v5450 = vmax.f32 %v5449, -1.0
      %v5451 = vmul.f32 %v4366, %v4366
      %v5452 = vmin.f32 16.0, %v5451
      %v5453 = vmul.f32 %v5452, 2.1237322e-06
      %v5454 = vadd.f32 %v5453, 0.00028619796
      %v5455 = vmul.f32 %v5452, %v5454
      %v5456 = vadd.f32 %v5455, 0.0036580483
      %v5457 = vmul.f32 %v5452, %v5456
      %v5458 = vadd.f32 %v5457, 0.05243302
      %v5459 = vmul.f32 %v5452, %v5458
      %v5460 = vadd.f32 %v5459, 0.18741608
      %v5461 = vmul.f32 %v5452, %v5460
      %v5462 = vadd.f32 %v5461, 1.1283791
      %v5463 = vmul.f32 %v4366, %v5462
      %v5464 = vmul.f32 %v5452, 3.8918573e-05
      %v5465 = vadd.f32 %v5464, 0.001143296
      %v5466 = vmul.f32 %v5452, %v5465
      %v5467 = vadd.f32 %v5466, 0.014752088
      %v5468 = vmul.f32 %v5452, %v5467
      %v5469 = vadd.f32 %v5468, 0.112945676
      %v5470 = vmul.f32 %v5452, %v5469
      %v5471 = vadd.f32 %v5470, 0.4994258
      %v5472 = vmul.f32 %v5452, %v5471
      %v5473 = vadd.f32 %v5472, 1.0
      %v5474 = vrcp.pop %v5473
      %v5475 = vmul.f32 %v5473, %v5474
      %v5476 = vsub.f32 1.0, %v5475
      %v5477 = vmul.f32 %v5474, %v5476
      %v5478 = vadd.f32 %v5474, %v5477
      %vm5479 = vweird.f32 %v5473
      %vm5480 = vweird.f32 %v5474
      %vm5481 = vmor %vm5479, %vm5480
      %v5482 = vsel %vm5481, %v5474, %v5478
      %v5483 = vand.u32 2147483647, %v5473
      %vm5484 = vcmp.eq.f32.partialorder %v5483, 8.507059e+37
      %v5485 = vand.u32 %v5473, 2147483648
      %v5486 = vor.u32 1.1754944e-38, %v5485
      %v5487 = vsel %vm5484, %v5486, %v5482
      %v5488 = vmul.f32 %v5463, %v5487
      %v5489 = vmin.f32 %v5488, 1.0
      %v5490 = vmax.f32 %v5489, -1.0
      %v5491 = vmul.f32 %v4367, %v4367
      %v5492 = vmin.f32 16.0, %v5491
      %v5493 = vmul.f32 %v5492, 2.1237322e-06
      %v5494 = vadd.f32 %v5493, 0.00028619796
      %v5495 = vmul.f32 %v5492, %v5494
      %v5496 = vadd.f32 %v5495, 0.0036580483
      %v5497 = vmul.f32 %v5492, %v5496
      %v5498 = vadd.f32 %v5497, 0.05243302
      %v5499 = vmul.f32 %v5492, %v5498
      %v5500 = vadd.f32 %v5499, 0.18741608
      %v5501 = vmul.f32 %v5492, %v5500
      %v5502 = vadd.f32 %v5501, 1.1283791
      %v5503 = vmul.f32 %v4367, %v5502
      %v5504 = vmul.f32 %v5492, 3.8918573e-05
      %v5505 = vadd.f32 %v5504, 0.001143296
      %v5506 = vmul.f32 %v5492, %v5505
      %v5507 = vadd.f32 %v5506, 0.014752088
      %v5508 = vmul.f32 %v5492, %v5507
      %v5509 = vadd.f32 %v5508, 0.112945676
      %v5510 = vmul.f32 %v5492, %v5509
      %v5511 = vadd.f32 %v5510, 0.4994258
      %v5512 = vmul.f32 %v5492, %v5511
      %v5513 = vadd.f32 %v5512, 1.0
      %v5514 = vrcp.pop %v5513
      %v5515 = vmul.f32 %v5513, %v5514
      %v5516 = vsub.f32 1.0, %v5515
      %v5517 = vmul.f32 %v5514, %v5516
      %v5518 = vadd.f32 %v5514, %v5517
      %vm5519 = vweird.f32 %v5513
      %vm5520 = vweird.f32 %v5514
      %vm5521 = vmor %vm5519, %vm5520
      %v5522 = vsel %vm5521, %v5514, %v5518
      %v5523 = vand.u32 2147483647, %v5513
      %vm5524 = vcmp.eq.f32.partialorder %v5523, 8.507059e+37
      %v5525 = vand.u32 %v5513, 2147483648
      %v5526 = vor.u32 1.1754944e-38, %v5525
      %v5527 = vsel %vm5524, %v5526, %v5522
      %v5528 = vmul.f32 %v5503, %v5527
      %v5529 = vmin.f32 %v5528, 1.0
      %v5530 = vmax.f32 %v5529, -1.0
      %v5531 = vmul.f32 %v4368, %v4368
      %v5532 = vmin.f32 16.0, %v5531
      %v5533 = vmul.f32 %v5532, 2.1237322e-06
      %v5534 = vadd.f32 %v5533, 0.00028619796
      %v5535 = vmul.f32 %v5532, %v5534
      %v5536 = vadd.f32 %v5535, 0.0036580483
      %v5537 = vmul.f32 %v5532, %v5536
      %v5538 = vadd.f32 %v5537, 0.05243302
      %v5539 = vmul.f32 %v5532, %v5538
      %v5540 = vadd.f32 %v5539, 0.18741608
      %v5541 = vmul.f32 %v5532, %v5540
      %v5542 = vadd.f32 %v5541, 1.1283791
      %v5543 = vmul.f32 %v4368, %v5542
      %v5544 = vmul.f32 %v5532, 3.8918573e-05
      %v5545 = vadd.f32 %v5544, 0.001143296
      %v5546 = vmul.f32 %v5532, %v5545
      %v5547 = vadd.f32 %v5546, 0.014752088
      %v5548 = vmul.f32 %v5532, %v5547
      %v5549 = vadd.f32 %v5548, 0.112945676
      %v5550 = vmul.f32 %v5532, %v5549
      %v5551 = vadd.f32 %v5550, 0.4994258
      %v5552 = vmul.f32 %v5532, %v5551
      %v5553 = vadd.f32 %v5552, 1.0
      %v5554 = vrcp.pop %v5553
      %v5555 = vmul.f32 %v5553, %v5554
      %v5556 = vsub.f32 1.0, %v5555
      %v5557 = vmul.f32 %v5554, %v5556
      %v5558 = vadd.f32 %v5554, %v5557
      %vm5559 = vweird.f32 %v5553
      %vm5560 = vweird.f32 %v5554
      %vm5561 = vmor %vm5559, %vm5560
      %v5562 = vsel %vm5561, %v5554, %v5558
      %v5563 = vand.u32 2147483647, %v5553
      %vm5564 = vcmp.eq.f32.partialorder %v5563, 8.507059e+37
      %v5565 = vand.u32 %v5553, 2147483648
      %v5566 = vor.u32 1.1754944e-38, %v5565
      %v5567 = vsel %vm5564, %v5566, %v5562
      %v5568 = vmul.f32 %v5543, %v5567
      %v5569 = vmin.f32 %v5568, 1.0
      %v5570 = vmax.f32 %v5569, -1.0
      %v5571 = vmul.f32 %v4369, %v4369
      %v5572 = vmin.f32 16.0, %v5571
      %v5573 = vmul.f32 %v5572, 2.1237322e-06
      %v5574 = vadd.f32 %v5573, 0.00028619796
      %v5575 = vmul.f32 %v5572, %v5574
      %v5576 = vadd.f32 %v5575, 0.0036580483
      %v5577 = vmul.f32 %v5572, %v5576
      %v5578 = vadd.f32 %v5577, 0.05243302
      %v5579 = vmul.f32 %v5572, %v5578
      %v5580 = vadd.f32 %v5579, 0.18741608
      %v5581 = vmul.f32 %v5572, %v5580
      %v5582 = vadd.f32 %v5581, 1.1283791
      %v5583 = vmul.f32 %v4369, %v5582
      %v5584 = vmul.f32 %v5572, 3.8918573e-05
      %v5585 = vadd.f32 %v5584, 0.001143296
      %v5586 = vmul.f32 %v5572, %v5585
      %v5587 = vadd.f32 %v5586, 0.014752088
      %v5588 = vmul.f32 %v5572, %v5587
      %v5589 = vadd.f32 %v5588, 0.112945676
      %v5590 = vmul.f32 %v5572, %v5589
      %v5591 = vadd.f32 %v5590, 0.4994258
      %v5592 = vmul.f32 %v5572, %v5591
      %v5593 = vadd.f32 %v5592, 1.0
      %v5594 = vrcp.pop %v5593
      %v5595 = vmul.f32 %v5593, %v5594
      %v5596 = vsub.f32 1.0, %v5595
      %v5597 = vmul.f32 %v5594, %v5596
      %v5598 = vadd.f32 %v5594, %v5597
      %vm5599 = vweird.f32 %v5593
      %vm5600 = vweird.f32 %v5594
      %vm5601 = vmor %vm5599, %vm5600
      %v5602 = vsel %vm5601, %v5594, %v5598
      %v5603 = vand.u32 2147483647, %v5593
      %vm5604 = vcmp.eq.f32.partialorder %v5603, 8.507059e+37
      %v5605 = vand.u32 %v5593, 2147483648
      %v5606 = vor.u32 1.1754944e-38, %v5605
      %v5607 = vsel %vm5604, %v5606, %v5602
      %v5608 = vmul.f32 %v5583, %v5607
      %v5609 = vmin.f32 %v5608, 1.0
      %v5610 = vmax.f32 %v5609, -1.0
      %v5611 = vmul.f32 %v4370, %v4370
      %v5612 = vmin.f32 16.0, %v5611
      %v5613 = vmul.f32 %v5612, 2.1237322e-06
      %v5614 = vadd.f32 %v5613, 0.00028619796
      %v5615 = vmul.f32 %v5612, %v5614
      %v5616 = vadd.f32 %v5615, 0.0036580483
      %v5617 = vmul.f32 %v5612, %v5616
      %v5618 = vadd.f32 %v5617, 0.05243302
      %v5619 = vmul.f32 %v5612, %v5618
      %v5620 = vadd.f32 %v5619, 0.18741608
      %v5621 = vmul.f32 %v5612, %v5620
      %v5622 = vadd.f32 %v5621, 1.1283791
      %v5623 = vmul.f32 %v4370, %v5622
      %v5624 = vmul.f32 %v5612, 3.8918573e-05
      %v5625 = vadd.f32 %v5624, 0.001143296
      %v5626 = vmul.f32 %v5612, %v5625
      %v5627 = vadd.f32 %v5626, 0.014752088
      %v5628 = vmul.f32 %v5612, %v5627
      %v5629 = vadd.f32 %v5628, 0.112945676
      %v5630 = vmul.f32 %v5612, %v5629
      %v5631 = vadd.f32 %v5630, 0.4994258
      %v5632 = vmul.f32 %v5612, %v5631
      %v5633 = vadd.f32 %v5632, 1.0
      %v5634 = vrcp.pop %v5633
      %v5635 = vmul.f32 %v5633, %v5634
      %v5636 = vsub.f32 1.0, %v5635
      %v5637 = vmul.f32 %v5634, %v5636
      %v5638 = vadd.f32 %v5634, %v5637
      %vm5639 = vweird.f32 %v5633
      %vm5640 = vweird.f32 %v5634
      %vm5641 = vmor %vm5639, %vm5640
      %v5642 = vsel %vm5641, %v5634, %v5638
      %v5643 = vand.u32 2147483647, %v5633
      %vm5644 = vcmp.eq.f32.partialorder %v5643, 8.507059e+37
      %v5645 = vand.u32 %v5633, 2147483648
      %v5646 = vor.u32 1.1754944e-38, %v5645
      %v5647 = vsel %vm5644, %v5646, %v5642
      %v5648 = vmul.f32 %v5623, %v5647
      %v5649 = vmin.f32 %v5648, 1.0
      %v5650 = vmax.f32 %v5649, -1.0
      %v5651 = vadd.f32 %v4410, 1.0
      %v5652 = vadd.f32 %v4450, 1.0
      %v5653 = vadd.f32 %v4490, 1.0
      %v5654 = vadd.f32 %v4530, 1.0
      %v5655 = vadd.f32 %v4570, 1.0
      %v5656 = vadd.f32 %v4610, 1.0
      %v5657 = vadd.f32 %v4650, 1.0
      %v5658 = vadd.f32 %v4690, 1.0
      %v5659 = vadd.f32 %v4730, 1.0
      %v5660 = vadd.f32 %v4770, 1.0
      %v5661 = vadd.f32 %v4810, 1.0
      %v5662 = vadd.f32 %v4850, 1.0
      %v5663 = vadd.f32 %v4890, 1.0
      %v5664 = vadd.f32 %v4930, 1.0
      %v5665 = vadd.f32 %v4970, 1.0
      %v5666 = vadd.f32 %v5010, 1.0
      %v5667 = vadd.f32 %v5050, 1.0
      %v5668 = vadd.f32 %v5090, 1.0
      %v5669 = vadd.f32 %v5130, 1.0
      %v5670 = vadd.f32 %v5170, 1.0
      %v5671 = vadd.f32 %v5210, 1.0
      %v5672 = vadd.f32 %v5250, 1.0
      %v5673 = vadd.f32 %v5290, 1.0
      %v5674 = vadd.f32 %v5330, 1.0
      %v5675 = vadd.f32 %v5370, 1.0
      %v5676 = vadd.f32 %v5410, 1.0
      %v5677 = vadd.f32 %v5450, 1.0
      %v5678 = vadd.f32 %v5490, 1.0
      %v5679 = vadd.f32 %v5530, 1.0
      %v5680 = vadd.f32 %v5570, 1.0
      %v5681 = vadd.f32 %v5610, 1.0
      %v5682 = vadd.f32 %v5650, 1.0
      %v5683 = vmul.f32 %v4307, %v5651
      %v5684 = vmul.f32 %v4308, %v5652
      %v5685 = vmul.f32 %v4309, %v5653
      %v5686 = vmul.f32 %v4310, %v5654
      %v5687 = vmul.f32 %v4311, %v5655
      %v5688 = vmul.f32 %v4312, %v5656
      %v5689 = vmul.f32 %v4313, %v5657
      %v5690 = vmul.f32 %v4314, %v5658
      %v5691 = vmul.f32 %v4315, %v5659
      %v5692 = vmul.f32 %v4316, %v5660
      %v5693 = vmul.f32 %v4317, %v5661
      %v5694 = vmul.f32 %v4318, %v5662
      %v5695 = vmul.f32 %v4319, %v5663
      %v5696 = vmul.f32 %v4320, %v5664
      %v5697 = vmul.f32 %v4321, %v5665
      %v5698 = vmul.f32 %v4322, %v5666
      %v5699 = vmul.f32 %v4323, %v5667
      %v5700 = vmul.f32 %v4324, %v5668
      %v5701 = vmul.f32 %v4325, %v5669
      %v5702 = vmul.f32 %v4326, %v5670
      %v5703 = vmul.f32 %v4327, %v5671
      %v5704 = vmul.f32 %v4328, %v5672
      %v5705 = vmul.f32 %v4329, %v5673
      %v5706 = vmul.f32 %v4330, %v5674
      %v5707 = vmul.f32 %v4331, %v5675
      %v5708 = vmul.f32 %v4332, %v5676
      %v5709 = vmul.f32 %v4333, %v5677
      %v5710 = vmul.f32 %v4334, %v5678
      %v5711 = vmul.f32 %v4335, %v5679
      %v5712 = vmul.f32 %v4336, %v5680
      %v5713 = vmul.f32 %v4337, %v5681
      %v5714 = vmul.f32 %v4338, %v5682
      %v5715 = vpack.c.bf16 %v5685, %v5683
      %v5716 = vpack.c.bf16 %v5686, %v5684
      %v5717 = vpack.c.bf16 %v5689, %v5687
      %v5718 = vpack.c.bf16 %v5690, %v5688
      %v5719 = vpack.c.bf16 %v5693, %v5691
      %v5720 = vpack.c.bf16 %v5694, %v5692
      %v5721 = vpack.c.bf16 %v5697, %v5695
      %v5722 = vpack.c.bf16 %v5698, %v5696
      %v5723 = vpack.c.bf16 %v5701, %v5699
      %v5724 = vpack.c.bf16 %v5702, %v5700
      %v5725 = vpack.c.bf16 %v5705, %v5703
      %v5726 = vpack.c.bf16 %v5706, %v5704
      %v5727 = vpack.c.bf16 %v5709, %v5707
      %v5728 = vpack.c.bf16 %v5710, %v5708
      %v5729 = vpack.c.bf16 %v5713, %v5711
      %v5730 = vpack.c.bf16 %v5714, %v5712
      %s5731 = scalar_lea.vmem %s1, 768
      %v5732 = vld [vmem:[%s5731] sm:$0xff]
      %v5733 = vld [vmem:[%s5731 + $0x8] sm:$0xff]
      %v5734 = vld [vmem:[%s5731 + $0x10] sm:$0xff]
      %v5735 = vld [vmem:[%s5731 + $0x18] sm:$0xff]
      %v5736 = vld [vmem:[%s5731 + $0x20] sm:$0xff]
      %v5737 = vld [vmem:[%s5731 + $0x28] sm:$0xff]
      %v5738 = vld [vmem:[%s5731 + $0x30] sm:$0xff]
      %v5739 = vld [vmem:[%s5731 + $0x38] sm:$0xff]
      %v5740 = vld [vmem:[%s5731 + $0x40] sm:$0xff]
      %v5741 = vld [vmem:[%s5731 + $0x48] sm:$0xff]
      %v5742 = vld [vmem:[%s5731 + $0x50] sm:$0xff]
      %v5743 = vld [vmem:[%s5731 + $0x58] sm:$0xff]
      %v5744 = vld [vmem:[%s5731 + $0x60] sm:$0xff]
      %v5745 = vld [vmem:[%s5731 + $0x68] sm:$0xff]
      %v5746 = vld [vmem:[%s5731 + $0x70] sm:$0xff]
      %v5747 = vld [vmem:[%s5731 + $0x78] sm:$0xff]
      %v5748 = vld [vmem:[%s5731 + $0x80] sm:$0xff]
      %v5749 = vld [vmem:[%s5731 + $0x88] sm:$0xff]
      %v5750 = vld [vmem:[%s5731 + $0x90] sm:$0xff]
      %v5751 = vld [vmem:[%s5731 + $0x98] sm:$0xff]
      %v5752 = vld [vmem:[%s5731 + $0xa0] sm:$0xff]
      %v5753 = vld [vmem:[%s5731 + $0xa8] sm:$0xff]
      %v5754 = vld [vmem:[%s5731 + $0xb0] sm:$0xff]
      %v5755 = vld [vmem:[%s5731 + $0xb8] sm:$0xff]
      %v5756 = vld [vmem:[%s5731 + $0xc0] sm:$0xff]
      %v5757 = vld [vmem:[%s5731 + $0xc8] sm:$0xff]
      %v5758 = vld [vmem:[%s5731 + $0xd0] sm:$0xff]
      %v5759 = vld [vmem:[%s5731 + $0xd8] sm:$0xff]
      %v5760 = vld [vmem:[%s5731 + $0xe0] sm:$0xff]
      %v5761 = vld [vmem:[%s5731 + $0xe8] sm:$0xff]
      %v5762 = vld [vmem:[%s5731 + $0xf0] sm:$0xff]
      %v5763 = vld [vmem:[%s5731 + $0xf8] sm:$0xff]
      %s5764 = scalar_lea.vmem %s2, 3
      %v5765 = vld [vmem:[%s5764] ss:$8 sm:$0x3]
      %v5767 = vperm.slane %v5765, 0
      %v5801 = vunpack.c.l.b16 %v5732
      %v5802 = vunpack.c.l.b16 %v5733
      %v5803 = vunpack.c.l.b16 %v5734
      %v5804 = vunpack.c.l.b16 %v5735
      %v5805 = vunpack.c.l.b16 %v5736
      %v5806 = vunpack.c.l.b16 %v5737
      %v5807 = vunpack.c.l.b16 %v5738
      %v5808 = vunpack.c.l.b16 %v5739
      %v5809 = vunpack.c.l.b16 %v5740
      %v5810 = vunpack.c.l.b16 %v5741
      %v5811 = vunpack.c.l.b16 %v5742
      %v5812 = vunpack.c.l.b16 %v5743
      %v5813 = vunpack.c.l.b16 %v5744
      %v5814 = vunpack.c.l.b16 %v5745
      %v5815 = vunpack.c.l.b16 %v5746
      %v5816 = vunpack.c.l.b16 %v5747
      %v5817 = vunpack.c.l.b16 %v5748
      %v5818 = vunpack.c.l.b16 %v5749
      %v5819 = vunpack.c.l.b16 %v5750
      %v5820 = vunpack.c.l.b16 %v5751
      %v5821 = vunpack.c.l.b16 %v5752
      %v5822 = vunpack.c.l.b16 %v5753
      %v5823 = vunpack.c.l.b16 %v5754
      %v5824 = vunpack.c.l.b16 %v5755
      %v5825 = vunpack.c.l.b16 %v5756
      %v5826 = vunpack.c.l.b16 %v5757
      %v5827 = vunpack.c.l.b16 %v5758
      %v5828 = vunpack.c.l.b16 %v5759
      %v5829 = vunpack.c.l.b16 %v5760
      %v5830 = vunpack.c.l.b16 %v5761
      %v5831 = vunpack.c.l.b16 %v5762
      %v5832 = vunpack.c.l.b16 %v5763
      %v5833 = vpack.c.b16 %v5802, %v5801
      %v5834 = vpack.c.b16 %v5804, %v5803
      %v5835 = vpack.c.b16 %v5806, %v5805
      %v5836 = vpack.c.b16 %v5808, %v5807
      %v5837 = vpack.c.b16 %v5810, %v5809
      %v5838 = vpack.c.b16 %v5812, %v5811
      %v5839 = vpack.c.b16 %v5814, %v5813
      %v5840 = vpack.c.b16 %v5816, %v5815
      %v5841 = vpack.c.b16 %v5818, %v5817
      %v5842 = vpack.c.b16 %v5820, %v5819
      %v5843 = vpack.c.b16 %v5822, %v5821
      %v5844 = vpack.c.b16 %v5824, %v5823
      %v5845 = vpack.c.b16 %v5826, %v5825
      %v5846 = vpack.c.b16 %v5828, %v5827
      %v5847 = vpack.c.b16 %v5830, %v5829
      %v5848 = vpack.c.b16 %v5832, %v5831
      %5865 = vmatpush.bf16.msra.mxu0 %v5840
      %5866 = vmatpush.bf16.msra.mxu0 %v5839
      %5867 = vmatpush.bf16.msra.mxu0 %v5838
      %5868 = vmatpush.bf16.msra.mxu0 %v5837
      %5869 = vmatpush.bf16.msra.mxu0 %v5836
      %5870 = vmatpush.bf16.msra.mxu0 %v5835
      %5871 = vmatpush.bf16.msra.mxu0 %v5834
      %5872 = vmatpush.bf16.msra.mxu0 %v5833
      %5873 = vmatmul.bf16.gmra.mxu0 %v5715
      %v5874 = vpop.f32.mrf.mxu0
      %v5875 = vadd.f32 %v5767, %v5874
      %v5876 = vpop.f32.mrf.mxu0
      %v5877 = vadd.f32 %v5767, %v5876
      %5878 = vmatmul.bf16.gmra.mxu0 %v5717
      %v5879 = vpop.f32.mrf.mxu0
      %v5880 = vadd.f32 %v5767, %v5879
      %v5881 = vpop.f32.mrf.mxu0
      %v5882 = vadd.f32 %v5767, %v5881
      %5883 = vmatmul.bf16.gmra.mxu0 %v5719
      %v5884 = vpop.f32.mrf.mxu0
      %v5885 = vadd.f32 %v5767, %v5884
      %v5886 = vpop.f32.mrf.mxu0
      %v5887 = vadd.f32 %v5767, %v5886
      %5888 = vmatmul.bf16.gmra.mxu0 %v5721
      %v5889 = vpop.f32.mrf.mxu0
      %v5890 = vadd.f32 %v5767, %v5889
      %v5891 = vpop.f32.mrf.mxu0
      %v5892 = vadd.f32 %v5767, %v5891
      %5893 = vmatmul.bf16.gmra.mxu0 %v5723
      %v5894 = vpop.f32.mrf.mxu0
      %v5895 = vadd.f32 %v5767, %v5894
      %v5896 = vpop.f32.mrf.mxu0
      %v5897 = vadd.f32 %v5767, %v5896
      %5898 = vmatmul.bf16.gmra.mxu0 %v5725
      %v5899 = vpop.f32.mrf.mxu0
      %v5900 = vadd.f32 %v5767, %v5899
      %v5901 = vpop.f32.mrf.mxu0
      %v5902 = vadd.f32 %v5767, %v5901
      %5903 = vmatmul.bf16.gmra.mxu0 %v5727
      %v5904 = vpop.f32.mrf.mxu0
      %v5905 = vadd.f32 %v5767, %v5904
      %v5906 = vpop.f32.mrf.mxu0
      %v5907 = vadd.f32 %v5767, %v5906
      %5908 = vmatmul.bf16.gmra.mxu0 %v5729
      %v5909 = vpop.f32.mrf.mxu0
      %v5910 = vadd.f32 %v5767, %v5909
      %v5911 = vpop.f32.mrf.mxu0
      %v5912 = vadd.f32 %v5767, %v5911
      %5913 = vdwg.mxu0
      %5914 = vmatpush.bf16.msra.mxu0 %v5848
      %5915 = vmatpush.bf16.msra.mxu0 %v5847
      %5916 = vmatpush.bf16.msra.mxu0 %v5846
      %5917 = vmatpush.bf16.msra.mxu0 %v5845
      %5918 = vmatpush.bf16.msra.mxu0 %v5844
      %5919 = vmatpush.bf16.msra.mxu0 %v5843
      %5920 = vmatpush.bf16.msra.mxu0 %v5842
      %5921 = vmatpush.bf16.msra.mxu0 %v5841
      %5922 = vmatmul.bf16.gmra.mxu0 %v5716
      %v5923 = vpop.f32.mrf.mxu0
      %v5924 = vadd.f32 %v5875, %v5923
      %v5925 = vpop.f32.mrf.mxu0
      %v5926 = vadd.f32 %v5877, %v5925
      %5927 = vmatmul.bf16.gmra.mxu0 %v5718
      %v5928 = vpop.f32.mrf.mxu0
      %v5929 = vadd.f32 %v5880, %v5928
      %v5930 = vpop.f32.mrf.mxu0
      %v5931 = vadd.f32 %v5882, %v5930
      %5932 = vmatmul.bf16.gmra.mxu0 %v5720
      %v5933 = vpop.f32.mrf.mxu0
      %v5934 = vadd.f32 %v5885, %v5933
      %v5935 = vpop.f32.mrf.mxu0
      %v5936 = vadd.f32 %v5887, %v5935
      %5937 = vmatmul.bf16.gmra.mxu0 %v5722
      %v5938 = vpop.f32.mrf.mxu0
      %v5939 = vadd.f32 %v5890, %v5938
      %v5940 = vpop.f32.mrf.mxu0
      %v5941 = vadd.f32 %v5892, %v5940
      %5942 = vmatmul.bf16.gmra.mxu0 %v5724
      %v5943 = vpop.f32.mrf.mxu0
      %v5944 = vadd.f32 %v5895, %v5943
      %v5945 = vpop.f32.mrf.mxu0
      %v5946 = vadd.f32 %v5897, %v5945
      %5947 = vmatmul.bf16.gmra.mxu0 %v5726
      %v5948 = vpop.f32.mrf.mxu0
      %v5949 = vadd.f32 %v5900, %v5948
      %v5950 = vpop.f32.mrf.mxu0
      %v5951 = vadd.f32 %v5902, %v5950
      %5952 = vmatmul.bf16.gmra.mxu0 %v5728
      %v5953 = vpop.f32.mrf.mxu0
      %v5954 = vadd.f32 %v5905, %v5953
      %v5955 = vpop.f32.mrf.mxu0
      %v5956 = vadd.f32 %v5907, %v5955
      %5957 = vmatmul.bf16.gmra.mxu0 %v5730
      %v5958 = vpop.f32.mrf.mxu0
      %v5959 = vadd.f32 %v5910, %v5958
      %v5960 = vpop.f32.mrf.mxu0
      %v5961 = vadd.f32 %v5912, %v5960
      %5962 = vdwg.mxu0
      %5963 = vst [vmem:[%s175] sm:$0xff] %v5924
      %5964 = vst [vmem:[%s175 + $0x8] sm:$0xff] %v5926
      %5965 = vst [vmem:[%s175 + $0x10] sm:$0xff] %v5929
      %5966 = vst [vmem:[%s175 + $0x18] sm:$0xff] %v5931
      %5967 = vst [vmem:[%s175 + $0x20] sm:$0xff] %v5934
      %5968 = vst [vmem:[%s175 + $0x28] sm:$0xff] %v5936
      %5969 = vst [vmem:[%s175 + $0x30] sm:$0xff] %v5939
      %5970 = vst [vmem:[%s175 + $0x38] sm:$0xff] %v5941
      %5971 = vst [vmem:[%s175 + $0x40] sm:$0xff] %v5944
      %5972 = vst [vmem:[%s175 + $0x48] sm:$0xff] %v5946
      %5973 = vst [vmem:[%s175 + $0x50] sm:$0xff] %v5949
      %5974 = vst [vmem:[%s175 + $0x58] sm:$0xff] %v5951
      %5975 = vst [vmem:[%s175 + $0x60] sm:$0xff] %v5954
      %5976 = vst [vmem:[%s175 + $0x68] sm:$0xff] %v5956
      %5977 = vst [vmem:[%s175 + $0x70] sm:$0xff] %v5959
      %5978 = vst [vmem:[%s175 + $0x78] sm:$0xff] %v5961
      %s5979 = smul.u32 16, %s14
      %p5980 = scmp.lt.s32.totalorder %s5979, 63
      %s5981 = scalar_select %p5980, %s5979, 63
      %s5982 = smul.addr %s5981, 8
      %s5983 = scalar_lea.vmem %s3, %s5982
      // Predicated region
      $region33: #{one_step_policy_forward.1} parent=31 // pred_check
        %p5984 = pneg %p100
      $region34: #{one_step_policy_forward.1} parent=31 // pred_check_branch
        %5986 = sbr.rel (%p5984) target = $region36
      $region35: #{one_step_policy_forward.1} parent=31 // pred_region
        %s5987 = smul.u32 16, %s14
      $region36: #{one_step_policy_forward.1} parent=31 // pred_fallthru
        _
    $region32: #{one_step_policy_forward.1} parent=5 // pred_fallthru
      _
    %p5988 = scmp.le.s32.totalorder 2, %s9
    // Predicated region
    $region37: #{one_step_policy_forward.1} parent=5 // pred_check
      %p5989 = pneg %p5988
    $region38: #{one_step_policy_forward.1} parent=5 // pred_check_branch
      %5991 = sbr.rel (%p5989) target = $region40
    $region39: #{one_step_policy_forward.1} parent=5 // pred_region
      %s5992 = ssub.s32 %s9, 2
      // Predicated region
      $region41: #{one_step_policy_forward.1} parent=39 // pred_check
        %p5993 = pneg %p106
      $region42: #{one_step_policy_forward.1} parent=39 // pred_check_branch
        %5995 = sbr.rel (%p5993) target = $region44
      $region43: #{one_step_policy_forward.1} parent=39 // pred_region
        %s5996 = smul.u32 16, %s15
        %p5997 = scmp.lt.s32.totalorder %s5996, 63
        %s5998 = scalar_select %p5997, %s5996, 63
        %s5999 = smul.addr %s5998, 8
        %s6000 = scalar_lea.vmem %s3, %s5999
      $region44: #{one_step_policy_forward.1} parent=39 // pred_fallthru
        _
    $region40: #{one_step_policy_forward.1} parent=5 // pred_fallthru
      _
  $region6: #{one_step_policy_forward.1} parent=0 // loop_footer
    %s13 = sadd.s32 1, %s9
  $region7: #{one_step_policy_forward.1} parent=0 // loop_footer_branch
    %8 = sbr.rel target = $region3
  $region8: #{one_step_policy_forward.1} parent=0 // loop_exit
    _

</llo_original>
